<compile_context>
chip_gen: v7x
topology: tpu7x:2x2x1
jax: 0.10.0
libtpu: 0.0.40
codegen_flags: <defaults>
</compile_context>

<pallas_src>
import jax
import jax.numpy as jnp
from jax.experimental import pallas as pl
from jax.experimental.pallas import tpu as pltpu


def _vgg2l_kernel(len_ref, xw_ref, w1_ref, b1_ref, w2_ref, b2_ref, out_ref,
                  xb_ref, hpad_ref, pool_ref):
    """One (batch, T-tile) per grid step: mask/conv/bn/relu x2 + masked 2x2 pool."""
    _, _, Th, Fpad = xw_ref.shape            # Th = tile_T + 4, Fpad = F + 2
    F = Fpad - 2
    tile_T = Th - 4
    T1 = tile_T + 2                          # conv1 rows (1-row halo for conv2)
    Sc = w1_ref.shape[1]
    Oc = w2_ref.shape[1]
    Fp = out_ref.shape[2]

    b = pl.program_id(0)
    ti = pl.program_id(1)
    t0 = ti * tile_T                         # first output (h2) row of this tile
    L = len_ref[b]

    # Whole tile is past the valid length -> output rows are exactly zero.
    @pl.when(t0 >= L)
    def _():
        out_ref[...] = jnp.zeros(out_ref.shape, out_ref.dtype)

    @pl.when(t0 < L)
    def _():
        # Time mask over window rows: global row g = t0 - 2 + u.  (g >= 0 also
        # zeroes the top conv2 halo row so it matches PyTorch's zero padding.)
        g = t0 - 2 + jax.lax.broadcasted_iota(jnp.int32, (Th, 1), 0)
        mcol = jnp.logical_and(g >= 0, g < L).astype(jnp.float32)     # (Th, 1)
        # TODO(synk): skip the mask multiplies for tiles fully inside the valid range.

        # ---- mask + one-time broadcast of the Cin=1 input across Sc ----------
        # One relayout; the 9 conv1 taps below are then lane-aligned VPU FMAs.
        # (F halo columns come zero-padded from the wrapper.)
        xm = xw_ref[0, 0] * mcol                                      # (Th, F+2)
        xb_ref[...] = jnp.broadcast_to(xm[:, :, None], (Th, Fpad, Sc))

        # ---- conv1 (3x3, pad 1, BN scale folded into w1): 9 shifted FMAs ------
        def tap(k):
            kh, kw = divmod(k, 3)
            return (xb_ref[pl.ds(kh, T1), pl.ds(kw, F), :]
                    * w1_ref[pl.ds(k, 1), :][None])                   # (T1, F, Sc)
        acc1 = tap(0)                        # peel first tap: no zero-init pass
        for k in range(1, 9):
            acc1 = acc1 + tap(k)
        h1 = jnp.maximum(acc1 + b1_ref[...][None], 0.0)               # (T1, F, Sc)
        h1 = h1 * mcol[1:1 + T1][:, :, None]                          # mask before conv2

        # ---- conv2 (3x3, pad 1, BN scale folded): one K = 9*Sc bf16 MXU matmul
        hpad_ref[:, pl.ds(1, F), :] = h1.astype(hpad_ref.dtype)       # cast to bf16 once
        zcol = jnp.zeros((T1, 1, Sc), hpad_ref.dtype)
        hpad_ref[:, pl.ds(0, 1), :] = zcol                            # F halo columns,
        hpad_ref[:, pl.ds(F + 1, 1), :] = zcol                        # re-zeroed per step
        patch = jnp.concatenate(
            [hpad_ref[pl.ds(kh, tile_T), pl.ds(kw, F), :]
             for kh in range(3) for kw in range(3)], axis=-1)         # (tile_T, F, 9*Sc)
        acc2 = jnp.dot(patch.reshape(tile_T * F, 9 * Sc), w2_ref[...],
                       preferred_element_type=jnp.float32)            # (tile_T*F, Oc)
        h2 = jnp.maximum(acc2 + b2_ref[...], 0.0).reshape(tile_T, F, Oc)
        h2 = h2 * mcol[2:2 + tile_T][:, :, None]                      # mask before pool

        # ---- max_pool2d(2, stride 2, ceil_mode=True) --------------------------
        # T pairs in registers (leading-dim reshape); F pairs via one half-height
        # scratch + strided reads.  Zero padding is exact: values are >= 0.
        zt = h2.reshape(tile_T // 2, 2, F, Oc)
        rowmax = jnp.maximum(zt[:, 0], zt[:, 1])                      # (tile_T/2, F, Oc)
        pool_ref[:, pl.ds(0, F), :] = rowmax
        if F % 2 == 1:                                                # ceil-mode column
            pool_ref[:, pl.ds(F, 1), :] = jnp.zeros(
                (tile_T // 2, 1, Oc), pool_ref.dtype)
        out_ref[0] = jnp.maximum(
            pool_ref[:, pl.ds(0, Fp, stride=2), :],
            pool_ref[:, pl.ds(1, Fp, stride=2), :]).astype(out_ref.dtype)


def vgg2l_forward(xs, length, params, in_channel=1, tile_t=64):
    """xs: (B, T, D) float32 (PyTorch module input), length: (B,) int."""
    if in_channel != 1:
        # TODO(synk): in_channel > 1 path not implemented (module default is 1).
        raise NotImplementedError("vgg2l_forward currently supports in_channel=1")
    B, T, D = xs.shape
    F = D // in_channel
    w1, b1, w2, b2 = params                  # kernel-layout params (see init_params)
    Sc = w1.shape[1]
    Oc = w2.shape[1]
    Tp = -(-T // 2)                          # ceil(T / 2)
    Fp = -(-F // 2)                          # ceil(F / 2)

    # Even T tile (pool windows never straddle tiles), capped at the sequence.
    tile_T = int(min(tile_t, T + (T % 2)))
    tile_T += tile_T % 2
    nt = -(-T // tile_T)
    T_pad = nt * tile_T
    Th = tile_T + 4                          # 2-row halo each side
    F_even = F + (F % 2)

    # Cin = 1: plain reshape; pad F by 1 each side (conv zero pad) and T by the
    # halo + tile alignment, then gather overlapping (tile_T + 4)-row windows.
    x = xs.astype(jnp.float32).reshape(B, T, F)
    xp = jnp.pad(x, ((0, 0), (2, T_pad - T + 2), (1, 1)))
    win = jnp.arange(nt)[:, None] * tile_T + jnp.arange(Th)[None, :]
    xw = jnp.take(xp, win, axis=1)           # (B, nt, Th, F + 2)

    grid_spec = pltpu.PrefetchScalarGridSpec(
        num_scalar_prefetch=1,               # `length` lands in SMEM
        grid=(B, nt),
        in_specs=[
            pl.BlockSpec((1, 1, Th, F + 2), lambda b, i, L: (b, i, 0, 0)),
            pl.BlockSpec((9, Sc),           lambda b, i, L: (0, 0)),
            pl.BlockSpec((1, Sc),           lambda b, i, L: (0, 0)),
            pl.BlockSpec((9 * Sc, Oc),      lambda b, i, L: (0, 0)),
            pl.BlockSpec((1, Oc),           lambda b, i, L: (0, 0)),
        ],
        out_specs=pl.BlockSpec((1, tile_T // 2, Fp, Oc),
                               lambda b, i, L: (b, i, 0, 0)),
        scratch_shapes=[
            pltpu.VMEM((Th, F + 2, Sc), jnp.float32),           # Sc-broadcast conv1 input
            pltpu.VMEM((tile_T + 2, F + 2, Sc), jnp.bfloat16),  # padded conv2 input (bf16)
            pltpu.VMEM((tile_T // 2, F_even, Oc), jnp.float32), # half-height pool scratch
        ],
    )

    pooled = pl.pallas_call(
        _vgg2l_kernel,
        out_shape=jax.ShapeDtypeStruct((B, nt * (tile_T // 2), Fp, Oc), jnp.float32),
        grid_spec=grid_spec,
        compiler_params=pltpu.CompilerParams(
            dimension_semantics=("parallel", "parallel"),
            # Safe on all generations (<= half of v7x's 64 MiB physical VMEM);
            # tiled working set is ~16 MiB at tile_T=64, F=80.
            vmem_limit_bytes=32 * 1024 * 1024,
        ),
    )(length.astype(jnp.int32), xw, w1, b1, w2, b2)

    # Channel-major flatten (B, Tp, Fp, Oc) -> (B, Tp, Oc, Fp) -> (B, Tp, Oc*Fp)
    # runs in XLA on the pooled (4x-reduced) tensor; kernel stores are lane-dense.
    pooled = pooled[:, :Tp]
    out = jnp.transpose(pooled, (0, 1, 3, 2)).reshape(B, Tp, Oc * Fp)
    new_length = (length - 1) // 2 + 1
    return out, new_length


def init_params(key, in_channel=1, out_channel=128):
    """Deterministic synthetic parameters in kernel layout.

    BN (eval-mode) scale is folded into the conv weights, conv bias + BN shift
    into per-channel biases; conv2 weights are im2col-fused to (9*Sc, Oc) bf16.
    """
    assert in_channel == 1
    sc, oc = out_channel // 2, out_channel
    eps = 1e-5
    k1, k2, k3, k4 = jax.random.split(key, 4)
    # conv weights, tap index k = kh*3 + kw
    w1 = jax.random.normal(k1, (9, sc), jnp.float32) * 0.2        # Cin = 1
    cb1 = jax.random.normal(k2, (sc,), jnp.float32) * 0.1
    w2 = jax.random.normal(k3, (9, sc, oc), jnp.float32) * 0.1
    cb2 = jax.random.normal(k4, (oc,), jnp.float32) * 0.1
    # BatchNorm (eval-mode) params / running stats, deterministic.
    g1, be1 = jnp.linspace(0.9, 1.1, sc), jnp.linspace(-0.05, 0.05, sc)
    rm1, rv1 = jnp.linspace(-0.1, 0.1, sc), jnp.linspace(0.8, 1.2, sc)
    g2, be2 = jnp.linspace(0.95, 1.05, oc), jnp.linspace(-0.02, 0.02, oc)
    rm2, rv2 = jnp.linspace(-0.05, 0.05, oc), jnp.linspace(0.9, 1.1, oc)
    s1 = g1 / jnp.sqrt(rv1 + eps)
    b1 = (cb1 - rm1) * s1 + be1
    s2 = g2 / jnp.sqrt(rv2 + eps)
    b2 = (cb2 - rm2) * s2 + be2
    # Fold the BN scale into the conv weights (free at trace time).
    w1s = (w1 * s1[None, :]).astype(jnp.float32)                  # (9, Sc), f32 (VPU)
    # im2col-fuse all 9 conv2 taps along the contraction dim: row k*Sc + c.
    w2s = (w2 * s2[None, None, :]).reshape(9 * sc, oc).astype(jnp.bfloat16)
    return (w1s,
            b1.reshape(1, sc).astype(jnp.float32),
            w2s,
            b2.reshape(1, oc).astype(jnp.float32))


if __name__ == "__main__":
    key = jax.random.PRNGKey(0)
    kx, kp, kx2 = jax.random.split(key, 3)

    # Small spatial/batch shapes; channel counts are the module defaults
    # (in_channel=1, out_channel=128) so Sc=64 (conv2 K=576) and Oc=128.
    B, T, D = 2, 8, 16
    in_channel, out_channel = 1, 128
    xs = jax.random.normal(kx, (B, T, D), jnp.float32)
    length = jnp.array([8, 5], jnp.int32)

    params = init_params(kp, in_channel, out_channel)
    out, new_len = vgg2l_forward(xs, length, params, in_channel=in_channel)
    jax.block_until_ready(out)
    jax.block_until_ready(new_len)

    Fp = -(-(D // in_channel) // 2)
    expected_shape = (B, -(-T // 2), out_channel * Fp)
    assert out.shape == expected_shape, (out.shape, expected_shape)
    assert new_len.shape == (B,)
    assert bool(jnp.all(jnp.isfinite(out)))

    # T-tiling consistency: two 4-row tiles with a 2-row halo must reproduce the
    # single-tile result exactly.
    out_tiled, new_len_tiled = vgg2l_forward(xs, length, params,
                                             in_channel=in_channel, tile_t=4)
    jax.block_until_ready(out_tiled)
    assert bool(jnp.allclose(out, out_tiled, rtol=1e-5, atol=1e-5))
    assert bool(jnp.all(new_len == new_len_tiled))

    # Odd T / odd F exercises ceil-mode pooling and the ceil padding column.
    xs2 = jax.random.normal(kx2, (1, 7, 15), jnp.float32)
    out2, new_len2 = vgg2l_forward(xs2, jnp.array([5], jnp.int32), params)
    jax.block_until_ready(out2)
    assert out2.shape == (1, 4, out_channel * 8), out2.shape
    assert bool(jnp.all(jnp.isfinite(out2)))

    print("KERNEL_OK")
</pallas_src>

<mosaic_0001>
module attributes {stable_mosaic.version = 11 : i64} {
  func.func @_vgg2l_kernel(%arg0: i32, %arg1: i32, %arg2: memref<2xi32, #tpu.memory_space<smem>>, %arg3: memref<1x1x12x18xf32, #tpu.memory_space<vmem>>, %arg4: memref<9x64xf32, #tpu.memory_space<vmem>>, %arg5: memref<1x64xf32, #tpu.memory_space<vmem>>, %arg6: memref<576x128xbf16, #tpu.memory_space<vmem>>, %arg7: memref<1x128xf32, #tpu.memory_space<vmem>>, %arg8: memref<1x4x8x128xf32, #tpu.memory_space<vmem>>, %arg9: memref<12x18x64xf32, #tpu.memory_space<vmem>>, %arg10: memref<10x18x64xbf16, #tpu.memory_space<vmem>>, %arg11: memref<4x16x128xf32, #tpu.memory_space<vmem>>) attributes {dimension_semantics = [#tpu.dimension_semantics<parallel>, #tpu.dimension_semantics<parallel>], iteration_bounds = array<i64: 2, 1>, scalar_prefetch = 1 : i64, scratch_operands = 3 : i64, tpu.core_type = #tpu.core_type<tc>, window_params = [{transform_indices = @transform_0, window_bounds = array<i64: 1, 1, 12, 18>}, {pipeline_mode = #tpu.pipeline_mode<synchronous>, transform_indices = @transform_1, window_bounds = array<i64: 9, 64>}, {pipeline_mode = #tpu.pipeline_mode<synchronous>, transform_indices = @transform_2, window_bounds = array<i64: 1, 64>}, {pipeline_mode = #tpu.pipeline_mode<synchronous>, transform_indices = @transform_3, window_bounds = array<i64: 576, 128>}, {pipeline_mode = #tpu.pipeline_mode<synchronous>, transform_indices = @transform_4, window_bounds = array<i64: 1, 128>}, {transform_indices = @transform_5, window_bounds = array<i64: 1, 4, 8, 128>}]} {
    %c8_i32 = arith.constant 8 : i32
    %0 = arith.muli %arg1, %c8_i32 : i32
    %1 = arith.index_cast %arg0 : i32 to index
    %2 = memref.load %arg2[%1] : memref<2xi32, #tpu.memory_space<smem>>
    %3 = arith.cmpi sge, %0, %2 : i32
    %4 = arith.extui %3 : i1 to i32
    %c0_i32 = arith.constant 0 : i32
    %5 = arith.cmpi ne, %4, %c0_i32 : i32
    scf.if %5 {
      %cst = arith.constant 0.000000e+00 : f32
      %9 = vector.broadcast %cst : f32 to vector<1x4x8x128xf32>
      %c0 = arith.constant 0 : index
      %c0_1 = arith.constant 0 : index
      %c0_2 = arith.constant 0 : index
      %c0_3 = arith.constant 0 : index
      %10 = vector.load %arg8[%c0, %c0_1, %c0_2, %c0_3] : memref<1x4x8x128xf32, #tpu.memory_space<vmem>>, vector<1x4x8x128xf32>
      tpu.vector_store %arg8[%c0, %c0_1, %c0_2, %c0_3], %9 {strides = array<i32>} : memref<1x4x8x128xf32, #tpu.memory_space<vmem>>, vector<1x4x8x128xf32>,
    } else {
    }
    %6 = arith.cmpi slt, %0, %2 : i32
    %7 = arith.extui %6 : i1 to i32
    %c0_i32_0 = arith.constant 0 : i32
    %8 = arith.cmpi ne, %7, %c0_i32_0 : i32
    scf.if %8 {
      %c2_i32 = arith.constant 2 : i32
      %9 = arith.subi %0, %c2_i32 : i32
      %10 = tpu.iota {dimensions = array<i32: 0>} : vector<12x1xi32>
      %11 = vector.broadcast %9 : i32 to vector<12x1xi32>
      %12 = arith.addi %11, %10 : vector<12x1xi32>
      %c0_i32_1 = arith.constant 0 : i32
      %13 = vector.broadcast %c0_i32_1 : i32 to vector<12x1xi32>
      %14 = arith.cmpi sge, %12, %13 : vector<12x1xi32>
      %15 = vector.broadcast %2 : i32 to vector<12x1xi32>
      %16 = arith.cmpi slt, %12, %15 : vector<12x1xi32>
      %17 = arith.andi %14, %16 : vector<12x1xi1>
      %18 = arith.extui %17 : vector<12x1xi1> to vector<12x1xi32>
      %19 = arith.sitofp %18 : vector<12x1xi32> to vector<12x1xf32>
      %c0 = arith.constant 0 : index
      %c0_2 = arith.constant 0 : index
      %c0_3 = arith.constant 0 : index
      %c0_4 = arith.constant 0 : index
      %20 = vector.load %arg3[%c0, %c0_2, %c0_3, %c0_4] : memref<1x1x12x18xf32, #tpu.memory_space<vmem>>, vector<1x1x12x18xf32>
      %21 = vector.shape_cast %20 : vector<1x1x12x18xf32> to vector<12x18xf32>
      %22 = vector.broadcast %19 : vector<12x1xf32> to vector<12x18xf32>
      %23 = arith.mulf %21, %22 : vector<12x18xf32>
      %24 = vector.shape_cast %23 : vector<12x18xf32> to vector<12x18x1xf32>
      %25 = vector.shape_cast %24 : vector<12x18x1xf32> to vector<12x18x1xf32>
      %26 = vector.broadcast %25 : vector<12x18x1xf32> to vector<12x18x64xf32>
      %c0_5 = arith.constant 0 : index
      %c0_6 = arith.constant 0 : index
      %c0_7 = arith.constant 0 : index
      %27 = vector.load %arg9[%c0_5, %c0_6, %c0_7] : memref<12x18x64xf32, #tpu.memory_space<vmem>>, vector<12x18x64xf32>
      tpu.vector_store %arg9[%c0_5, %c0_6, %c0_7], %26 {strides = array<i32>} : memref<12x18x64xf32, #tpu.memory_space<vmem>>, vector<12x18x64xf32>,
      %c0_8 = arith.constant 0 : index
      %c0_9 = arith.constant 0 : index
      %c0_10 = arith.constant 0 : index
      %28 = vector.load %arg9[%c0_8, %c0_9, %c0_10] : memref<12x18x64xf32, #tpu.memory_space<vmem>>, vector<10x16x64xf32>
      %c0_11 = arith.constant 0 : index
      %c0_12 = arith.constant 0 : index
      %29 = vector.load %arg4[%c0_11, %c0_12] : memref<9x64xf32, #tpu.memory_space<vmem>>, vector<1x64xf32>
      %30 = vector.shape_cast %29 : vector<1x64xf32> to vector<1x1x64xf32>
      %31 = vector.broadcast %30 : vector<1x1x64xf32> to vector<10x16x64xf32>
      %32 = arith.mulf %28, %31 : vector<10x16x64xf32>
      %c0_13 = arith.constant 0 : index
      %c1 = arith.constant 1 : index
      %c0_14 = arith.constant 0 : index
      %33 = vector.load %arg9[%c0_13, %c1, %c0_14] : memref<12x18x64xf32, #tpu.memory_space<vmem>>, vector<10x16x64xf32>
      %c1_15 = arith.constant 1 : index
      %c0_16 = arith.constant 0 : index
      %34 = vector.load %arg4[%c1_15, %c0_16] : memref<9x64xf32, #tpu.memory_space<vmem>>, vector<1x64xf32>
      %35 = vector.shape_cast %34 : vector<1x64xf32> to vector<1x1x64xf32>
      %36 = vector.broadcast %35 : vector<1x1x64xf32> to vector<10x16x64xf32>
      %37 = arith.mulf %33, %36 : vector<10x16x64xf32>
      %38 = arith.addf %32, %37 : vector<10x16x64xf32>
      %c0_17 = arith.constant 0 : index
      %c2 = arith.constant 2 : index
      %c0_18 = arith.constant 0 : index
      %39 = vector.load %arg9[%c0_17, %c2, %c0_18] : memref<12x18x64xf32, #tpu.memory_space<vmem>>, vector<10x16x64xf32>
      %c2_19 = arith.constant 2 : index
      %c0_20 = arith.constant 0 : index
      %40 = vector.load %arg4[%c2_19, %c0_20] : memref<9x64xf32, #tpu.memory_space<vmem>>, vector<1x64xf32>
      %41 = vector.shape_cast %40 : vector<1x64xf32> to vector<1x1x64xf32>
      %42 = vector.broadcast %41 : vector<1x1x64xf32> to vector<10x16x64xf32>
      %43 = arith.mulf %39, %42 : vector<10x16x64xf32>
      %44 = arith.addf %38, %43 : vector<10x16x64xf32>
      %c1_21 = arith.constant 1 : index
      %c0_22 = arith.constant 0 : index
      %c0_23 = arith.constant 0 : index
      %45 = vector.load %arg9[%c1_21, %c0_22, %c0_23] : memref<12x18x64xf32, #tpu.memory_space<vmem>>, vector<10x16x64xf32>
      %c3 = arith.constant 3 : index
      %c0_24 = arith.constant 0 : index
      %46 = vector.load %arg4[%c3, %c0_24] : memref<9x64xf32, #tpu.memory_space<vmem>>, vector<1x64xf32>
      %47 = vector.shape_cast %46 : vector<1x64xf32> to vector<1x1x64xf32>
      %48 = vector.broadcast %47 : vector<1x1x64xf32> to vector<10x16x64xf32>
      %49 = arith.mulf %45, %48 : vector<10x16x64xf32>
      %50 = arith.addf %44, %49 : vector<10x16x64xf32>
      %c1_25 = arith.constant 1 : index
      %c1_26 = arith.constant 1 : index
      %c0_27 = arith.constant 0 : index
      %51 = vector.load %arg9[%c1_25, %c1_26, %c0_27] : memref<12x18x64xf32, #tpu.memory_space<vmem>>, vector<10x16x64xf32>
      %c4 = arith.constant 4 : index
      %c0_28 = arith.constant 0 : index
      %52 = vector.load %arg4[%c4, %c0_28] : memref<9x64xf32, #tpu.memory_space<vmem>>, vector<1x64xf32>
      %53 = vector.shape_cast %52 : vector<1x64xf32> to vector<1x1x64xf32>
      %54 = vector.broadcast %53 : vector<1x1x64xf32> to vector<10x16x64xf32>
      %55 = arith.mulf %51, %54 : vector<10x16x64xf32>
      %56 = arith.addf %50, %55 : vector<10x16x64xf32>
      %c1_29 = arith.constant 1 : index
      %c2_30 = arith.constant 2 : index
      %c0_31 = arith.constant 0 : index
      %57 = vector.load %arg9[%c1_29, %c2_30, %c0_31] : memref<12x18x64xf32, #tpu.memory_space<vmem>>, vector<10x16x64xf32>
      %c5 = arith.constant 5 : index
      %c0_32 = arith.constant 0 : index
      %58 = vector.load %arg4[%c5, %c0_32] : memref<9x64xf32, #tpu.memory_space<vmem>>, vector<1x64xf32>
      %59 = vector.shape_cast %58 : vector<1x64xf32> to vector<1x1x64xf32>
      %60 = vector.broadcast %59 : vector<1x1x64xf32> to vector<10x16x64xf32>
      %61 = arith.mulf %57, %60 : vector<10x16x64xf32>
      %62 = arith.addf %56, %61 : vector<10x16x64xf32>
      %c2_33 = arith.constant 2 : index
      %c0_34 = arith.constant 0 : index
      %c0_35 = arith.constant 0 : index
      %63 = vector.load %arg9[%c2_33, %c0_34, %c0_35] : memref<12x18x64xf32, #tpu.memory_space<vmem>>, vector<10x16x64xf32>
      %c6 = arith.constant 6 : index
      %c0_36 = arith.constant 0 : index
      %64 = vector.load %arg4[%c6, %c0_36] : memref<9x64xf32, #tpu.memory_space<vmem>>, vector<1x64xf32>
      %65 = vector.shape_cast %64 : vector<1x64xf32> to vector<1x1x64xf32>
      %66 = vector.broadcast %65 : vector<1x1x64xf32> to vector<10x16x64xf32>
      %67 = arith.mulf %63, %66 : vector<10x16x64xf32>
      %68 = arith.addf %62, %67 : vector<10x16x64xf32>
      %c2_37 = arith.constant 2 : index
      %c1_38 = arith.constant 1 : index
      %c0_39 = arith.constant 0 : index
      %69 = vector.load %arg9[%c2_37, %c1_38, %c0_39] : memref<12x18x64xf32, #tpu.memory_space<vmem>>, vector<10x16x64xf32>
      %c7 = arith.constant 7 : index
      %c0_40 = arith.constant 0 : index
      %70 = vector.load %arg4[%c7, %c0_40] : memref<9x64xf32, #tpu.memory_space<vmem>>, vector<1x64xf32>
      %71 = vector.shape_cast %70 : vector<1x64xf32> to vector<1x1x64xf32>
      %72 = vector.broadcast %71 : vector<1x1x64xf32> to vector<10x16x64xf32>
      %73 = arith.mulf %69, %72 : vector<10x16x64xf32>
      %74 = arith.addf %68, %73 : vector<10x16x64xf32>
      %c2_41 = arith.constant 2 : index
      %c2_42 = arith.constant 2 : index
      %c0_43 = arith.constant 0 : index
      %75 = vector.load %arg9[%c2_41, %c2_42, %c0_43] : memref<12x18x64xf32, #tpu.memory_space<vmem>>, vector<10x16x64xf32>
      %c8 = arith.constant 8 : index
      %c0_44 = arith.constant 0 : index
      %76 = vector.load %arg4[%c8, %c0_44] : memref<9x64xf32, #tpu.memory_space<vmem>>, vector<1x64xf32>
      %77 = vector.shape_cast %76 : vector<1x64xf32> to vector<1x1x64xf32>
      %78 = vector.broadcast %77 : vector<1x1x64xf32> to vector<10x16x64xf32>
      %79 = arith.mulf %75, %78 : vector<10x16x64xf32>
      %80 = arith.addf %74, %79 : vector<10x16x64xf32>
      %c0_45 = arith.constant 0 : index
      %c0_46 = arith.constant 0 : index
      %81 = vector.load %arg5[%c0_45, %c0_46] : memref<1x64xf32, #tpu.memory_space<vmem>>, vector<1x64xf32>
      %82 = vector.shape_cast %81 : vector<1x64xf32> to vector<1x1x64xf32>
      %83 = vector.broadcast %82 : vector<1x1x64xf32> to vector<10x16x64xf32>
      %84 = arith.addf %80, %83 : vector<10x16x64xf32>
      %cst = arith.constant 0.000000e+00 : f32
      %85 = vector.broadcast %cst : f32 to vector<10x16x64xf32>
      %86 = arith.maximumf %84, %85 : vector<10x16x64xf32>
      %87 = vector.extract_strided_slice %19 {offsets = [1, 0], sizes = [10, 1], strides = [1, 1]} : vector<12x1xf32> to vector<10x1xf32>
      %88 = vector.shape_cast %87 : vector<10x1xf32> to vector<10x1x1xf32>
      %89 = vector.broadcast %88 : vector<10x1x1xf32> to vector<10x16x64xf32>
      %90 = arith.mulf %86, %89 : vector<10x16x64xf32>
      %91 = arith.truncf %90 : vector<10x16x64xf32> to vector<10x16x64xbf16>
      %c0_47 = arith.constant 0 : index
      %c1_48 = arith.constant 1 : index
      %c0_49 = arith.constant 0 : index
      %92 = vector.load %arg10[%c0_47, %c1_48, %c0_49] : memref<10x18x64xbf16, #tpu.memory_space<vmem>>, vector<10x16x64xbf16>
      tpu.vector_store %arg10[%c0_47, %c1_48, %c0_49], %91 {strides = array<i32>} : memref<10x18x64xbf16, #tpu.memory_space<vmem>>, vector<10x16x64xbf16>,
      %cst_50 = arith.constant 0.000000e+00 : bf16
      %93 = vector.broadcast %cst_50 : bf16 to vector<10x1x64xbf16>
      %c0_51 = arith.constant 0 : index
      %c0_52 = arith.constant 0 : index
      %c0_53 = arith.constant 0 : index
      %94 = vector.load %arg10[%c0_51, %c0_52, %c0_53] : memref<10x18x64xbf16, #tpu.memory_space<vmem>>, vector<10x1x64xbf16>
      tpu.vector_store %arg10[%c0_51, %c0_52, %c0_53], %93 {strides = array<i32>} : memref<10x18x64xbf16, #tpu.memory_space<vmem>>, vector<10x1x64xbf16>,
      %c0_54 = arith.constant 0 : index
      %c17 = arith.constant 17 : index
      %c0_55 = arith.constant 0 : index
      %95 = vector.load %arg10[%c0_54, %c17, %c0_55] : memref<10x18x64xbf16, #tpu.memory_space<vmem>>, vector<10x1x64xbf16>
      tpu.vector_store %arg10[%c0_54, %c17, %c0_55], %93 {strides = array<i32>} : memref<10x18x64xbf16, #tpu.memory_space<vmem>>, vector<10x1x64xbf16>,
      %c0_56 = arith.constant 0 : index
      %c0_57 = arith.constant 0 : index
      %c0_58 = arith.constant 0 : index
      %96 = vector.load %arg10[%c0_56, %c0_57, %c0_58] : memref<10x18x64xbf16, #tpu.memory_space<vmem>>, vector<8x16x64xbf16>
      %c0_59 = arith.constant 0 : index
      %c1_60 = arith.constant 1 : index
      %c0_61 = arith.constant 0 : index
      %97 = vector.load %arg10[%c0_59, %c1_60, %c0_61] : memref<10x18x64xbf16, #tpu.memory_space<vmem>>, vector<8x16x64xbf16>
      %c0_62 = arith.constant 0 : index
      %c2_63 = arith.constant 2 : index
      %c0_64 = arith.constant 0 : index
      %98 = vector.load %arg10[%c0_62, %c2_63, %c0_64] : memref<10x18x64xbf16, #tpu.memory_space<vmem>>, vector<8x16x64xbf16>
      %c1_65 = arith.constant 1 : index
      %c0_66 = arith.constant 0 : index
      %c0_67 = arith.constant 0 : index
      %99 = vector.load %arg10[%c1_65, %c0_66, %c0_67] : memref<10x18x64xbf16, #tpu.memory_space<vmem>>, vector<8x16x64xbf16>
      %c1_68 = arith.constant 1 : index
      %c1_69 = arith.constant 1 : index
      %c0_70 = arith.constant 0 : index
      %100 = vector.load %arg10[%c1_68, %c1_69, %c0_70] : memref<10x18x64xbf16, #tpu.memory_space<vmem>>, vector<8x16x64xbf16>
      %c1_71 = arith.constant 1 : index
      %c2_72 = arith.constant 2 : index
      %c0_73 = arith.constant 0 : index
      %101 = vector.load %arg10[%c1_71, %c2_72, %c0_73] : memref<10x18x64xbf16, #tpu.memory_space<vmem>>, vector<8x16x64xbf16>
      %c2_74 = arith.constant 2 : index
      %c0_75 = arith.constant 0 : index
      %c0_76 = arith.constant 0 : index
      %102 = vector.load %arg10[%c2_74, %c0_75, %c0_76] : memref<10x18x64xbf16, #tpu.memory_space<vmem>>, vector<8x16x64xbf16>
      %c2_77 = arith.constant 2 : index
      %c1_78 = arith.constant 1 : index
      %c0_79 = arith.constant 0 : index
      %103 = vector.load %arg10[%c2_77, %c1_78, %c0_79] : memref<10x18x64xbf16, #tpu.memory_space<vmem>>, vector<8x16x64xbf16>
      %c2_80 = arith.constant 2 : index
      %c2_81 = arith.constant 2 : index
      %c0_82 = arith.constant 0 : index
      %104 = vector.load %arg10[%c2_80, %c2_81, %c0_82] : memref<10x18x64xbf16, #tpu.memory_space<vmem>>, vector<8x16x64xbf16>
      %105 = tpu.concatenate %96, %97, %98, %99, %100, %101, %102, %103, %104 in 2 : vector<8x16x64xbf16>, vector<8x16x64xbf16>, vector<8x16x64xbf16>, vector<8x16x64xbf16>, vector<8x16x64xbf16>, vector<8x16x64xbf16>, vector<8x16x64xbf16>, vector<8x16x64xbf16>, vector<8x16x64xbf16> -> vector<8x16x576xbf16>
      %106 = vector.shape_cast %105 : vector<8x16x576xbf16> to vector<128x576xbf16>
      %c0_83 = arith.constant 0 : index
      %c0_84 = arith.constant 0 : index
      %107 = vector.load %arg6[%c0_83, %c0_84] : memref<576x128xbf16, #tpu.memory_space<vmem>>, vector<576x128xbf16>
      %cst_85 = arith.constant dense<0.000000e+00> : vector<128x128xf32>
      %108 = tpu.matmul %106, %107, %cst_85 {dimension_numbers = #tpu.dot_dimension_numbers<[1], [0], [0], [1], [0, 0, 1, 1], [], []>} : vector<128x576xbf16>, vector<576x128xbf16>, vector<128x128xf32> -> vector<128x128xf32>
      %c0_86 = arith.constant 0 : index
      %c0_87 = arith.constant 0 : index
      %109 = vector.load %arg7[%c0_86, %c0_87] : memref<1x128xf32, #tpu.memory_space<vmem>>, vector<1x128xf32>
      %110 = vector.broadcast %109 : vector<1x128xf32> to vector<128x128xf32>
      %111 = arith.addf %108, %110 : vector<128x128xf32>
      %cst_88 = arith.constant 0.000000e+00 : f32
      %112 = vector.broadcast %cst_88 : f32 to vector<128x128xf32>
      %113 = arith.maximumf %111, %112 : vector<128x128xf32>
      %114 = vector.shape_cast %113 : vector<128x128xf32> to vector<8x16x128xf32>
      %115 = vector.extract_strided_slice %19 {offsets = [2, 0], sizes = [8, 1], strides = [1, 1]} : vector<12x1xf32> to vector<8x1xf32>
      %116 = vector.shape_cast %115 : vector<8x1xf32> to vector<8x1x1xf32>
      %117 = vector.broadcast %116 : vector<8x1x1xf32> to vector<8x16x128xf32>
      %118 = arith.mulf %114, %117 : vector<8x16x128xf32>
      %119 = vector.shape_cast %118 : vector<8x16x128xf32> to vector<4x2x16x128xf32>
      %120 = vector.extract_strided_slice %119 {offsets = [0, 0, 0, 0], sizes = [4, 1, 16, 128], strides = [1, 1, 1, 1]} : vector<4x2x16x128xf32> to vector<4x1x16x128xf32>
      %121 = vector.shape_cast %120 : vector<4x1x16x128xf32> to vector<4x16x128xf32>
      %122 = vector.extract_strided_slice %119 {offsets = [0, 1, 0, 0], sizes = [4, 1, 16, 128], strides = [1, 1, 1, 1]} : vector<4x2x16x128xf32> to vector<4x1x16x128xf32>
      %123 = vector.shape_cast %122 : vector<4x1x16x128xf32> to vector<4x16x128xf32>
      %124 = arith.maximumf %121, %123 : vector<4x16x128xf32>
      %c0_89 = arith.constant 0 : index
      %c0_90 = arith.constant 0 : index
      %c0_91 = arith.constant 0 : index
      %125 = vector.load %arg11[%c0_89, %c0_90, %c0_91] : memref<4x16x128xf32, #tpu.memory_space<vmem>>, vector<4x16x128xf32>
      tpu.vector_store %arg11[%c0_89, %c0_90, %c0_91], %124 {strides = array<i32>} : memref<4x16x128xf32, #tpu.memory_space<vmem>>, vector<4x16x128xf32>,
      %c0_92 = arith.constant 0 : index
      %c0_93 = arith.constant 0 : index
      %c0_94 = arith.constant 0 : index
      %126 = tpu.strided_load %arg11[%c0_92, %c0_93, %c0_94] {strides = array<i32: 1, 2, 1>} : memref<4x16x128xf32, #tpu.memory_space<vmem>>, vector<4x8x128xf32>
      %c0_95 = arith.constant 0 : index
      %c1_96 = arith.constant 1 : index
      %c0_97 = arith.constant 0 : index
      %127 = tpu.strided_load %arg11[%c0_95, %c1_96, %c0_97] {strides = array<i32: 1, 2, 1>} : memref<4x16x128xf32, #tpu.memory_space<vmem>>, vector<4x8x128xf32>
      %128 = arith.maximumf %126, %127 : vector<4x8x128xf32>
      %c0_98 = arith.constant 0 : index
      %c0_99 = arith.constant 0 : index
      %c0_100 = arith.constant 0 : index
      %c0_101 = arith.constant 0 : index
      %129 = vector.load %arg8[%c0_98, %c0_99, %c0_100, %c0_101] : memref<1x4x8x128xf32, #tpu.memory_space<vmem>>, vector<1x4x8x128xf32>
      %130 = vector.shape_cast %129 : vector<1x4x8x128xf32> to vector<4x8x128xf32>
      %131 = vector.shape_cast %128 : vector<4x8x128xf32> to vector<1x4x8x128xf32>
      tpu.vector_store %arg8[%c0_98, %c0_99, %c0_100, %c0_101], %131 {strides = array<i32>} : memref<1x4x8x128xf32, #tpu.memory_space<vmem>>, vector<1x4x8x128xf32>,
    } else {
    }
    return
  }
  func.func @transform_0(%arg0: i32, %arg1: i32, %arg2: memref<2xi32, #tpu.memory_space<smem>>) -> (i32, i32, i32, i32) {
    %c0_i32 = arith.constant 0 : i32
    %c0_i32_0 = arith.constant 0 : i32
    %c0_i32_1 = arith.constant 0 : i32
    return %arg0, %arg1, %c0_i32, %c0_i32_0 : i32, i32, i32, i32
  }
  func.func @transform_1(%arg0: i32, %arg1: i32, %arg2: memref<2xi32, #tpu.memory_space<smem>>) -> (i32, i32) {
    %c0_i32 = arith.constant 0 : i32
    %c0_i32_0 = arith.constant 0 : i32
    %c0_i32_1 = arith.constant 0 : i32
    return %c0_i32, %c0_i32_0 : i32, i32
  }
  func.func @transform_2(%arg0: i32, %arg1: i32, %arg2: memref<2xi32, #tpu.memory_space<smem>>) -> (i32, i32) {
    %c0_i32 = arith.constant 0 : i32
    %c0_i32_0 = arith.constant 0 : i32
    %c0_i32_1 = arith.constant 0 : i32
    return %c0_i32, %c0_i32_0 : i32, i32
  }
  func.func @transform_3(%arg0: i32, %arg1: i32, %arg2: memref<2xi32, #tpu.memory_space<smem>>) -> (i32, i32) {
    %c0_i32 = arith.constant 0 : i32
    %c0_i32_0 = arith.constant 0 : i32
    %c0_i32_1 = arith.constant 0 : i32
    return %c0_i32, %c0_i32_0 : i32, i32
  }
  func.func @transform_4(%arg0: i32, %arg1: i32, %arg2: memref<2xi32, #tpu.memory_space<smem>>) -> (i32, i32) {
    %c0_i32 = arith.constant 0 : i32
    %c0_i32_0 = arith.constant 0 : i32
    %c0_i32_1 = arith.constant 0 : i32
    return %c0_i32, %c0_i32_0 : i32, i32
  }
  func.func @transform_5(%arg0: i32, %arg1: i32, %arg2: memref<2xi32, #tpu.memory_space<smem>>) -> (i32, i32, i32, i32) {
    %c0_i32 = arith.constant 0 : i32
    %c0_i32_0 = arith.constant 0 : i32
    %c0_i32_1 = arith.constant 0 : i32
    return %arg0, %arg1, %c0_i32, %c0_i32_0 : i32, i32, i32, i32
  }
}

</mosaic_0001>

<llo_original>
// kernel: tpu_custom_call.1
$region0: #{tpu_custom_call.1}
  #allocation0 [shape = 'u32[]', space=smem, size = 0x4, offset = 0x4, fixed_abs, tag = 'smem constant byte address 0x4 - core index']
  #allocation1 [shape = 'u32[144,128]{1,0:T(1,128)}', space=vmem, size = 0x12000, scoped, tag = 'internal scratch']
  #allocation2 [shape = 'f32[12,18,64]{2,1,0:T(8,128)}', space=vmem, size = 0x24000, scoped, tag = 'scratch operand']
  #allocation3 [shape = 'bf16[10,18,64]{2,1,0:T(8,128)(2,1)}', space=vmem, size = 0xf000, scoped, tag = 'scratch operand']
  #allocation4 [shape = 'f32[4,16,128]{2,1,0:T(8,128)}', space=vmem, size = 0x8000, scoped, tag = 'scratch operand']
  #allocation5 [shape = 's32[1]{0}', space=sflag, size = 0x4, scoped, tag = 'scoped memory for tpu_custom_call.1']
  #allocation6 [shape = 'u8[512]{0}', space=smem, size = 0x200, scoped, tag = 'prefetched SMEM operand 0']
  %s0 = inlined_call_operand.vmem [shape: s32[2], index: 0, kind: input, shape index: {}]
  %s1 = inlined_call_operand.vmem [shape: f32[2,1,12,18], index: 1, kind: input, shape index: {}]
  %s2 = inlined_call_operand.vmem [shape: f32[9,64], index: 2, kind: input, shape index: {}]
  %s3 = inlined_call_operand.vmem [shape: f32[1,64], index: 3, kind: input, shape index: {}]
  %s4 = inlined_call_operand.hbm [shape: bf16[576,128], index: 4, kind: input, shape index: {}]
  %s5 = inlined_call_operand.vmem [shape: f32[1,128], index: 5, kind: input, shape index: {}]
  %s6 = inlined_call_operand.hbm [shape: f32[2,4,8,128], index: 6, kind: output, shape index: {}]
  %s7 = sld [smem:[#allocation0]]
  $region65: #{tpu_custom_call.1} parent=0
    _
  %s9 = ssub.s32 1, %s7
  %s10 = scalar_select 0, %s9, %s7
  %s11 = sshll.u32 %s0, 4
  %s12 = int_to_ptr.vmem [resolvable:$true] %s11
  %14 = dma.vmem_to_smem %s12, 16, [#allocation6], [#allocation5]
  %15 = dma.done [#allocation5], 16
  %16 = sfence
  $region1: #{tpu_custom_call.1} parent=0
    #allocation7 [shape = 'u8[147456]{0}', space=vmem, size = 0x24000, scoped, tag = 'input window, operand 4, single buffered']
    #allocation8 [shape = 's32[2]{0}', space=sflag, size = 0x8, scoped, tag = 'scoped memory for tpu_custom_call.1']
    #allocation9 [shape = 's32[2]{0}', space=sflag, size = 0x8, scoped, tag = 'scoped memory for tpu_custom_call.1']
    #allocation10 [shape = 'u8[32768]{0}', space=vmem, size = 0x8000, scoped, tag = 'output window, operand 0']
    %17 = vsyncpa [#allocation8], 0
    %18 = vsyncpa [#allocation9], 0
    %s19 = scalar_lea.sflag [#allocation9], 1
    %20 = vsyncpa %s19, 0
    loop: start=0, step=1, limit=4
    $region2: #{tpu_custom_call.1} parent=1 // loop_pre_header
      _
    $region3: #{tpu_custom_call.1} parent=1 // loop_header
      %s22 = sphi 0, %s26
      %p23 = scmp.ge.s32.totalorder %s22, 4
      %s29 = sphi 0, %s41
      %s30 = sphi 0, %s37
      %s31 = sphi 0, %s29
      %s32 = sphi 0, %s30
      %s33 = sphi 0, %s31
      %s34 = sphi 0, %s32
      %s46 = sphi 0, %s48
      %s49 = sphi 0, %s46
      %s50 = sphi 0, %s49
      %s66 = sphi 0, %s50
      %s70 = sphi 0, %s70
      %s72 = sphi 0, %s70
      %s73 = sphi 0, %s72
      %s87 = sphi 0, %s73
      %s91 = sphi 0, %s91
      %s93 = sphi 0, %s91
      %s94 = sphi 0, %s93
      %s108 = sphi 0, %s94
      %s112 = sphi 0, %s112
      %s114 = sphi 0, %s112
      %s115 = sphi 0, %s114
      %s129 = sphi 0, %s115
      %s133 = sphi 0, %s133
      %s135 = sphi 0, %s133
      %s136 = sphi 0, %s135
      %s150 = sphi 0, %s136
      %s158 = sphi 0, %s160
      %s161 = sphi 0, %s158
      %s162 = sphi 0, %s161
      %s178 = sphi 0, %s162
    $region4: #{tpu_custom_call.1} parent=1 // loop_header_branch
      %25 = sbr.rel (%p23) target = $region8
    $region5: #{tpu_custom_call.1} parent=1 // loop_body
      %s27 = ssub.s32 %s22, 1
      %s28 = ssub.s32 %s22, 2
      %s35 = sadd.s32 1, %s30
      %p36 = scmp.ge.s32.totalorder %s35, 1
      %s37 = scalar_select %p36, 0, %s35
      %s38 = sadd.s32 1, %s29
      %s39 = scalar_select %p36, %s38, %s29
      %p40 = scmp.ge.s32.totalorder %s39, 2
      %s41 = scalar_select %p40, 0, %s39
      %s42 = ssub.s32 %s29, %s41
      %s43 = ssub.s32 %s30, %s37
      %s44 = sor.u32 %s42, %s43
      %p45 = scmp.eq.s32.totalorder %s44, 0
      %s47 = sadd.s32 %s46, 1
      %s48 = scalar_select %p45, %s46, %s47
      %p51 = pneg %p45
      %p52 = scmp.eq.s32.totalorder %s22, 1
      %p53 = por %p51, %p52
      %p54 = scmp.ne.s32.totalorder %s46, %s49
      %p55 = scmp.eq.s32.totalorder %s22, 0
      %p56 = por %p54, %p55
      %p57 = scmp.ne.s32.totalorder %s46, %s49
      %p58 = scmp.eq.s32.totalorder %s27, 1
      %p59 = por %p57, %p58
      %p60 = scmp.ne.s32.totalorder %s49, %s50
      %p61 = scmp.eq.s32.totalorder %s27, 0
      %p62 = por %p60, %p61
      %p63 = scmp.ne.s32.totalorder %s49, %s50
      %p64 = scmp.eq.s32.totalorder %s28, 1
      %p65 = por %p63, %p64
      %p67 = scmp.ne.s32.totalorder %s50, %s66
      %p68 = scmp.eq.s32.totalorder %s28, 0
      %p69 = por %p67, %p68
      %s71 = sadd.s32 %s70, 1
      %p74 = scmp.eq.s32.totalorder %s22, 1
      %p75 = scmp.ne.s32.totalorder %s70, %s72
      %p76 = scmp.eq.s32.totalorder %s22, 0
      %p77 = por %p75, %p76
      %p78 = scmp.ne.s32.totalorder %s70, %s72
      %p79 = scmp.eq.s32.totalorder %s27, 1
      %p80 = por %p78, %p79
      %p81 = scmp.ne.s32.totalorder %s72, %s73
      %p82 = scmp.eq.s32.totalorder %s27, 0
      %p83 = por %p81, %p82
      %p84 = scmp.ne.s32.totalorder %s72, %s73
      %p85 = scmp.eq.s32.totalorder %s28, 1
      %p86 = por %p84, %p85
      %p88 = scmp.ne.s32.totalorder %s73, %s87
      %p89 = scmp.eq.s32.totalorder %s28, 0
      %p90 = por %p88, %p89
      %s92 = sadd.s32 %s91, 1
      %p95 = scmp.eq.s32.totalorder %s22, 1
      %p96 = scmp.ne.s32.totalorder %s91, %s93
      %p97 = scmp.eq.s32.totalorder %s22, 0
      %p98 = por %p96, %p97
      %p99 = scmp.ne.s32.totalorder %s91, %s93
      %p100 = scmp.eq.s32.totalorder %s27, 1
      %p101 = por %p99, %p100
      %p102 = scmp.ne.s32.totalorder %s93, %s94
      %p103 = scmp.eq.s32.totalorder %s27, 0
      %p104 = por %p102, %p103
      %p105 = scmp.ne.s32.totalorder %s93, %s94
      %p106 = scmp.eq.s32.totalorder %s28, 1
      %p107 = por %p105, %p106
      %p109 = scmp.ne.s32.totalorder %s94, %s108
      %p110 = scmp.eq.s32.totalorder %s28, 0
      %p111 = por %p109, %p110
      %s113 = sadd.s32 %s112, 1
      %p116 = scmp.eq.s32.totalorder %s22, 1
      %p117 = scmp.ne.s32.totalorder %s112, %s114
      %p118 = scmp.eq.s32.totalorder %s22, 0
      %p119 = por %p117, %p118
      %p120 = scmp.ne.s32.totalorder %s112, %s114
      %p121 = scmp.eq.s32.totalorder %s27, 1
      %p122 = por %p120, %p121
      %p123 = scmp.ne.s32.totalorder %s114, %s115
      %p124 = scmp.eq.s32.totalorder %s27, 0
      %p125 = por %p123, %p124
      %p126 = scmp.ne.s32.totalorder %s114, %s115
      %p127 = scmp.eq.s32.totalorder %s28, 1
      %p128 = por %p126, %p127
      %p130 = scmp.ne.s32.totalorder %s115, %s129
      %p131 = scmp.eq.s32.totalorder %s28, 0
      %p132 = por %p130, %p131
      %s134 = sadd.s32 %s133, 1
      %p137 = scmp.eq.s32.totalorder %s22, 1
      %p138 = scmp.ne.s32.totalorder %s133, %s135
      %p139 = scmp.eq.s32.totalorder %s22, 0
      %p140 = por %p138, %p139
      %p141 = scmp.ne.s32.totalorder %s133, %s135
      %p142 = scmp.eq.s32.totalorder %s27, 1
      %p143 = por %p141, %p142
      %p144 = scmp.ne.s32.totalorder %s135, %s136
      %p145 = scmp.eq.s32.totalorder %s27, 0
      %p146 = por %p144, %p145
      %p147 = scmp.ne.s32.totalorder %s135, %s136
      %p148 = scmp.eq.s32.totalorder %s28, 1
      %p149 = por %p147, %p148
      %p151 = scmp.ne.s32.totalorder %s136, %s150
      %p152 = scmp.eq.s32.totalorder %s28, 0
      %p153 = por %p151, %p152
      %s154 = ssub.s32 %s29, %s41
      %s155 = ssub.s32 %s30, %s37
      %s156 = sor.u32 %s154, %s155
      %p157 = scmp.eq.s32.totalorder %s156, 0
      %s159 = sadd.s32 %s158, 1
      %s160 = scalar_select %p157, %s158, %s159
      %p163 = pneg %p157
      %p164 = scmp.eq.s32.totalorder %s22, 1
      %p165 = por %p163, %p164
      %p166 = scmp.ne.s32.totalorder %s158, %s161
      %p167 = scmp.eq.s32.totalorder %s22, 0
      %p168 = por %p166, %p167
      %p169 = scmp.ne.s32.totalorder %s158, %s161
      %p170 = scmp.eq.s32.totalorder %s27, 1
      %p171 = por %p169, %p170
      %p172 = scmp.ne.s32.totalorder %s161, %s162
      %p173 = scmp.eq.s32.totalorder %s27, 0
      %p174 = por %p172, %p173
      %p175 = scmp.ne.s32.totalorder %s161, %s162
      %p176 = scmp.eq.s32.totalorder %s28, 1
      %p177 = por %p175, %p176
      %p179 = scmp.ne.s32.totalorder %s162, %s178
      %p180 = scmp.eq.s32.totalorder %s28, 0
      %p181 = por %p179, %p180
      %p182 = scmp.le.s32.totalorder 1, %s22
      %p183 = scmp.lt.s32.totalorder %s22, 3
      %p184 = pnand %p182, %p183
      %p185 = pneg %p184
      // Predicated region
      $region9: #{tpu_custom_call.1} parent=5 // pred_check
        _
      $region10: #{tpu_custom_call.1} parent=5 // pred_check_branch
        %187 = sbr.rel (%p184) target = $region12
      $region11: #{tpu_custom_call.1} parent=5 // pred_region
        %s188 = ssub.s32 %s22, 1
        // Predicated region
        $region13: #{tpu_custom_call.1} parent=11 // pred_check
          %p189 = pneg %p83
        $region14: #{tpu_custom_call.1} parent=11 // pred_check_branch
          %191 = sbr.rel (%p189) target = $region16
        $region15: #{tpu_custom_call.1} parent=11 // pred_region
          _
        $region16: #{tpu_custom_call.1} parent=11 // pred_fallthru
          _
        // Predicated region
        $region17: #{tpu_custom_call.1} parent=11 // pred_check
          %p192 = pneg %p104
        $region18: #{tpu_custom_call.1} parent=11 // pred_check_branch
          %194 = sbr.rel (%p192) target = $region20
        $region19: #{tpu_custom_call.1} parent=11 // pred_region
          _
        $region20: #{tpu_custom_call.1} parent=11 // pred_fallthru
          _
        // Predicated region
        $region21: #{tpu_custom_call.1} parent=11 // pred_check
          %p195 = pneg %p125
        $region22: #{tpu_custom_call.1} parent=11 // pred_check_branch
          %197 = sbr.rel (%p195) target = $region24
        $region23: #{tpu_custom_call.1} parent=11 // pred_region
          %s199 = ssub.s32 4608, 4608
          %200 = vsyncadd [#allocation8], %s199
          %s201 = sshll.u32 [#allocation7], 4
          %s202 = int_to_ptr.vmem [resolvable:$true] %s201
          %207 = dma.hbm_to_vmem [thread:$0]  %s4, 4608, %s202, [#allocation8], 64, 64, 4
        $region24: #{tpu_custom_call.1} parent=11 // pred_fallthru
          _
        // Predicated region
        $region25: #{tpu_custom_call.1} parent=11 // pred_check
          %p208 = pneg %p146
        $region26: #{tpu_custom_call.1} parent=11 // pred_check_branch
          %210 = sbr.rel (%p208) target = $region28
        $region27: #{tpu_custom_call.1} parent=11 // pred_region
          _
        $region28: #{tpu_custom_call.1} parent=11 // pred_fallthru
          _
      $region12: #{tpu_custom_call.1} parent=5 // pred_fallthru
        _
      %p211 = scmp.lt.s32.totalorder %s22, 2
      // Predicated region
      $region29: #{tpu_custom_call.1} parent=5 // pred_check
        %p212 = pneg %p211
      $region30: #{tpu_custom_call.1} parent=5 // pred_check_branch
        %214 = sbr.rel (%p212) target = $region32
      $region31: #{tpu_custom_call.1} parent=5 // pred_region
        // Predicated region
        $region33: #{tpu_custom_call.1} parent=31 // pred_check
          %p215 = pneg %p56
        $region34: #{tpu_custom_call.1} parent=31 // pred_check_branch
          %217 = sbr.rel (%p215) target = $region36
        $region35: #{tpu_custom_call.1} parent=31 // pred_region
          %p218 = scmp.lt.s32.totalorder %s29, 1
          %s219 = scalar_select %p218, %s29, 1
          %p220 = scmp.lt.s32.totalorder %s30, 0
          %s221 = scalar_select %p220, %s30, 0
          %s222 = smul.addr %s221, 2
          %s223 = smul.addr %s219, 2
          %s224 = sadd.s32 %s222, %s223
          %s225 = smul.addr %s224, 8
          %s226 = scalar_lea.vmem %s1, %s225
        $region36: #{tpu_custom_call.1} parent=31 // pred_fallthru
          _
      $region32: #{tpu_custom_call.1} parent=5 // pred_fallthru
        _
      %p227 = scmp.le.s32.totalorder 1, %s22
      %p228 = scmp.lt.s32.totalorder %s22, 3
      %p229 = pnand %p227, %p228
      %p230 = pneg %p229
      // Predicated region
      $region37: #{tpu_custom_call.1} parent=5 // pred_check
        _
      $region38: #{tpu_custom_call.1} parent=5 // pred_check_branch
        %232 = sbr.rel (%p229) target = $region40
      $region39: #{tpu_custom_call.1} parent=5 // pred_region
        %s233 = ssub.s32 %s22, 1
        // Predicated region
        $region41: #{tpu_custom_call.1} parent=39 // pred_check
          %p234 = pneg %p125
        $region42: #{tpu_custom_call.1} parent=39 // pred_check_branch
          %236 = sbr.rel (%p234) target = $region44
        $region43: #{tpu_custom_call.1} parent=39 // pred_region
          %237 = dma.done [#allocation8], 4608
        $region44: #{tpu_custom_call.1} parent=39 // pred_fallthru
          _
        %p238 = scmp.lt.s32.totalorder %s31, 1
        %s239 = scalar_select %p238, %s31, 1
        %p240 = scmp.lt.s32.totalorder %s32, 0
        %s241 = scalar_select %p240, %s32, 0
        %s242 = smul.addr %s241, 2
        %s243 = smul.addr %s239, 2
        %s244 = sadd.s32 %s242, %s243
        %s245 = smul.addr %s244, 8
        %s246 = scalar_lea.vmem %s1, %s245
        %p247 = pneg %p62
        %p248 = pneg %p59
        %p249 = pneg %p83
        %p250 = pneg %p80
        %p251 = pneg %p104
        %p252 = pneg %p101
        %p253 = pneg %p125
        %p254 = pneg %p122
        %p255 = pneg %p146
        %p256 = pneg %p143
        %p257 = pneg %p174
        %p258 = pneg %p171
        %s259 = sand.u32 %s161, 1
        %s260 = scalar_lea.sflag [#allocation9], %s259
        %s261 = sand.u32 %s161, 1
        %s262 = smul.addr %s261, 32
        %s263 = scalar_lea.vmem [#allocation10], %s262
        %p264 = scmp.lt.s32.totalorder %s31, 1
        %s265 = scalar_select %p264, %s31, 1
        %p266 = scmp.lt.s32.totalorder %s32, 0
        %s267 = scalar_select %p266, %s32, 0
        %s268 = smul.addr %s267, 2
        %s269 = smul.addr %s265, 2
        %s270 = sadd.s32 %s268, %s269
        %s271 = smul.addr %s270, 8
        %s272 = scalar_lea.vmem %s1, %s271
        %s273 = smul.u32 4, %s32
        %s275 = smul.u32 %s32, 8
        %s276 = sld [smem:[#allocation6 + %s31]]
        %p277 = scmp.ge.s32.totalorder %s275, %s276
        // Predicated region
        $region45: #{tpu_custom_call.1} parent=39 // pred_check
          %p278 = pneg %p277
        $region46: #{tpu_custom_call.1} parent=39 // pred_check_branch
          %280 = sbr.rel (%p278) target = $region48
        $region47: #{tpu_custom_call.1} parent=39 // pred_region
          %281 = vst [vmem:[%s263] sm:$0xff] 0.0
          %282 = vst [vmem:[%s263 + $0x8] sm:$0xff] 0.0
          %283 = vst [vmem:[%s263 + $0x10] sm:$0xff] 0.0
          %284 = vst [vmem:[%s263 + $0x18] sm:$0xff] 0.0
        $region48: #{tpu_custom_call.1} parent=39 // pred_fallthru
          _
        %p285 = scmp.lt.s32.totalorder %s275, %s276
        // Predicated region
        $region49: #{tpu_custom_call.1} parent=39 // pred_check
          %p286 = pneg %p285
        $region50: #{tpu_custom_call.1} parent=39 // pred_check_branch
          %288 = sbr.rel (%p286) target = $region52
        $region51: #{tpu_custom_call.1} parent=39 // pred_region
          %s289 = ssub.s32 %s275, 2
          %v290 = vlaneseq
          %v291 = vshrl.u32 %v290, 7
          %v292 = vadd.s32 %v291, 8
          %v293 = vstv %s289
          %v294 = vadd.s32 %v293, %v291
          %v295 = vadd.s32 %v293, %v292
          %vm296 = vcmp.ge.s32.totalorder %v294, 0
          %vm297 = vcmp.ge.s32.totalorder %v295, 0
          %v298 = vstv %s276
          %vm299 = vcmp.lt.s32.totalorder %v294, %v298
          %vm300 = vcmp.lt.s32.totalorder %v295, %v298
          %vm301 = vmand %vm296, %vm299
          %vm302 = vmand %vm297, %vm300
          %v303 = vsel %vm301, 1, 0
          %v304 = vsel %vm302, 1, 0
          %v305 = vcvt.s32.f32 %v303
          %v306 = vcvt.s32.f32 %v304
          %v307 = vld [vmem:[%s272] sm:$0xff]
          %v308 = vld [vmem:[%s272 + $0x8] sm:$0xf]
          %v309 = vmul.f32 %v307, %v305
          %v310 = vmul.f32 %v308, %v306
          %v311 = vlaneseq
          %v312 = vshrl.u32 %v311, 7
          %v313 = vsub.s32 0, %v312
          %v314 = vrot.slane %v309, %v313
          %316 = vbcast.lane.b32.xlu0 %v314, 256
          %v317 = vpop.permute.xlu0 %316
          %s319 = sor.u32 256, 8
          %320 = vbcast.lane.b32.xlu0 %v314, %s319
          %v321 = vpop.permute.xlu0 %320
          %s323 = sor.u32 256, 16
          %324 = vbcast.lane.b32.xlu0 %v314, %s323
          %v325 = vpop.permute.xlu0 %324
          %v326 = vlaneseq
          %v327 = vshrl.u32 %v326, 7
          %v328 = vsub.s32 1, %v327
          %v329 = vrot.slane %v309, %v328
          %331 = vbcast.lane.b32.xlu0 %v329, 256
          %v332 = vpop.permute.xlu0 %331
          %s334 = sor.u32 256, 8
          %335 = vbcast.lane.b32.xlu0 %v329, %s334
          %v336 = vpop.permute.xlu0 %335
          %s338 = sor.u32 256, 16
          %339 = vbcast.lane.b32.xlu0 %v329, %s338
          %v340 = vpop.permute.xlu0 %339
          %v341 = vlaneseq
          %v342 = vshrl.u32 %v341, 7
          %v343 = vsub.s32 2, %v342
          %v344 = vrot.slane %v309, %v343
          %346 = vbcast.lane.b32.xlu0 %v344, 256
          %v347 = vpop.permute.xlu0 %346
          %s349 = sor.u32 256, 8
          %350 = vbcast.lane.b32.xlu0 %v344, %s349
          %v351 = vpop.permute.xlu0 %350
          %s353 = sor.u32 256, 16
          %354 = vbcast.lane.b32.xlu0 %v344, %s353
          %v355 = vpop.permute.xlu0 %354
          %v356 = vlaneseq
          %v357 = vshrl.u32 %v356, 7
          %v358 = vsub.s32 3, %v357
          %v359 = vrot.slane %v309, %v358
          %361 = vbcast.lane.b32.xlu0 %v359, 256
          %v362 = vpop.permute.xlu0 %361
          %s364 = sor.u32 256, 8
          %365 = vbcast.lane.b32.xlu0 %v359, %s364
          %v366 = vpop.permute.xlu0 %365
          %s368 = sor.u32 256, 16
          %369 = vbcast.lane.b32.xlu0 %v359, %s368
          %v370 = vpop.permute.xlu0 %369
          %v371 = vlaneseq
          %v372 = vshrl.u32 %v371, 7
          %v373 = vsub.s32 4, %v372
          %v374 = vrot.slane %v309, %v373
          %376 = vbcast.lane.b32.xlu0 %v374, 256
          %v377 = vpop.permute.xlu0 %376
          %s379 = sor.u32 256, 8
          %380 = vbcast.lane.b32.xlu0 %v374, %s379
          %v381 = vpop.permute.xlu0 %380
          %s383 = sor.u32 256, 16
          %384 = vbcast.lane.b32.xlu0 %v374, %s383
          %v385 = vpop.permute.xlu0 %384
          %v386 = vlaneseq
          %v387 = vshrl.u32 %v386, 7
          %v388 = vsub.s32 5, %v387
          %v389 = vrot.slane %v309, %v388
          %391 = vbcast.lane.b32.xlu0 %v389, 256
          %v392 = vpop.permute.xlu0 %391
          %s394 = sor.u32 256, 8
          %395 = vbcast.lane.b32.xlu0 %v389, %s394
          %v396 = vpop.permute.xlu0 %395
          %s398 = sor.u32 256, 16
          %399 = vbcast.lane.b32.xlu0 %v389, %s398
          %v400 = vpop.permute.xlu0 %399
          %v401 = vlaneseq
          %v402 = vshrl.u32 %v401, 7
          %v403 = vsub.s32 6, %v402
          %v404 = vrot.slane %v309, %v403
          %406 = vbcast.lane.b32.xlu0 %v404, 256
          %v407 = vpop.permute.xlu0 %406
          %s409 = sor.u32 256, 8
          %410 = vbcast.lane.b32.xlu0 %v404, %s409
          %v411 = vpop.permute.xlu0 %410
          %s413 = sor.u32 256, 16
          %414 = vbcast.lane.b32.xlu0 %v404, %s413
          %v415 = vpop.permute.xlu0 %414
          %v416 = vlaneseq
          %v417 = vshrl.u32 %v416, 7
          %v418 = vsub.s32 7, %v417
          %v419 = vrot.slane %v309, %v418
          %421 = vbcast.lane.b32.xlu0 %v419, 256
          %v422 = vpop.permute.xlu0 %421
          %s424 = sor.u32 256, 8
          %425 = vbcast.lane.b32.xlu0 %v419, %s424
          %v426 = vpop.permute.xlu0 %425
          %s428 = sor.u32 256, 16
          %429 = vbcast.lane.b32.xlu0 %v419, %s428
          %v430 = vpop.permute.xlu0 %429
          %v431 = vlaneseq
          %v432 = vshrl.u32 %v431, 7
          %v433 = vsub.s32 0, %v432
          %v434 = vrot.slane %v310, %v433
          %436 = vbcast.lane.b32.xlu0 %v434, 256
          %v437 = vpop.permute.xlu0 %436
          %s439 = sor.u32 256, 8
          %440 = vbcast.lane.b32.xlu0 %v434, %s439
          %v441 = vpop.permute.xlu0 %440
          %s443 = sor.u32 256, 16
          %444 = vbcast.lane.b32.xlu0 %v434, %s443
          %v445 = vpop.permute.xlu0 %444
          %v446 = vlaneseq
          %v447 = vshrl.u32 %v446, 7
          %v448 = vsub.s32 1, %v447
          %v449 = vrot.slane %v310, %v448
          %451 = vbcast.lane.b32.xlu0 %v449, 256
          %v452 = vpop.permute.xlu0 %451
          %s454 = sor.u32 256, 8
          %455 = vbcast.lane.b32.xlu0 %v449, %s454
          %v456 = vpop.permute.xlu0 %455
          %s458 = sor.u32 256, 16
          %459 = vbcast.lane.b32.xlu0 %v449, %s458
          %v460 = vpop.permute.xlu0 %459
          %v461 = vlaneseq
          %v462 = vshrl.u32 %v461, 7
          %v463 = vsub.s32 2, %v462
          %v464 = vrot.slane %v310, %v463
          %466 = vbcast.lane.b32.xlu0 %v464, 256
          %v467 = vpop.permute.xlu0 %466
          %s469 = sor.u32 256, 8
          %470 = vbcast.lane.b32.xlu0 %v464, %s469
          %v471 = vpop.permute.xlu0 %470
          %s473 = sor.u32 256, 16
          %474 = vbcast.lane.b32.xlu0 %v464, %s473
          %v475 = vpop.permute.xlu0 %474
          %v476 = vlaneseq
          %v477 = vshrl.u32 %v476, 7
          %v478 = vsub.s32 3, %v477
          %v479 = vrot.slane %v310, %v478
          %481 = vbcast.lane.b32.xlu0 %v479, 256
          %v482 = vpop.permute.xlu0 %481
          %s484 = sor.u32 256, 8
          %485 = vbcast.lane.b32.xlu0 %v479, %s484
          %v486 = vpop.permute.xlu0 %485
          %s488 = sor.u32 256, 16
          %489 = vbcast.lane.b32.xlu0 %v479, %s488
          %v490 = vpop.permute.xlu0 %489
          %vm491 = vcmask 523264
          %492 = vst.msk [vmem:[#allocation2] sm:$0xff] %vm491, %v317
          %493 = vst.msk [vmem:[#allocation2 + $0x8] sm:$0xff] %vm491, %v321
          %vm494 = vcmask 517120
          %495 = vst.msk [vmem:[#allocation2 + $0x10] sm:$0x3] %vm494, %v325
          %496 = vst.msk [vmem:[#allocation2 + $0x18] sm:$0xff] %vm491, %v332
          %497 = vst.msk [vmem:[#allocation2 + $0x20] sm:$0xff] %vm491, %v336
          %498 = vst.msk [vmem:[#allocation2 + $0x28] sm:$0x3] %vm494, %v340
          %499 = vst.msk [vmem:[#allocation2 + $0x30] sm:$0xff] %vm491, %v347
          %500 = vst.msk [vmem:[#allocation2 + $0x38] sm:$0xff] %vm491, %v351
          %501 = vst.msk [vmem:[#allocation2 + $0x40] sm:$0x3] %vm494, %v355
          %502 = vst.msk [vmem:[#allocation2 + $0x48] sm:$0xff] %vm491, %v362
          %503 = vst.msk [vmem:[#allocation2 + $0x50] sm:$0xff] %vm491, %v366
          %504 = vst.msk [vmem:[#allocation2 + $0x58] sm:$0x3] %vm494, %v370
          %505 = vst.msk [vmem:[#allocation2 + $0x60] sm:$0xff] %vm491, %v377
          %506 = vst.msk [vmem:[#allocation2 + $0x68] sm:$0xff] %vm491, %v381
          %507 = vst.msk [vmem:[#allocation2 + $0x70] sm:$0x3] %vm494, %v385
          %508 = vst.msk [vmem:[#allocation2 + $0x78] sm:$0xff] %vm491, %v392
          %509 = vst.msk [vmem:[#allocation2 + $0x80] sm:$0xff] %vm491, %v396
          %510 = vst.msk [vmem:[#allocation2 + $0x88] sm:$0x3] %vm494, %v400
          %511 = vst.msk [vmem:[#allocation2 + $0x90] sm:$0xff] %vm491, %v407
          %512 = vst.msk [vmem:[#allocation2 + $0x98] sm:$0xff] %vm491, %v411
          %513 = vst.msk [vmem:[#allocation2 + $0xa0] sm:$0x3] %vm494, %v415
          %514 = vst.msk [vmem:[#allocation2 + $0xa8] sm:$0xff] %vm491, %v422
          %515 = vst.msk [vmem:[#allocation2 + $0xb0] sm:$0xff] %vm491, %v426
          %516 = vst.msk [vmem:[#allocation2 + $0xb8] sm:$0x3] %vm494, %v430
          %517 = vst.msk [vmem:[#allocation2 + $0xc0] sm:$0xff] %vm491, %v437
          %518 = vst.msk [vmem:[#allocation2 + $0xc8] sm:$0xff] %vm491, %v441
          %519 = vst.msk [vmem:[#allocation2 + $0xd0] sm:$0x3] %vm494, %v445
          %520 = vst.msk [vmem:[#allocation2 + $0xd8] sm:$0xff] %vm491, %v452
          %521 = vst.msk [vmem:[#allocation2 + $0xe0] sm:$0xff] %vm491, %v456
          %522 = vst.msk [vmem:[#allocation2 + $0xe8] sm:$0x3] %vm494, %v460
          %523 = vst.msk [vmem:[#allocation2 + $0xf0] sm:$0xff] %vm491, %v467
          %524 = vst.msk [vmem:[#allocation2 + $0xf8] sm:$0xff] %vm491, %v471
          %525 = vst.msk [vmem:[#allocation2 + $0x100] sm:$0x3] %vm494, %v475
          %526 = vst.msk [vmem:[#allocation2 + $0x108] sm:$0xff] %vm491, %v482
          %527 = vst.msk [vmem:[#allocation2 + $0x110] sm:$0xff] %vm491, %v486
          %528 = vst.msk [vmem:[#allocation2 + $0x118] sm:$0x3] %vm494, %v490
          %v529 = vld [vmem:[#allocation2] sm:$0xff]
          %v530 = vld [vmem:[#allocation2 + $0x8] sm:$0xff]
          %v531 = vld [vmem:[#allocation2 + $0x18] sm:$0xff]
          %v532 = vld [vmem:[#allocation2 + $0x20] sm:$0xff]
          %v533 = vld [vmem:[#allocation2 + $0x30] sm:$0xff]
          %v534 = vld [vmem:[#allocation2 + $0x38] sm:$0xff]
          %v535 = vld [vmem:[#allocation2 + $0x48] sm:$0xff]
          %v536 = vld [vmem:[#allocation2 + $0x50] sm:$0xff]
          %v537 = vld [vmem:[#allocation2 + $0x60] sm:$0xff]
          %v538 = vld [vmem:[#allocation2 + $0x68] sm:$0xff]
          %v539 = vld [vmem:[#allocation2 + $0x78] sm:$0xff]
          %v540 = vld [vmem:[#allocation2 + $0x80] sm:$0xff]
          %v541 = vld [vmem:[#allocation2 + $0x90] sm:$0xff]
          %v542 = vld [vmem:[#allocation2 + $0x98] sm:$0xff]
          %v543 = vld [vmem:[#allocation2 + $0xa8] sm:$0xff]
          %v544 = vld [vmem:[#allocation2 + $0xb0] sm:$0xff]
          %v545 = vld [vmem:[#allocation2 + $0xc0] sm:$0xff]
          %v546 = vld [vmem:[#allocation2 + $0xc8] sm:$0xff]
          %v547 = vld [vmem:[#allocation2 + $0xd8] sm:$0xff]
          %v548 = vld [vmem:[#allocation2 + $0xe0] sm:$0xff]
          %v549 = vld [vmem:[%s2] sm:$0x1]
          %v550 = vlaneseq
          %v551 = vshrl.u32 %v550, 7
          %v552 = vsub.s32 0, %v551
          %v553 = vrot.slane %v549, %v552
          %v554 = vmul.f32 %v529, %v553
          %v555 = vmul.f32 %v530, %v553
          %v556 = vmul.f32 %v531, %v553
          %v557 = vmul.f32 %v532, %v553
          %v558 = vmul.f32 %v533, %v553
          %v559 = vmul.f32 %v534, %v553
          %v560 = vmul.f32 %v535, %v553
          %v561 = vmul.f32 %v536, %v553
          %v562 = vmul.f32 %v537, %v553
          %v563 = vmul.f32 %v538, %v553
          %v564 = vmul.f32 %v539, %v553
          %v565 = vmul.f32 %v540, %v553
          %v566 = vmul.f32 %v541, %v553
          %v567 = vmul.f32 %v542, %v553
          %v568 = vmul.f32 %v543, %v553
          %v569 = vmul.f32 %v544, %v553
          %v570 = vmul.f32 %v545, %v553
          %v571 = vmul.f32 %v546, %v553
          %v572 = vmul.f32 %v547, %v553
          %v573 = vmul.f32 %v548, %v553
          %v574 = vld [vmem:[#allocation2 + $0x1] sm:$0xff]
          %v575 = vld [vmem:[#allocation2 + $0x9] sm:$0xff]
          %v576 = vld [vmem:[#allocation2 + $0x19] sm:$0xff]
          %v577 = vld [vmem:[#allocation2 + $0x21] sm:$0xff]
          %v578 = vld [vmem:[#allocation2 + $0x31] sm:$0xff]
          %v579 = vld [vmem:[#allocation2 + $0x39] sm:$0xff]
          %v580 = vld [vmem:[#allocation2 + $0x49] sm:$0xff]
          %v581 = vld [vmem:[#allocation2 + $0x51] sm:$0xff]
          %v582 = vld [vmem:[#allocation2 + $0x61] sm:$0xff]
          %v583 = vld [vmem:[#allocation2 + $0x69] sm:$0xff]
          %v584 = vld [vmem:[#allocation2 + $0x79] sm:$0xff]
          %v585 = vld [vmem:[#allocation2 + $0x81] sm:$0xff]
          %v586 = vld [vmem:[#allocation2 + $0x91] sm:$0xff]
          %v587 = vld [vmem:[#allocation2 + $0x99] sm:$0xff]
          %v588 = vld [vmem:[#allocation2 + $0xa9] sm:$0xff]
          %v589 = vld [vmem:[#allocation2 + $0xb1] sm:$0xff]
          %v590 = vld [vmem:[#allocation2 + $0xc1] sm:$0xff]
          %v591 = vld [vmem:[#allocation2 + $0xc9] sm:$0xff]
          %v592 = vld [vmem:[#allocation2 + $0xd9] sm:$0xff]
          %v593 = vld [vmem:[#allocation2 + $0xe1] sm:$0xff]
          %v594 = vld [vmem:[%s2 + $0x1] sm:$0x1]
          %v595 = vlaneseq
          %v596 = vshrl.u32 %v595, 7
          %v597 = vsub.s32 0, %v596
          %v598 = vrot.slane %v594, %v597
          %v599 = vmul.f32 %v574, %v598
          %v600 = vmul.f32 %v575, %v598
          %v601 = vmul.f32 %v576, %v598
          %v602 = vmul.f32 %v577, %v598
          %v603 = vmul.f32 %v578, %v598
          %v604 = vmul.f32 %v579, %v598
          %v605 = vmul.f32 %v580, %v598
          %v606 = vmul.f32 %v581, %v598
          %v607 = vmul.f32 %v582, %v598
          %v608 = vmul.f32 %v583, %v598
          %v609 = vmul.f32 %v584, %v598
          %v610 = vmul.f32 %v585, %v598
          %v611 = vmul.f32 %v586, %v598
          %v612 = vmul.f32 %v587, %v598
          %v613 = vmul.f32 %v588, %v598
          %v614 = vmul.f32 %v589, %v598
          %v615 = vmul.f32 %v590, %v598
          %v616 = vmul.f32 %v591, %v598
          %v617 = vmul.f32 %v592, %v598
          %v618 = vmul.f32 %v593, %v598
          %v619 = vadd.f32 %v554, %v599
          %v620 = vadd.f32 %v555, %v600
          %v621 = vadd.f32 %v556, %v601
          %v622 = vadd.f32 %v557, %v602
          %v623 = vadd.f32 %v558, %v603
          %v624 = vadd.f32 %v559, %v604
          %v625 = vadd.f32 %v560, %v605
          %v626 = vadd.f32 %v561, %v606
          %v627 = vadd.f32 %v562, %v607
          %v628 = vadd.f32 %v563, %v608
          %v629 = vadd.f32 %v564, %v609
          %v630 = vadd.f32 %v565, %v610
          %v631 = vadd.f32 %v566, %v611
          %v632 = vadd.f32 %v567, %v612
          %v633 = vadd.f32 %v568, %v613
          %v634 = vadd.f32 %v569, %v614
          %v635 = vadd.f32 %v570, %v615
          %v636 = vadd.f32 %v571, %v616
          %v637 = vadd.f32 %v572, %v617
          %v638 = vadd.f32 %v573, %v618
          %v639 = vld [vmem:[#allocation2 + $0x2] sm:$0xff]
          %v640 = vld [vmem:[#allocation2 + $0xa] sm:$0xff]
          %v641 = vld [vmem:[#allocation2 + $0x1a] sm:$0xff]
          %v642 = vld [vmem:[#allocation2 + $0x22] sm:$0xff]
          %v643 = vld [vmem:[#allocation2 + $0x32] sm:$0xff]
          %v644 = vld [vmem:[#allocation2 + $0x3a] sm:$0xff]
          %v645 = vld [vmem:[#allocation2 + $0x4a] sm:$0xff]
          %v646 = vld [vmem:[#allocation2 + $0x52] sm:$0xff]
          %v647 = vld [vmem:[#allocation2 + $0x62] sm:$0xff]
          %v648 = vld [vmem:[#allocation2 + $0x6a] sm:$0xff]
          %v649 = vld [vmem:[#allocation2 + $0x7a] sm:$0xff]
          %v650 = vld [vmem:[#allocation2 + $0x82] sm:$0xff]
          %v651 = vld [vmem:[#allocation2 + $0x92] sm:$0xff]
          %v652 = vld [vmem:[#allocation2 + $0x9a] sm:$0xff]
          %v653 = vld [vmem:[#allocation2 + $0xaa] sm:$0xff]
          %v654 = vld [vmem:[#allocation2 + $0xb2] sm:$0xff]
          %v655 = vld [vmem:[#allocation2 + $0xc2] sm:$0xff]
          %v656 = vld [vmem:[#allocation2 + $0xca] sm:$0xff]
          %v657 = vld [vmem:[#allocation2 + $0xda] sm:$0xff]
          %v658 = vld [vmem:[#allocation2 + $0xe2] sm:$0xff]
          %v659 = vld [vmem:[%s2 + $0x2] sm:$0x1]
          %v660 = vlaneseq
          %v661 = vshrl.u32 %v660, 7
          %v662 = vsub.s32 0, %v661
          %v663 = vrot.slane %v659, %v662
          %v664 = vmul.f32 %v639, %v663
          %v665 = vmul.f32 %v640, %v663
          %v666 = vmul.f32 %v641, %v663
          %v667 = vmul.f32 %v642, %v663
          %v668 = vmul.f32 %v643, %v663
          %v669 = vmul.f32 %v644, %v663
          %v670 = vmul.f32 %v645, %v663
          %v671 = vmul.f32 %v646, %v663
          %v672 = vmul.f32 %v647, %v663
          %v673 = vmul.f32 %v648, %v663
          %v674 = vmul.f32 %v649, %v663
          %v675 = vmul.f32 %v650, %v663
          %v676 = vmul.f32 %v651, %v663
          %v677 = vmul.f32 %v652, %v663
          %v678 = vmul.f32 %v653, %v663
          %v679 = vmul.f32 %v654, %v663
          %v680 = vmul.f32 %v655, %v663
          %v681 = vmul.f32 %v656, %v663
          %v682 = vmul.f32 %v657, %v663
          %v683 = vmul.f32 %v658, %v663
          %v684 = vadd.f32 %v619, %v664
          %v685 = vadd.f32 %v620, %v665
          %v686 = vadd.f32 %v621, %v666
          %v687 = vadd.f32 %v622, %v667
          %v688 = vadd.f32 %v623, %v668
          %v689 = vadd.f32 %v624, %v669
          %v690 = vadd.f32 %v625, %v670
          %v691 = vadd.f32 %v626, %v671
          %v692 = vadd.f32 %v627, %v672
          %v693 = vadd.f32 %v628, %v673
          %v694 = vadd.f32 %v629, %v674
          %v695 = vadd.f32 %v630, %v675
          %v696 = vadd.f32 %v631, %v676
          %v697 = vadd.f32 %v632, %v677
          %v698 = vadd.f32 %v633, %v678
          %v699 = vadd.f32 %v634, %v679
          %v700 = vadd.f32 %v635, %v680
          %v701 = vadd.f32 %v636, %v681
          %v702 = vadd.f32 %v637, %v682
          %v703 = vadd.f32 %v638, %v683
          %s704 = scalar_lea.vmem [#allocation2], 24
          %v705 = vld [vmem:[%s704] sm:$0xff]
          %v706 = vld [vmem:[%s704 + $0x8] sm:$0xff]
          %v707 = vld [vmem:[%s704 + $0x18] sm:$0xff]
          %v708 = vld [vmem:[%s704 + $0x20] sm:$0xff]
          %v709 = vld [vmem:[%s704 + $0x30] sm:$0xff]
          %v710 = vld [vmem:[%s704 + $0x38] sm:$0xff]
          %v711 = vld [vmem:[%s704 + $0x48] sm:$0xff]
          %v712 = vld [vmem:[%s704 + $0x50] sm:$0xff]
          %v713 = vld [vmem:[%s704 + $0x60] sm:$0xff]
          %v714 = vld [vmem:[%s704 + $0x68] sm:$0xff]
          %v715 = vld [vmem:[%s704 + $0x78] sm:$0xff]
          %v716 = vld [vmem:[%s704 + $0x80] sm:$0xff]
          %v717 = vld [vmem:[%s704 + $0x90] sm:$0xff]
          %v718 = vld [vmem:[%s704 + $0x98] sm:$0xff]
          %v719 = vld [vmem:[%s704 + $0xa8] sm:$0xff]
          %v720 = vld [vmem:[%s704 + $0xb0] sm:$0xff]
          %v721 = vld [vmem:[%s704 + $0xc0] sm:$0xff]
          %v722 = vld [vmem:[%s704 + $0xc8] sm:$0xff]
          %v723 = vld [vmem:[%s704 + $0xd8] sm:$0xff]
          %v724 = vld [vmem:[%s704 + $0xe0] sm:$0xff]
          %v725 = vld [vmem:[%s2 + $0x3] sm:$0x1]
          %v726 = vlaneseq
          %v727 = vshrl.u32 %v726, 7
          %v728 = vsub.s32 0, %v727
          %v729 = vrot.slane %v725, %v728
          %v730 = vmul.f32 %v705, %v729
          %v731 = vmul.f32 %v706, %v729
          %v732 = vmul.f32 %v707, %v729
          %v733 = vmul.f32 %v708, %v729
          %v734 = vmul.f32 %v709, %v729
          %v735 = vmul.f32 %v710, %v729
          %v736 = vmul.f32 %v711, %v729
          %v737 = vmul.f32 %v712, %v729
          %v738 = vmul.f32 %v713, %v729
          %v739 = vmul.f32 %v714, %v729
          %v740 = vmul.f32 %v715, %v729
          %v741 = vmul.f32 %v716, %v729
          %v742 = vmul.f32 %v717, %v729
          %v743 = vmul.f32 %v718, %v729
          %v744 = vmul.f32 %v719, %v729
          %v745 = vmul.f32 %v720, %v729
          %v746 = vmul.f32 %v721, %v729
          %v747 = vmul.f32 %v722, %v729
          %v748 = vmul.f32 %v723, %v729
          %v749 = vmul.f32 %v724, %v729
          %v750 = vadd.f32 %v684, %v730
          %v751 = vadd.f32 %v685, %v731
          %v752 = vadd.f32 %v686, %v732
          %v753 = vadd.f32 %v687, %v733
          %v754 = vadd.f32 %v688, %v734
          %v755 = vadd.f32 %v689, %v735
          %v756 = vadd.f32 %v690, %v736
          %v757 = vadd.f32 %v691, %v737
          %v758 = vadd.f32 %v692, %v738
          %v759 = vadd.f32 %v693, %v739
          %v760 = vadd.f32 %v694, %v740
          %v761 = vadd.f32 %v695, %v741
          %v762 = vadd.f32 %v696, %v742
          %v763 = vadd.f32 %v697, %v743
          %v764 = vadd.f32 %v698, %v744
          %v765 = vadd.f32 %v699, %v745
          %v766 = vadd.f32 %v700, %v746
          %v767 = vadd.f32 %v701, %v747
          %v768 = vadd.f32 %v702, %v748
          %v769 = vadd.f32 %v703, %v749
          %v770 = vld [vmem:[%s704 + $0x1] sm:$0xff]
          %v771 = vld [vmem:[%s704 + $0x9] sm:$0xff]
          %v772 = vld [vmem:[%s704 + $0x19] sm:$0xff]
          %v773 = vld [vmem:[%s704 + $0x21] sm:$0xff]
          %v774 = vld [vmem:[%s704 + $0x31] sm:$0xff]
          %v775 = vld [vmem:[%s704 + $0x39] sm:$0xff]
          %v776 = vld [vmem:[%s704 + $0x49] sm:$0xff]
          %v777 = vld [vmem:[%s704 + $0x51] sm:$0xff]
          %v778 = vld [vmem:[%s704 + $0x61] sm:$0xff]
          %v779 = vld [vmem:[%s704 + $0x69] sm:$0xff]
          %v780 = vld [vmem:[%s704 + $0x79] sm:$0xff]
          %v781 = vld [vmem:[%s704 + $0x81] sm:$0xff]
          %v782 = vld [vmem:[%s704 + $0x91] sm:$0xff]
          %v783 = vld [vmem:[%s704 + $0x99] sm:$0xff]
          %v784 = vld [vmem:[%s704 + $0xa9] sm:$0xff]
          %v785 = vld [vmem:[%s704 + $0xb1] sm:$0xff]
          %v786 = vld [vmem:[%s704 + $0xc1] sm:$0xff]
          %v787 = vld [vmem:[%s704 + $0xc9] sm:$0xff]
          %v788 = vld [vmem:[%s704 + $0xd9] sm:$0xff]
          %v789 = vld [vmem:[%s704 + $0xe1] sm:$0xff]
          %v790 = vld [vmem:[%s2 + $0x4] sm:$0x1]
          %v791 = vlaneseq
          %v792 = vshrl.u32 %v791, 7
          %v793 = vsub.s32 0, %v792
          %v794 = vrot.slane %v790, %v793
          %v795 = vmul.f32 %v770, %v794
          %v796 = vmul.f32 %v771, %v794
          %v797 = vmul.f32 %v772, %v794
          %v798 = vmul.f32 %v773, %v794
          %v799 = vmul.f32 %v774, %v794
          %v800 = vmul.f32 %v775, %v794
          %v801 = vmul.f32 %v776, %v794
          %v802 = vmul.f32 %v777, %v794
          %v803 = vmul.f32 %v778, %v794
          %v804 = vmul.f32 %v779, %v794
          %v805 = vmul.f32 %v780, %v794
          %v806 = vmul.f32 %v781, %v794
          %v807 = vmul.f32 %v782, %v794
          %v808 = vmul.f32 %v783, %v794
          %v809 = vmul.f32 %v784, %v794
          %v810 = vmul.f32 %v785, %v794
          %v811 = vmul.f32 %v786, %v794
          %v812 = vmul.f32 %v787, %v794
          %v813 = vmul.f32 %v788, %v794
          %v814 = vmul.f32 %v789, %v794
          %v815 = vadd.f32 %v750, %v795
          %v816 = vadd.f32 %v751, %v796
          %v817 = vadd.f32 %v752, %v797
          %v818 = vadd.f32 %v753, %v798
          %v819 = vadd.f32 %v754, %v799
          %v820 = vadd.f32 %v755, %v800
          %v821 = vadd.f32 %v756, %v801
          %v822 = vadd.f32 %v757, %v802
          %v823 = vadd.f32 %v758, %v803
          %v824 = vadd.f32 %v759, %v804
          %v825 = vadd.f32 %v760, %v805
          %v826 = vadd.f32 %v761, %v806
          %v827 = vadd.f32 %v762, %v807
          %v828 = vadd.f32 %v763, %v808
          %v829 = vadd.f32 %v764, %v809
          %v830 = vadd.f32 %v765, %v810
          %v831 = vadd.f32 %v766, %v811
          %v832 = vadd.f32 %v767, %v812
          %v833 = vadd.f32 %v768, %v813
          %v834 = vadd.f32 %v769, %v814
          %v835 = vld [vmem:[%s704 + $0x2] sm:$0xff]
          %v836 = vld [vmem:[%s704 + $0xa] sm:$0xff]
          %v837 = vld [vmem:[%s704 + $0x1a] sm:$0xff]
          %v838 = vld [vmem:[%s704 + $0x22] sm:$0xff]
          %v839 = vld [vmem:[%s704 + $0x32] sm:$0xff]
          %v840 = vld [vmem:[%s704 + $0x3a] sm:$0xff]
          %v841 = vld [vmem:[%s704 + $0x4a] sm:$0xff]
          %v842 = vld [vmem:[%s704 + $0x52] sm:$0xff]
          %v843 = vld [vmem:[%s704 + $0x62] sm:$0xff]
          %v844 = vld [vmem:[%s704 + $0x6a] sm:$0xff]
          %v845 = vld [vmem:[%s704 + $0x7a] sm:$0xff]
          %v846 = vld [vmem:[%s704 + $0x82] sm:$0xff]
          %v847 = vld [vmem:[%s704 + $0x92] sm:$0xff]
          %v848 = vld [vmem:[%s704 + $0x9a] sm:$0xff]
          %v849 = vld [vmem:[%s704 + $0xaa] sm:$0xff]
          %v850 = vld [vmem:[%s704 + $0xb2] sm:$0xff]
          %v851 = vld [vmem:[%s704 + $0xc2] sm:$0xff]
          %v852 = vld [vmem:[%s704 + $0xca] sm:$0xff]
          %v853 = vld [vmem:[%s704 + $0xda] sm:$0xff]
          %v854 = vld [vmem:[%s704 + $0xe2] sm:$0xff]
          %v855 = vld [vmem:[%s2 + $0x5] sm:$0x1]
          %v856 = vlaneseq
          %v857 = vshrl.u32 %v856, 7
          %v858 = vsub.s32 0, %v857
          %v859 = vrot.slane %v855, %v858
          %v860 = vmul.f32 %v835, %v859
          %v861 = vmul.f32 %v836, %v859
          %v862 = vmul.f32 %v837, %v859
          %v863 = vmul.f32 %v838, %v859
          %v864 = vmul.f32 %v839, %v859
          %v865 = vmul.f32 %v840, %v859
          %v866 = vmul.f32 %v841, %v859
          %v867 = vmul.f32 %v842, %v859
          %v868 = vmul.f32 %v843, %v859
          %v869 = vmul.f32 %v844, %v859
          %v870 = vmul.f32 %v845, %v859
          %v871 = vmul.f32 %v846, %v859
          %v872 = vmul.f32 %v847, %v859
          %v873 = vmul.f32 %v848, %v859
          %v874 = vmul.f32 %v849, %v859
          %v875 = vmul.f32 %v850, %v859
          %v876 = vmul.f32 %v851, %v859
          %v877 = vmul.f32 %v852, %v859
          %v878 = vmul.f32 %v853, %v859
          %v879 = vmul.f32 %v854, %v859
          %v880 = vadd.f32 %v815, %v860
          %v881 = vadd.f32 %v816, %v861
          %v882 = vadd.f32 %v817, %v862
          %v883 = vadd.f32 %v818, %v863
          %v884 = vadd.f32 %v819, %v864
          %v885 = vadd.f32 %v820, %v865
          %v886 = vadd.f32 %v821, %v866
          %v887 = vadd.f32 %v822, %v867
          %v888 = vadd.f32 %v823, %v868
          %v889 = vadd.f32 %v824, %v869
          %v890 = vadd.f32 %v825, %v870
          %v891 = vadd.f32 %v826, %v871
          %v892 = vadd.f32 %v827, %v872
          %v893 = vadd.f32 %v828, %v873
          %v894 = vadd.f32 %v829, %v874
          %v895 = vadd.f32 %v830, %v875
          %v896 = vadd.f32 %v831, %v876
          %v897 = vadd.f32 %v832, %v877
          %v898 = vadd.f32 %v833, %v878
          %v899 = vadd.f32 %v834, %v879
          %s900 = scalar_lea.vmem [#allocation2], 48
          %v901 = vld [vmem:[%s900] sm:$0xff]
          %v902 = vld [vmem:[%s900 + $0x8] sm:$0xff]
          %v903 = vld [vmem:[%s900 + $0x18] sm:$0xff]
          %v904 = vld [vmem:[%s900 + $0x20] sm:$0xff]
          %v905 = vld [vmem:[%s900 + $0x30] sm:$0xff]
          %v906 = vld [vmem:[%s900 + $0x38] sm:$0xff]
          %v907 = vld [vmem:[%s900 + $0x48] sm:$0xff]
          %v908 = vld [vmem:[%s900 + $0x50] sm:$0xff]
          %v909 = vld [vmem:[%s900 + $0x60] sm:$0xff]
          %v910 = vld [vmem:[%s900 + $0x68] sm:$0xff]
          %v911 = vld [vmem:[%s900 + $0x78] sm:$0xff]
          %v912 = vld [vmem:[%s900 + $0x80] sm:$0xff]
          %v913 = vld [vmem:[%s900 + $0x90] sm:$0xff]
          %v914 = vld [vmem:[%s900 + $0x98] sm:$0xff]
          %v915 = vld [vmem:[%s900 + $0xa8] sm:$0xff]
          %v916 = vld [vmem:[%s900 + $0xb0] sm:$0xff]
          %v917 = vld [vmem:[%s900 + $0xc0] sm:$0xff]
          %v918 = vld [vmem:[%s900 + $0xc8] sm:$0xff]
          %v919 = vld [vmem:[%s900 + $0xd8] sm:$0xff]
          %v920 = vld [vmem:[%s900 + $0xe0] sm:$0xff]
          %v921 = vld [vmem:[%s2 + $0x6] sm:$0x1]
          %v922 = vlaneseq
          %v923 = vshrl.u32 %v922, 7
          %v924 = vsub.s32 0, %v923
          %v925 = vrot.slane %v921, %v924
          %v926 = vmul.f32 %v901, %v925
          %v927 = vmul.f32 %v902, %v925
          %v928 = vmul.f32 %v903, %v925
          %v929 = vmul.f32 %v904, %v925
          %v930 = vmul.f32 %v905, %v925
          %v931 = vmul.f32 %v906, %v925
          %v932 = vmul.f32 %v907, %v925
          %v933 = vmul.f32 %v908, %v925
          %v934 = vmul.f32 %v909, %v925
          %v935 = vmul.f32 %v910, %v925
          %v936 = vmul.f32 %v911, %v925
          %v937 = vmul.f32 %v912, %v925
          %v938 = vmul.f32 %v913, %v925
          %v939 = vmul.f32 %v914, %v925
          %v940 = vmul.f32 %v915, %v925
          %v941 = vmul.f32 %v916, %v925
          %v942 = vmul.f32 %v917, %v925
          %v943 = vmul.f32 %v918, %v925
          %v944 = vmul.f32 %v919, %v925
          %v945 = vmul.f32 %v920, %v925
          %v946 = vadd.f32 %v880, %v926
          %v947 = vadd.f32 %v881, %v927
          %v948 = vadd.f32 %v882, %v928
          %v949 = vadd.f32 %v883, %v929
          %v950 = vadd.f32 %v884, %v930
          %v951 = vadd.f32 %v885, %v931
          %v952 = vadd.f32 %v886, %v932
          %v953 = vadd.f32 %v887, %v933
          %v954 = vadd.f32 %v888, %v934
          %v955 = vadd.f32 %v889, %v935
          %v956 = vadd.f32 %v890, %v936
          %v957 = vadd.f32 %v891, %v937
          %v958 = vadd.f32 %v892, %v938
          %v959 = vadd.f32 %v893, %v939
          %v960 = vadd.f32 %v894, %v940
          %v961 = vadd.f32 %v895, %v941
          %v962 = vadd.f32 %v896, %v942
          %v963 = vadd.f32 %v897, %v943
          %v964 = vadd.f32 %v898, %v944
          %v965 = vadd.f32 %v899, %v945
          %v966 = vld [vmem:[%s900 + $0x1] sm:$0xff]
          %v967 = vld [vmem:[%s900 + $0x9] sm:$0xff]
          %v968 = vld [vmem:[%s900 + $0x19] sm:$0xff]
          %v969 = vld [vmem:[%s900 + $0x21] sm:$0xff]
          %v970 = vld [vmem:[%s900 + $0x31] sm:$0xff]
          %v971 = vld [vmem:[%s900 + $0x39] sm:$0xff]
          %v972 = vld [vmem:[%s900 + $0x49] sm:$0xff]
          %v973 = vld [vmem:[%s900 + $0x51] sm:$0xff]
          %v974 = vld [vmem:[%s900 + $0x61] sm:$0xff]
          %v975 = vld [vmem:[%s900 + $0x69] sm:$0xff]
          %v976 = vld [vmem:[%s900 + $0x79] sm:$0xff]
          %v977 = vld [vmem:[%s900 + $0x81] sm:$0xff]
          %v978 = vld [vmem:[%s900 + $0x91] sm:$0xff]
          %v979 = vld [vmem:[%s900 + $0x99] sm:$0xff]
          %v980 = vld [vmem:[%s900 + $0xa9] sm:$0xff]
          %v981 = vld [vmem:[%s900 + $0xb1] sm:$0xff]
          %v982 = vld [vmem:[%s900 + $0xc1] sm:$0xff]
          %v983 = vld [vmem:[%s900 + $0xc9] sm:$0xff]
          %v984 = vld [vmem:[%s900 + $0xd9] sm:$0xff]
          %v985 = vld [vmem:[%s900 + $0xe1] sm:$0xff]
          %v986 = vld [vmem:[%s2 + $0x7] sm:$0x1]
          %v987 = vlaneseq
          %v988 = vshrl.u32 %v987, 7
          %v989 = vsub.s32 0, %v988
          %v990 = vrot.slane %v986, %v989
          %v991 = vmul.f32 %v966, %v990
          %v992 = vmul.f32 %v967, %v990
          %v993 = vmul.f32 %v968, %v990
          %v994 = vmul.f32 %v969, %v990
          %v995 = vmul.f32 %v970, %v990
          %v996 = vmul.f32 %v971, %v990
          %v997 = vmul.f32 %v972, %v990
          %v998 = vmul.f32 %v973, %v990
          %v999 = vmul.f32 %v974, %v990
          %v1000 = vmul.f32 %v975, %v990
          %v1001 = vmul.f32 %v976, %v990
          %v1002 = vmul.f32 %v977, %v990
          %v1003 = vmul.f32 %v978, %v990
          %v1004 = vmul.f32 %v979, %v990
          %v1005 = vmul.f32 %v980, %v990
          %v1006 = vmul.f32 %v981, %v990
          %v1007 = vmul.f32 %v982, %v990
          %v1008 = vmul.f32 %v983, %v990
          %v1009 = vmul.f32 %v984, %v990
          %v1010 = vmul.f32 %v985, %v990
          %v1011 = vadd.f32 %v946, %v991
          %v1012 = vadd.f32 %v947, %v992
          %v1013 = vadd.f32 %v948, %v993
          %v1014 = vadd.f32 %v949, %v994
          %v1015 = vadd.f32 %v950, %v995
          %v1016 = vadd.f32 %v951, %v996
          %v1017 = vadd.f32 %v952, %v997
          %v1018 = vadd.f32 %v953, %v998
          %v1019 = vadd.f32 %v954, %v999
          %v1020 = vadd.f32 %v955, %v1000
          %v1021 = vadd.f32 %v956, %v1001
          %v1022 = vadd.f32 %v957, %v1002
          %v1023 = vadd.f32 %v958, %v1003
          %v1024 = vadd.f32 %v959, %v1004
          %v1025 = vadd.f32 %v960, %v1005
          %v1026 = vadd.f32 %v961, %v1006
          %v1027 = vadd.f32 %v962, %v1007
          %v1028 = vadd.f32 %v963, %v1008
          %v1029 = vadd.f32 %v964, %v1009
          %v1030 = vadd.f32 %v965, %v1010
          %v1031 = vld [vmem:[%s900 + $0x2] sm:$0xff]
          %v1032 = vld [vmem:[%s900 + $0xa] sm:$0xff]
          %v1033 = vld [vmem:[%s900 + $0x1a] sm:$0xff]
          %v1034 = vld [vmem:[%s900 + $0x22] sm:$0xff]
          %v1035 = vld [vmem:[%s900 + $0x32] sm:$0xff]
          %v1036 = vld [vmem:[%s900 + $0x3a] sm:$0xff]
          %v1037 = vld [vmem:[%s900 + $0x4a] sm:$0xff]
          %v1038 = vld [vmem:[%s900 + $0x52] sm:$0xff]
          %v1039 = vld [vmem:[%s900 + $0x62] sm:$0xff]
          %v1040 = vld [vmem:[%s900 + $0x6a] sm:$0xff]
          %v1041 = vld [vmem:[%s900 + $0x7a] sm:$0xff]
          %v1042 = vld [vmem:[%s900 + $0x82] sm:$0xff]
          %v1043 = vld [vmem:[%s900 + $0x92] sm:$0xff]
          %v1044 = vld [vmem:[%s900 + $0x9a] sm:$0xff]
          %v1045 = vld [vmem:[%s900 + $0xaa] sm:$0xff]
          %v1046 = vld [vmem:[%s900 + $0xb2] sm:$0xff]
          %v1047 = vld [vmem:[%s900 + $0xc2] sm:$0xff]
          %v1048 = vld [vmem:[%s900 + $0xca] sm:$0xff]
          %v1049 = vld [vmem:[%s900 + $0xda] sm:$0xff]
          %v1050 = vld [vmem:[%s900 + $0xe2] sm:$0xff]
          %v1051 = vld [vmem:[%s2 + $0x8] sm:$0x1]
          %v1052 = vlaneseq
          %v1053 = vshrl.u32 %v1052, 7
          %v1054 = vsub.s32 0, %v1053
          %v1055 = vrot.slane %v1051, %v1054
          %v1056 = vmul.f32 %v1031, %v1055
          %v1057 = vmul.f32 %v1032, %v1055
          %v1058 = vmul.f32 %v1033, %v1055
          %v1059 = vmul.f32 %v1034, %v1055
          %v1060 = vmul.f32 %v1035, %v1055
          %v1061 = vmul.f32 %v1036, %v1055
          %v1062 = vmul.f32 %v1037, %v1055
          %v1063 = vmul.f32 %v1038, %v1055
          %v1064 = vmul.f32 %v1039, %v1055
          %v1065 = vmul.f32 %v1040, %v1055
          %v1066 = vmul.f32 %v1041, %v1055
          %v1067 = vmul.f32 %v1042, %v1055
          %v1068 = vmul.f32 %v1043, %v1055
          %v1069 = vmul.f32 %v1044, %v1055
          %v1070 = vmul.f32 %v1045, %v1055
          %v1071 = vmul.f32 %v1046, %v1055
          %v1072 = vmul.f32 %v1047, %v1055
          %v1073 = vmul.f32 %v1048, %v1055
          %v1074 = vmul.f32 %v1049, %v1055
          %v1075 = vmul.f32 %v1050, %v1055
          %v1076 = vadd.f32 %v1011, %v1056
          %v1077 = vadd.f32 %v1012, %v1057
          %v1078 = vadd.f32 %v1013, %v1058
          %v1079 = vadd.f32 %v1014, %v1059
          %v1080 = vadd.f32 %v1015, %v1060
          %v1081 = vadd.f32 %v1016, %v1061
          %v1082 = vadd.f32 %v1017, %v1062
          %v1083 = vadd.f32 %v1018, %v1063
          %v1084 = vadd.f32 %v1019, %v1064
          %v1085 = vadd.f32 %v1020, %v1065
          %v1086 = vadd.f32 %v1021, %v1066
          %v1087 = vadd.f32 %v1022, %v1067
          %v1088 = vadd.f32 %v1023, %v1068
          %v1089 = vadd.f32 %v1024, %v1069
          %v1090 = vadd.f32 %v1025, %v1070
          %v1091 = vadd.f32 %v1026, %v1071
          %v1092 = vadd.f32 %v1027, %v1072
          %v1093 = vadd.f32 %v1028, %v1073
          %v1094 = vadd.f32 %v1029, %v1074
          %v1095 = vadd.f32 %v1030, %v1075
          %v1096 = vld [vmem:[%s3] sm:$0x1]
          %v1098 = vlaneseq
          %v1099 = vshrl.u32 %v1098, 7
          %v1100 = vsub.s32 0, %v1099
          %v1101 = vrot.slane %v1096, %v1100
          %v1103 = vadd.f32 %v1076, %v1101
          %v1104 = vadd.f32 %v1077, %v1101
          %v1105 = vadd.f32 %v1078, %v1101
          %v1106 = vadd.f32 %v1079, %v1101
          %v1107 = vadd.f32 %v1080, %v1101
          %v1108 = vadd.f32 %v1081, %v1101
          %v1109 = vadd.f32 %v1082, %v1101
          %v1110 = vadd.f32 %v1083, %v1101
          %v1111 = vadd.f32 %v1084, %v1101
          %v1112 = vadd.f32 %v1085, %v1101
          %v1113 = vadd.f32 %v1086, %v1101
          %v1114 = vadd.f32 %v1087, %v1101
          %v1115 = vadd.f32 %v1088, %v1101
          %v1116 = vadd.f32 %v1089, %v1101
          %v1117 = vadd.f32 %v1090, %v1101
          %v1118 = vadd.f32 %v1091, %v1101
          %v1119 = vadd.f32 %v1092, %v1101
          %v1120 = vadd.f32 %v1093, %v1101
          %v1121 = vadd.f32 %v1094, %v1101
          %v1122 = vadd.f32 %v1095, %v1101
          %v1123 = vmax.f32 %v1103, 0.0
          %v1124 = vmax.f32 %v1104, 0.0
          %v1125 = vmax.f32 %v1105, 0.0
          %v1126 = vmax.f32 %v1106, 0.0
          %v1127 = vmax.f32 %v1107, 0.0
          %v1128 = vmax.f32 %v1108, 0.0
          %v1129 = vmax.f32 %v1109, 0.0
          %v1130 = vmax.f32 %v1110, 0.0
          %v1131 = vmax.f32 %v1111, 0.0
          %v1132 = vmax.f32 %v1112, 0.0
          %v1133 = vmax.f32 %v1113, 0.0
          %v1134 = vmax.f32 %v1114, 0.0
          %v1135 = vmax.f32 %v1115, 0.0
          %v1136 = vmax.f32 %v1116, 0.0
          %v1137 = vmax.f32 %v1117, 0.0
          %v1138 = vmax.f32 %v1118, 0.0
          %v1139 = vmax.f32 %v1119, 0.0
          %v1140 = vmax.f32 %v1120, 0.0
          %v1141 = vmax.f32 %v1121, 0.0
          %v1142 = vmax.f32 %v1122, 0.0
          %v1145 = vlaneseq
          %v1146 = vshrl.u32 %v1145, 7
          %v1147 = vsub.s32 1, %v1146
          %v1148 = vrot.slane %v305, %v1147
          %v1149 = vlaneseq
          %v1150 = vshrl.u32 %v1149, 7
          %v1151 = vsub.s32 2, %v1150
          %v1152 = vrot.slane %v305, %v1151
          %v1153 = vlaneseq
          %v1154 = vshrl.u32 %v1153, 7
          %v1155 = vsub.s32 3, %v1154
          %v1156 = vrot.slane %v305, %v1155
          %v1157 = vlaneseq
          %v1158 = vshrl.u32 %v1157, 7
          %v1159 = vsub.s32 4, %v1158
          %v1160 = vrot.slane %v305, %v1159
          %v1161 = vlaneseq
          %v1162 = vshrl.u32 %v1161, 7
          %v1163 = vsub.s32 5, %v1162
          %v1164 = vrot.slane %v305, %v1163
          %v1165 = vlaneseq
          %v1166 = vshrl.u32 %v1165, 7
          %v1167 = vsub.s32 6, %v1166
          %v1168 = vrot.slane %v305, %v1167
          %v1169 = vlaneseq
          %v1170 = vshrl.u32 %v1169, 7
          %v1171 = vsub.s32 7, %v1170
          %v1172 = vrot.slane %v305, %v1171
          %v1173 = vlaneseq
          %v1174 = vshrl.u32 %v1173, 7
          %v1175 = vsub.s32 0, %v1174
          %v1176 = vrot.slane %v306, %v1175
          %v1177 = vlaneseq
          %v1178 = vshrl.u32 %v1177, 7
          %v1179 = vsub.s32 1, %v1178
          %v1180 = vrot.slane %v306, %v1179
          %v1181 = vlaneseq
          %v1182 = vshrl.u32 %v1181, 7
          %v1183 = vsub.s32 2, %v1182
          %v1184 = vrot.slane %v306, %v1183
          %v1195 = vmul.f32 %v1123, %v1148
          %v1196 = vmul.f32 %v1124, %v1148
          %v1197 = vmul.f32 %v1125, %v1152
          %v1198 = vmul.f32 %v1126, %v1152
          %v1199 = vmul.f32 %v1127, %v1156
          %v1200 = vmul.f32 %v1128, %v1156
          %v1201 = vmul.f32 %v1129, %v1160
          %v1202 = vmul.f32 %v1130, %v1160
          %v1203 = vmul.f32 %v1131, %v1164
          %v1204 = vmul.f32 %v1132, %v1164
          %v1205 = vmul.f32 %v1133, %v1168
          %v1206 = vmul.f32 %v1134, %v1168
          %v1207 = vmul.f32 %v1135, %v1172
          %v1208 = vmul.f32 %v1136, %v1172
          %v1209 = vmul.f32 %v1137, %v1176
          %v1210 = vmul.f32 %v1138, %v1176
          %v1211 = vmul.f32 %v1139, %v1180
          %v1212 = vmul.f32 %v1140, %v1180
          %v1213 = vmul.f32 %v1141, %v1184
          %v1214 = vmul.f32 %v1142, %v1184
          %v1215 = vpack.c.bf16 %v1196, %v1195
          %v1216 = vpack.c.bf16 %v1198, %v1197
          %v1217 = vpack.c.bf16 %v1200, %v1199
          %v1218 = vpack.c.bf16 %v1202, %v1201
          %v1219 = vpack.c.bf16 %v1204, %v1203
          %v1220 = vpack.c.bf16 %v1206, %v1205
          %v1221 = vpack.c.bf16 %v1208, %v1207
          %v1222 = vpack.c.bf16 %v1210, %v1209
          %v1223 = vpack.c.bf16 %v1212, %v1211
          %v1224 = vpack.c.bf16 %v1214, %v1213
          %v1235 = vunpack.c.l.b16 %v1215
          %v1236 = vunpack.c.h.b16 %v1215
          %v1237 = vunpack.c.l.b16 %v1216
          %v1238 = vunpack.c.h.b16 %v1216
          %v1239 = vunpack.c.l.b16 %v1217
          %v1240 = vunpack.c.h.b16 %v1217
          %v1241 = vunpack.c.l.b16 %v1218
          %v1242 = vunpack.c.h.b16 %v1218
          %v1243 = vunpack.c.l.b16 %v1219
          %v1244 = vunpack.c.h.b16 %v1219
          %v1245 = vunpack.c.l.b16 %v1220
          %v1246 = vunpack.c.h.b16 %v1220
          %v1247 = vunpack.c.l.b16 %v1221
          %v1248 = vunpack.c.h.b16 %v1221
          %v1249 = vunpack.c.l.b16 %v1222
          %v1250 = vunpack.c.h.b16 %v1222
          %v1251 = vunpack.c.l.b16 %v1223
          %v1252 = vunpack.c.h.b16 %v1223
          %v1253 = vunpack.c.l.b16 %v1224
          %v1254 = vunpack.c.h.b16 %v1224
          %v1255 = vpack.c.b16 %v1235, %v1235
          %v1256 = vpack.c.b16 %v1236, %v1236
          %v1257 = vpack.c.b16 %v1237, %v1237
          %v1258 = vpack.c.b16 %v1238, %v1238
          %v1259 = vpack.c.b16 %v1239, %v1239
          %v1260 = vpack.c.b16 %v1240, %v1240
          %v1261 = vpack.c.b16 %v1241, %v1241
          %v1262 = vpack.c.b16 %v1242, %v1242
          %v1263 = vpack.c.b16 %v1243, %v1243
          %v1264 = vpack.c.b16 %v1244, %v1244
          %v1265 = vpack.c.b16 %v1245, %v1245
          %v1266 = vpack.c.b16 %v1246, %v1246
          %v1267 = vpack.c.b16 %v1247, %v1247
          %v1268 = vpack.c.b16 %v1248, %v1248
          %v1269 = vpack.c.b16 %v1249, %v1249
          %v1270 = vpack.c.b16 %v1250, %v1250
          %v1271 = vpack.c.b16 %v1251, %v1251
          %v1272 = vpack.c.b16 %v1252, %v1252
          %v1273 = vpack.c.b16 %v1253, %v1253
          %v1274 = vpack.c.b16 %v1254, %v1254
          %vm1275 = vsmask.f32 256
          %vm1276 = vsmask.f32 4368
          %vm1277 = vmor %vm1275, %vm1276
          %v1279 = vshrl.u32 %v1255, 16
          %v1281 = vrot.slane %v1279, 7
          %v1282 = vshll.u32 %v1255, 16
          %v1284 = vor.u32 %v1281, %v1282
          %v1285 = vrot.slane %v1281, 4
          %v1287 = vshrl.u32 %v1256, 16
          %v1289 = vrot.slane %v1287, 7
          %v1290 = vshll.u32 %v1256, 16
          %v1292 = vor.u32 %v1289, %v1290
          %v1293 = vsel %vm1277, %v1285, %v1292
          %v1294 = vrot.slane %v1289, 4
          %v1296 = vshrl.u32 %v1257, 16
          %v1298 = vrot.slane %v1296, 7
          %v1299 = vshll.u32 %v1257, 16
          %v1301 = vor.u32 %v1298, %v1299
          %v1302 = vrot.slane %v1298, 4
          %v1304 = vshrl.u32 %v1258, 16
          %v1306 = vrot.slane %v1304, 7
          %v1307 = vshll.u32 %v1258, 16
          %v1309 = vor.u32 %v1306, %v1307
          %v1310 = vsel %vm1277, %v1302, %v1309
          %v1311 = vrot.slane %v1306, 4
          %v1313 = vshrl.u32 %v1259, 16
          %v1315 = vrot.slane %v1313, 7
          %v1316 = vshll.u32 %v1259, 16
          %v1318 = vor.u32 %v1315, %v1316
          %v1319 = vrot.slane %v1315, 4
          %v1321 = vshrl.u32 %v1260, 16
          %v1323 = vrot.slane %v1321, 7
          %v1324 = vshll.u32 %v1260, 16
          %v1326 = vor.u32 %v1323, %v1324
          %v1327 = vsel %vm1277, %v1319, %v1326
          %v1328 = vrot.slane %v1323, 4
          %v1330 = vshrl.u32 %v1261, 16
          %v1332 = vrot.slane %v1330, 7
          %v1333 = vshll.u32 %v1261, 16
          %v1335 = vor.u32 %v1332, %v1333
          %v1336 = vrot.slane %v1332, 4
          %v1338 = vshrl.u32 %v1262, 16
          %v1340 = vrot.slane %v1338, 7
          %v1341 = vshll.u32 %v1262, 16
          %v1343 = vor.u32 %v1340, %v1341
          %v1344 = vsel %vm1277, %v1336, %v1343
          %v1345 = vrot.slane %v1340, 4
          %v1347 = vshrl.u32 %v1263, 16
          %v1349 = vrot.slane %v1347, 7
          %v1350 = vshll.u32 %v1263, 16
          %v1352 = vor.u32 %v1349, %v1350
          %v1353 = vrot.slane %v1349, 4
          %v1355 = vshrl.u32 %v1264, 16
          %v1357 = vrot.slane %v1355, 7
          %v1358 = vshll.u32 %v1264, 16
          %v1360 = vor.u32 %v1357, %v1358
          %v1361 = vsel %vm1277, %v1353, %v1360
          %v1362 = vrot.slane %v1357, 4
          %v1364 = vshrl.u32 %v1265, 16
          %v1366 = vrot.slane %v1364, 7
          %v1367 = vshll.u32 %v1265, 16
          %v1369 = vor.u32 %v1366, %v1367
          %v1370 = vrot.slane %v1366, 4
          %v1372 = vshrl.u32 %v1266, 16
          %v1374 = vrot.slane %v1372, 7
          %v1375 = vshll.u32 %v1266, 16
          %v1377 = vor.u32 %v1374, %v1375
          %v1378 = vsel %vm1277, %v1370, %v1377
          %v1379 = vrot.slane %v1374, 4
          %v1381 = vshrl.u32 %v1267, 16
          %v1383 = vrot.slane %v1381, 7
          %v1384 = vshll.u32 %v1267, 16
          %v1386 = vor.u32 %v1383, %v1384
          %v1387 = vrot.slane %v1383, 4
          %v1389 = vshrl.u32 %v1268, 16
          %v1391 = vrot.slane %v1389, 7
          %v1392 = vshll.u32 %v1268, 16
          %v1394 = vor.u32 %v1391, %v1392
          %v1395 = vsel %vm1277, %v1387, %v1394
          %v1396 = vrot.slane %v1391, 4
          %v1398 = vshrl.u32 %v1269, 16
          %v1400 = vrot.slane %v1398, 7
          %v1401 = vshll.u32 %v1269, 16
          %v1403 = vor.u32 %v1400, %v1401
          %v1404 = vrot.slane %v1400, 4
          %v1406 = vshrl.u32 %v1270, 16
          %v1408 = vrot.slane %v1406, 7
          %v1409 = vshll.u32 %v1270, 16
          %v1411 = vor.u32 %v1408, %v1409
          %v1412 = vsel %vm1277, %v1404, %v1411
          %v1413 = vrot.slane %v1408, 4
          %v1415 = vshrl.u32 %v1271, 16
          %v1417 = vrot.slane %v1415, 7
          %v1418 = vshll.u32 %v1271, 16
          %v1420 = vor.u32 %v1417, %v1418
          %v1421 = vrot.slane %v1417, 4
          %v1423 = vshrl.u32 %v1272, 16
          %v1425 = vrot.slane %v1423, 7
          %v1426 = vshll.u32 %v1272, 16
          %v1428 = vor.u32 %v1425, %v1426
          %v1429 = vsel %vm1277, %v1421, %v1428
          %v1430 = vrot.slane %v1425, 4
          %v1432 = vshrl.u32 %v1273, 16
          %v1434 = vrot.slane %v1432, 7
          %v1435 = vshll.u32 %v1273, 16
          %v1437 = vor.u32 %v1434, %v1435
          %v1438 = vrot.slane %v1434, 4
          %v1440 = vshrl.u32 %v1274, 16
          %v1442 = vrot.slane %v1440, 7
          %v1443 = vshll.u32 %v1274, 16
          %v1445 = vor.u32 %v1442, %v1443
          %v1446 = vsel %vm1277, %v1438, %v1445
          %v1447 = vrot.slane %v1442, 4
          %vm1478 = vcmask 519168
          %vm1479 = vsmask.f32 7938
          %vm1480 = vmand %vm1478, %vm1479
          %v1481 = vld [vmem:[#allocation3] sm:$0xf]
          %v1482 = vsel %vm1480, %v1284, %v1481
          %1483 = vst [vmem:[#allocation3] sm:$0xf] %v1482
          %vm1484 = vcmask 519168
          %1485 = vst.msk [vmem:[#allocation3 + $0x4] sm:$0xf] %vm1484, %v1293
          %vm1486 = vcmask 516096
          %vm1487 = vmand %vm1486, %vm1275
          %v1488 = vld [vmem:[#allocation3 + $0x8] sm:$0x1]
          %v1489 = vsel %vm1487, %v1294, %v1488
          %1490 = vst [vmem:[#allocation3 + $0x8] sm:$0x1] %v1489
          %v1491 = vld [vmem:[#allocation3 + $0xc] sm:$0xf]
          %v1492 = vsel %vm1480, %v1301, %v1491
          %1493 = vst [vmem:[#allocation3 + $0xc] sm:$0xf] %v1492
          %1494 = vst.msk [vmem:[#allocation3 + $0x10] sm:$0xf] %vm1484, %v1310
          %v1495 = vld [vmem:[#allocation3 + $0x14] sm:$0x1]
          %v1496 = vsel %vm1487, %v1311, %v1495
          %1497 = vst [vmem:[#allocation3 + $0x14] sm:$0x1] %v1496
          %v1498 = vld [vmem:[#allocation3 + $0x18] sm:$0xf]
          %v1499 = vsel %vm1480, %v1318, %v1498
          %1500 = vst [vmem:[#allocation3 + $0x18] sm:$0xf] %v1499
          %1501 = vst.msk [vmem:[#allocation3 + $0x1c] sm:$0xf] %vm1484, %v1327
          %v1502 = vld [vmem:[#allocation3 + $0x20] sm:$0x1]
          %v1503 = vsel %vm1487, %v1328, %v1502
          %1504 = vst [vmem:[#allocation3 + $0x20] sm:$0x1] %v1503
          %v1505 = vld [vmem:[#allocation3 + $0x24] sm:$0xf]
          %v1506 = vsel %vm1480, %v1335, %v1505
          %1507 = vst [vmem:[#allocation3 + $0x24] sm:$0xf] %v1506
          %1508 = vst.msk [vmem:[#allocation3 + $0x28] sm:$0xf] %vm1484, %v1344
          %v1509 = vld [vmem:[#allocation3 + $0x2c] sm:$0x1]
          %v1510 = vsel %vm1487, %v1345, %v1509
          %1511 = vst [vmem:[#allocation3 + $0x2c] sm:$0x1] %v1510
          %v1512 = vld [vmem:[#allocation3 + $0x30] sm:$0xf]
          %v1513 = vsel %vm1480, %v1352, %v1512
          %1514 = vst [vmem:[#allocation3 + $0x30] sm:$0xf] %v1513
          %1515 = vst.msk [vmem:[#allocation3 + $0x34] sm:$0xf] %vm1484, %v1361
          %v1516 = vld [vmem:[#allocation3 + $0x38] sm:$0x1]
          %v1517 = vsel %vm1487, %v1362, %v1516
          %1518 = vst [vmem:[#allocation3 + $0x38] sm:$0x1] %v1517
          %v1519 = vld [vmem:[#allocation3 + $0x3c] sm:$0xf]
          %v1520 = vsel %vm1480, %v1369, %v1519
          %1521 = vst [vmem:[#allocation3 + $0x3c] sm:$0xf] %v1520
          %1522 = vst.msk [vmem:[#allocation3 + $0x40] sm:$0xf] %vm1484, %v1378
          %v1523 = vld [vmem:[#allocation3 + $0x44] sm:$0x1]
          %v1524 = vsel %vm1487, %v1379, %v1523
          %1525 = vst [vmem:[#allocation3 + $0x44] sm:$0x1] %v1524
          %v1526 = vld [vmem:[#allocation3 + $0x48] sm:$0xf]
          %v1527 = vsel %vm1480, %v1386, %v1526
          %1528 = vst [vmem:[#allocation3 + $0x48] sm:$0xf] %v1527
          %1529 = vst.msk [vmem:[#allocation3 + $0x4c] sm:$0xf] %vm1484, %v1395
          %v1530 = vld [vmem:[#allocation3 + $0x50] sm:$0x1]
          %v1531 = vsel %vm1487, %v1396, %v1530
          %1532 = vst [vmem:[#allocation3 + $0x50] sm:$0x1] %v1531
          %v1533 = vld [vmem:[#allocation3 + $0x54] sm:$0xf]
          %v1534 = vsel %vm1480, %v1403, %v1533
          %1535 = vst [vmem:[#allocation3 + $0x54] sm:$0xf] %v1534
          %1536 = vst.msk [vmem:[#allocation3 + $0x58] sm:$0xf] %vm1484, %v1412
          %v1537 = vld [vmem:[#allocation3 + $0x5c] sm:$0x1]
          %v1538 = vsel %vm1487, %v1413, %v1537
          %1539 = vst [vmem:[#allocation3 + $0x5c] sm:$0x1] %v1538
          %v1540 = vld [vmem:[#allocation3 + $0x60] sm:$0xf]
          %v1541 = vsel %vm1480, %v1420, %v1540
          %1542 = vst [vmem:[#allocation3 + $0x60] sm:$0xf] %v1541
          %1543 = vst.msk [vmem:[#allocation3 + $0x64] sm:$0xf] %vm1484, %v1429
          %v1544 = vld [vmem:[#allocation3 + $0x68] sm:$0x1]
          %v1545 = vsel %vm1487, %v1430, %v1544
          %1546 = vst [vmem:[#allocation3 + $0x68] sm:$0x1] %v1545
          %v1547 = vld [vmem:[#allocation3 + $0x6c] sm:$0xf]
          %v1548 = vsel %vm1480, %v1437, %v1547
          %1549 = vst [vmem:[#allocation3 + $0x6c] sm:$0xf] %v1548
          %1550 = vst.msk [vmem:[#allocation3 + $0x70] sm:$0xf] %vm1484, %v1446
          %v1551 = vld [vmem:[#allocation3 + $0x74] sm:$0x1]
          %v1552 = vsel %vm1487, %v1447, %v1551
          %1553 = vst [vmem:[#allocation3 + $0x74] sm:$0x1] %v1552
          %v1554 = vld [vmem:[#allocation3] sm:$0x1]
          %v1555 = vsel %vm1487, 0, %v1554
          %1556 = vst [vmem:[#allocation3] sm:$0x1] %v1555
          %v1557 = vld [vmem:[#allocation3 + $0xc] sm:$0x1]
          %v1558 = vsel %vm1487, 0, %v1557
          %1559 = vst [vmem:[#allocation3 + $0xc] sm:$0x1] %v1558
          %v1560 = vld [vmem:[#allocation3 + $0x18] sm:$0x1]
          %v1561 = vsel %vm1487, 0, %v1560
          %1562 = vst [vmem:[#allocation3 + $0x18] sm:$0x1] %v1561
          %v1563 = vld [vmem:[#allocation3 + $0x24] sm:$0x1]
          %v1564 = vsel %vm1487, 0, %v1563
          %1565 = vst [vmem:[#allocation3 + $0x24] sm:$0x1] %v1564
          %v1566 = vld [vmem:[#allocation3 + $0x30] sm:$0x1]
          %v1567 = vsel %vm1487, 0, %v1566
          %1568 = vst [vmem:[#allocation3 + $0x30] sm:$0x1] %v1567
          %v1569 = vld [vmem:[#allocation3 + $0x3c] sm:$0x1]
          %v1570 = vsel %vm1487, 0, %v1569
          %1571 = vst [vmem:[#allocation3 + $0x3c] sm:$0x1] %v1570
          %v1572 = vld [vmem:[#allocation3 + $0x48] sm:$0x1]
          %v1573 = vsel %vm1487, 0, %v1572
          %1574 = vst [vmem:[#allocation3 + $0x48] sm:$0x1] %v1573
          %v1575 = vld [vmem:[#allocation3 + $0x54] sm:$0x1]
          %v1576 = vsel %vm1487, 0, %v1575
          %1577 = vst [vmem:[#allocation3 + $0x54] sm:$0x1] %v1576
          %v1578 = vld [vmem:[#allocation3 + $0x60] sm:$0x1]
          %v1579 = vsel %vm1487, 0, %v1578
          %1580 = vst [vmem:[#allocation3 + $0x60] sm:$0x1] %v1579
          %v1581 = vld [vmem:[#allocation3 + $0x6c] sm:$0x1]
          %v1582 = vsel %vm1487, 0, %v1581
          %1583 = vst [vmem:[#allocation3 + $0x6c] sm:$0x1] %v1582
          %vm1584 = vmand %vm1486, %vm1479
          %v1585 = vld [vmem:[#allocation3 + $0x8] sm:$0x1]
          %v1586 = vsel %vm1584, 0, %v1585
          %1587 = vst [vmem:[#allocation3 + $0x8] sm:$0x1] %v1586
          %v1588 = vld [vmem:[#allocation3 + $0x14] sm:$0x1]
          %v1589 = vsel %vm1584, 0, %v1588
          %1590 = vst [vmem:[#allocation3 + $0x14] sm:$0x1] %v1589
          %v1591 = vld [vmem:[#allocation3 + $0x20] sm:$0x1]
          %v1592 = vsel %vm1584, 0, %v1591
          %1593 = vst [vmem:[#allocation3 + $0x20] sm:$0x1] %v1592
          %v1594 = vld [vmem:[#allocation3 + $0x2c] sm:$0x1]
          %v1595 = vsel %vm1584, 0, %v1594
          %1596 = vst [vmem:[#allocation3 + $0x2c] sm:$0x1] %v1595
          %v1597 = vld [vmem:[#allocation3 + $0x38] sm:$0x1]
          %v1598 = vsel %vm1584, 0, %v1597
          %1599 = vst [vmem:[#allocation3 + $0x38] sm:$0x1] %v1598
          %v1600 = vld [vmem:[#allocation3 + $0x44] sm:$0x1]
          %v1601 = vsel %vm1584, 0, %v1600
          %1602 = vst [vmem:[#allocation3 + $0x44] sm:$0x1] %v1601
          %v1603 = vld [vmem:[#allocation3 + $0x50] sm:$0x1]
          %v1604 = vsel %vm1584, 0, %v1603
          %1605 = vst [vmem:[#allocation3 + $0x50] sm:$0x1] %v1604
          %v1606 = vld [vmem:[#allocation3 + $0x5c] sm:$0x1]
          %v1607 = vsel %vm1584, 0, %v1606
          %1608 = vst [vmem:[#allocation3 + $0x5c] sm:$0x1] %v1607
          %v1609 = vld [vmem:[#allocation3 + $0x68] sm:$0x1]
          %v1610 = vsel %vm1584, 0, %v1609
          %1611 = vst [vmem:[#allocation3 + $0x68] sm:$0x1] %v1610
          %v1612 = vld [vmem:[#allocation3 + $0x74] sm:$0x1]
          %v1613 = vsel %vm1584, 0, %v1612
          %1614 = vst [vmem:[#allocation3 + $0x74] sm:$0x1] %v1613
          %v1615 = vld [vmem:[#allocation3] sm:$0xf]
          %v1616 = vld [vmem:[#allocation3 + $0x4] sm:$0xf]
          %v1617 = vld [vmem:[#allocation3 + $0xc] sm:$0xf]
          %v1618 = vld [vmem:[#allocation3 + $0x10] sm:$0xf]
          %v1619 = vld [vmem:[#allocation3 + $0x18] sm:$0xf]
          %v1620 = vld [vmem:[#allocation3 + $0x1c] sm:$0xf]
          %v1621 = vld [vmem:[#allocation3 + $0x24] sm:$0xf]
          %v1622 = vld [vmem:[#allocation3 + $0x28] sm:$0xf]
          %v1623 = vld [vmem:[#allocation3 + $0x30] sm:$0xf]
          %v1624 = vld [vmem:[#allocation3 + $0x34] sm:$0xf]
          %v1625 = vld [vmem:[#allocation3 + $0x3c] sm:$0xf]
          %v1626 = vld [vmem:[#allocation3 + $0x40] sm:$0xf]
          %v1627 = vld [vmem:[#allocation3 + $0x48] sm:$0xf]
          %v1628 = vld [vmem:[#allocation3 + $0x4c] sm:$0xf]
          %v1629 = vld [vmem:[#allocation3 + $0x54] sm:$0xf]
          %v1630 = vld [vmem:[#allocation3 + $0x58] sm:$0xf]
          %v1631 = vld [vmem:[#allocation3 + $0x8] sm:$0x1]
          %v1632 = vld [vmem:[#allocation3 + $0x14] sm:$0x1]
          %v1633 = vld [vmem:[#allocation3 + $0x20] sm:$0x1]
          %v1634 = vld [vmem:[#allocation3 + $0x2c] sm:$0x1]
          %v1635 = vld [vmem:[#allocation3 + $0x38] sm:$0x1]
          %v1636 = vld [vmem:[#allocation3 + $0x44] sm:$0x1]
          %v1637 = vld [vmem:[#allocation3 + $0x50] sm:$0x1]
          %v1638 = vld [vmem:[#allocation3 + $0x5c] sm:$0x1]
          %v1639 = vld [vmem:[#allocation3] sm:$0xe]
          %v1640 = vld [vmem:[#allocation3 + $0xc] sm:$0xe]
          %v1641 = vld [vmem:[#allocation3 + $0x18] sm:$0xe]
          %v1642 = vld [vmem:[#allocation3 + $0x24] sm:$0xe]
          %v1643 = vld [vmem:[#allocation3 + $0x30] sm:$0xe]
          %v1644 = vld [vmem:[#allocation3 + $0x3c] sm:$0xe]
          %v1645 = vld [vmem:[#allocation3 + $0x48] sm:$0xe]
          %v1646 = vld [vmem:[#allocation3 + $0x54] sm:$0xe]
          %s1647 = scalar_lea.vmem [#allocation3], 12
          %v1648 = vld [vmem:[%s1647] sm:$0xf]
          %v1649 = vld [vmem:[%s1647 + $0x4] sm:$0xf]
          %v1650 = vld [vmem:[%s1647 + $0xc] sm:$0xf]
          %v1651 = vld [vmem:[%s1647 + $0x10] sm:$0xf]
          %v1652 = vld [vmem:[%s1647 + $0x18] sm:$0xf]
          %v1653 = vld [vmem:[%s1647 + $0x1c] sm:$0xf]
          %v1654 = vld [vmem:[%s1647 + $0x24] sm:$0xf]
          %v1655 = vld [vmem:[%s1647 + $0x28] sm:$0xf]
          %v1656 = vld [vmem:[%s1647 + $0x30] sm:$0xf]
          %v1657 = vld [vmem:[%s1647 + $0x34] sm:$0xf]
          %v1658 = vld [vmem:[%s1647 + $0x3c] sm:$0xf]
          %v1659 = vld [vmem:[%s1647 + $0x40] sm:$0xf]
          %v1660 = vld [vmem:[%s1647 + $0x48] sm:$0xf]
          %v1661 = vld [vmem:[%s1647 + $0x4c] sm:$0xf]
          %v1662 = vld [vmem:[%s1647 + $0x54] sm:$0xf]
          %v1663 = vld [vmem:[%s1647 + $0x58] sm:$0xf]
          %v1664 = vld [vmem:[%s1647 + $0x8] sm:$0x1]
          %v1665 = vld [vmem:[%s1647 + $0x14] sm:$0x1]
          %v1666 = vld [vmem:[%s1647 + $0x20] sm:$0x1]
          %v1667 = vld [vmem:[%s1647 + $0x2c] sm:$0x1]
          %v1668 = vld [vmem:[%s1647 + $0x38] sm:$0x1]
          %v1669 = vld [vmem:[%s1647 + $0x44] sm:$0x1]
          %v1670 = vld [vmem:[%s1647 + $0x50] sm:$0x1]
          %v1671 = vld [vmem:[%s1647 + $0x5c] sm:$0x1]
          %v1672 = vld [vmem:[%s1647] sm:$0xe]
          %v1673 = vld [vmem:[%s1647 + $0xc] sm:$0xe]
          %v1674 = vld [vmem:[%s1647 + $0x18] sm:$0xe]
          %v1675 = vld [vmem:[%s1647 + $0x24] sm:$0xe]
          %v1676 = vld [vmem:[%s1647 + $0x30] sm:$0xe]
          %v1677 = vld [vmem:[%s1647 + $0x3c] sm:$0xe]
          %v1678 = vld [vmem:[%s1647 + $0x48] sm:$0xe]
          %v1679 = vld [vmem:[%s1647 + $0x54] sm:$0xe]
          %s1680 = scalar_lea.vmem [#allocation3], 24
          %v1681 = vld [vmem:[%s1680] sm:$0xf]
          %v1682 = vld [vmem:[%s1680 + $0x4] sm:$0xf]
          %v1683 = vld [vmem:[%s1680 + $0xc] sm:$0xf]
          %v1684 = vld [vmem:[%s1680 + $0x10] sm:$0xf]
          %v1685 = vld [vmem:[%s1680 + $0x18] sm:$0xf]
          %v1686 = vld [vmem:[%s1680 + $0x1c] sm:$0xf]
          %v1687 = vld [vmem:[%s1680 + $0x24] sm:$0xf]
          %v1688 = vld [vmem:[%s1680 + $0x28] sm:$0xf]
          %v1689 = vld [vmem:[%s1680 + $0x30] sm:$0xf]
          %v1690 = vld [vmem:[%s1680 + $0x34] sm:$0xf]
          %v1691 = vld [vmem:[%s1680 + $0x3c] sm:$0xf]
          %v1692 = vld [vmem:[%s1680 + $0x40] sm:$0xf]
          %v1693 = vld [vmem:[%s1680 + $0x48] sm:$0xf]
          %v1694 = vld [vmem:[%s1680 + $0x4c] sm:$0xf]
          %v1695 = vld [vmem:[%s1680 + $0x54] sm:$0xf]
          %v1696 = vld [vmem:[%s1680 + $0x58] sm:$0xf]
          %v1697 = vld [vmem:[%s1680 + $0x8] sm:$0x1]
          %v1698 = vld [vmem:[%s1680 + $0x14] sm:$0x1]
          %v1699 = vld [vmem:[%s1680 + $0x20] sm:$0x1]
          %v1700 = vld [vmem:[%s1680 + $0x2c] sm:$0x1]
          %v1701 = vld [vmem:[%s1680 + $0x38] sm:$0x1]
          %v1702 = vld [vmem:[%s1680 + $0x44] sm:$0x1]
          %v1703 = vld [vmem:[%s1680 + $0x50] sm:$0x1]
          %v1704 = vld [vmem:[%s1680 + $0x5c] sm:$0x1]
          %v1705 = vld [vmem:[%s1680] sm:$0xe]
          %v1706 = vld [vmem:[%s1680 + $0xc] sm:$0xe]
          %v1707 = vld [vmem:[%s1680 + $0x18] sm:$0xe]
          %v1708 = vld [vmem:[%s1680 + $0x24] sm:$0xe]
          %v1709 = vld [vmem:[%s1680 + $0x30] sm:$0xe]
          %v1710 = vld [vmem:[%s1680 + $0x3c] sm:$0xe]
          %v1711 = vld [vmem:[%s1680 + $0x48] sm:$0xe]
          %v1712 = vld [vmem:[%s1680 + $0x54] sm:$0xe]
          %v1729 = vunpack.c.l.b16 %v1615
          %v1730 = vunpack.c.l.b16 %v1616
          %v1731 = vunpack.c.l.b16 %v1617
          %v1732 = vunpack.c.l.b16 %v1618
          %v1733 = vunpack.c.l.b16 %v1619
          %v1734 = vunpack.c.l.b16 %v1620
          %v1735 = vunpack.c.l.b16 %v1621
          %v1736 = vunpack.c.l.b16 %v1622
          %v1737 = vunpack.c.l.b16 %v1623
          %v1738 = vunpack.c.l.b16 %v1624
          %v1739 = vunpack.c.l.b16 %v1625
          %v1740 = vunpack.c.l.b16 %v1626
          %v1741 = vunpack.c.l.b16 %v1627
          %v1742 = vunpack.c.l.b16 %v1628
          %v1743 = vunpack.c.l.b16 %v1629
          %v1744 = vunpack.c.l.b16 %v1630
          %v1745 = vpack.c.b16 %v1730, %v1729
          %v1746 = vpack.c.b16 %v1732, %v1731
          %v1747 = vpack.c.b16 %v1734, %v1733
          %v1748 = vpack.c.b16 %v1736, %v1735
          %v1749 = vpack.c.b16 %v1738, %v1737
          %v1750 = vpack.c.b16 %v1740, %v1739
          %v1751 = vpack.c.b16 %v1742, %v1741
          %v1752 = vpack.c.b16 %v1744, %v1743
          %v1761 = vunpack.c.l.b16 %v1631
          %v1762 = vunpack.c.l.b16 %v1632
          %v1763 = vunpack.c.l.b16 %v1633
          %v1764 = vunpack.c.l.b16 %v1634
          %v1765 = vunpack.c.l.b16 %v1635
          %v1766 = vunpack.c.l.b16 %v1636
          %v1767 = vunpack.c.l.b16 %v1637
          %v1768 = vunpack.c.l.b16 %v1638
          %v1769 = vpack.c.b16 %v1761, %v1761
          %v1770 = vpack.c.b16 %v1762, %v1762
          %v1771 = vpack.c.b16 %v1763, %v1763
          %v1772 = vpack.c.b16 %v1764, %v1764
          %v1773 = vpack.c.b16 %v1765, %v1765
          %v1774 = vpack.c.b16 %v1766, %v1766
          %v1775 = vpack.c.b16 %v1767, %v1767
          %v1776 = vpack.c.b16 %v1768, %v1768
          %vm1777 = vsmask.f32 7424
          %v1779 = vshrl.u32 %v1745, 16
          %v1781 = vshll.u32 %v1745, 16
          %v1783 = vrot.slane %v1781, 1
          %v1784 = vor.u32 %v1779, %v1783
          %v1786 = vshll.u32 %v1769, 16
          %v1788 = vrot.slane %v1786, 1
          %v1789 = vsel %vm1777, %v1784, %v1788
          %v1791 = vshrl.u32 %v1746, 16
          %v1793 = vshll.u32 %v1746, 16
          %v1795 = vrot.slane %v1793, 1
          %v1796 = vor.u32 %v1791, %v1795
          %v1798 = vshll.u32 %v1770, 16
          %v1800 = vrot.slane %v1798, 1
          %v1801 = vsel %vm1777, %v1796, %v1800
          %v1803 = vshrl.u32 %v1747, 16
          %v1805 = vshll.u32 %v1747, 16
          %v1807 = vrot.slane %v1805, 1
          %v1808 = vor.u32 %v1803, %v1807
          %v1810 = vshll.u32 %v1771, 16
          %v1812 = vrot.slane %v1810, 1
          %v1813 = vsel %vm1777, %v1808, %v1812
          %v1815 = vshrl.u32 %v1748, 16
          %v1817 = vshll.u32 %v1748, 16
          %v1819 = vrot.slane %v1817, 1
          %v1820 = vor.u32 %v1815, %v1819
          %v1822 = vshll.u32 %v1772, 16
          %v1824 = vrot.slane %v1822, 1
          %v1825 = vsel %vm1777, %v1820, %v1824
          %v1827 = vshrl.u32 %v1749, 16
          %v1829 = vshll.u32 %v1749, 16
          %v1831 = vrot.slane %v1829, 1
          %v1832 = vor.u32 %v1827, %v1831
          %v1834 = vshll.u32 %v1773, 16
          %v1836 = vrot.slane %v1834, 1
          %v1837 = vsel %vm1777, %v1832, %v1836
          %v1839 = vshrl.u32 %v1750, 16
          %v1841 = vshll.u32 %v1750, 16
          %v1843 = vrot.slane %v1841, 1
          %v1844 = vor.u32 %v1839, %v1843
          %v1846 = vshll.u32 %v1774, 16
          %v1848 = vrot.slane %v1846, 1
          %v1849 = vsel %vm1777, %v1844, %v1848
          %v1851 = vshrl.u32 %v1751, 16
          %v1853 = vshll.u32 %v1751, 16
          %v1855 = vrot.slane %v1853, 1
          %v1856 = vor.u32 %v1851, %v1855
          %v1858 = vshll.u32 %v1775, 16
          %v1860 = vrot.slane %v1858, 1
          %v1861 = vsel %vm1777, %v1856, %v1860
          %v1863 = vshrl.u32 %v1752, 16
          %v1865 = vshll.u32 %v1752, 16
          %v1867 = vrot.slane %v1865, 1
          %v1868 = vor.u32 %v1863, %v1867
          %v1870 = vshll.u32 %v1776, 16
          %v1872 = vrot.slane %v1870, 1
          %v1873 = vsel %vm1777, %v1868, %v1872
          %1874 = vrot.lane.b32.xlu0 %v1789, 64
          %v1875 = vpop.permute.xlu0 %1874
          %1876 = vrot.lane.b32.xlu0 %v1801, 64
          %v1877 = vpop.permute.xlu0 %1876
          %1878 = vrot.lane.b32.xlu0 %v1813, 64
          %v1879 = vpop.permute.xlu0 %1878
          %1880 = vrot.lane.b32.xlu0 %v1825, 64
          %v1881 = vpop.permute.xlu0 %1880
          %1882 = vrot.lane.b32.xlu0 %v1837, 64
          %v1883 = vpop.permute.xlu0 %1882
          %1884 = vrot.lane.b32.xlu0 %v1849, 64
          %v1885 = vpop.permute.xlu0 %1884
          %1886 = vrot.lane.b32.xlu0 %v1861, 64
          %v1887 = vpop.permute.xlu0 %1886
          %1888 = vrot.lane.b32.xlu0 %v1873, 64
          %v1889 = vpop.permute.xlu0 %1888
          %v1898 = vunpack.c.l.b16 %v1639
          %v1899 = vunpack.c.l.b16 %v1640
          %v1900 = vunpack.c.l.b16 %v1641
          %v1901 = vunpack.c.l.b16 %v1642
          %v1902 = vunpack.c.l.b16 %v1643
          %v1903 = vunpack.c.l.b16 %v1644
          %v1904 = vunpack.c.l.b16 %v1645
          %v1905 = vunpack.c.l.b16 %v1646
          %v1906 = vpack.c.b16 %v1730, %v1898
          %v1907 = vpack.c.b16 %v1732, %v1899
          %v1908 = vpack.c.b16 %v1734, %v1900
          %v1909 = vpack.c.b16 %v1736, %v1901
          %v1910 = vpack.c.b16 %v1738, %v1902
          %v1911 = vpack.c.b16 %v1740, %v1903
          %v1912 = vpack.c.b16 %v1742, %v1904
          %v1913 = vpack.c.b16 %v1744, %v1905
          %vm1914 = vcmask 1046528
          %v1915 = vrot.slane %v1906, 1
          %v1916 = vrot.slane %v1769, 1
          %v1917 = vsel %vm1914, %v1915, %v1916
          %v1918 = vrot.slane %v1907, 1
          %v1919 = vrot.slane %v1770, 1
          %v1920 = vsel %vm1914, %v1918, %v1919
          %v1921 = vrot.slane %v1908, 1
          %v1922 = vrot.slane %v1771, 1
          %v1923 = vsel %vm1914, %v1921, %v1922
          %v1924 = vrot.slane %v1909, 1
          %v1925 = vrot.slane %v1772, 1
          %v1926 = vsel %vm1914, %v1924, %v1925
          %v1927 = vrot.slane %v1910, 1
          %v1928 = vrot.slane %v1773, 1
          %v1929 = vsel %vm1914, %v1927, %v1928
          %v1930 = vrot.slane %v1911, 1
          %v1931 = vrot.slane %v1774, 1
          %v1932 = vsel %vm1914, %v1930, %v1931
          %v1933 = vrot.slane %v1912, 1
          %v1934 = vrot.slane %v1775, 1
          %v1935 = vsel %vm1914, %v1933, %v1934
          %v1936 = vrot.slane %v1913, 1
          %v1937 = vrot.slane %v1776, 1
          %v1938 = vsel %vm1914, %v1936, %v1937
          %v1955 = vunpack.c.l.b16 %v1648
          %v1956 = vunpack.c.l.b16 %v1649
          %v1957 = vunpack.c.l.b16 %v1650
          %v1958 = vunpack.c.l.b16 %v1651
          %v1959 = vunpack.c.l.b16 %v1652
          %v1960 = vunpack.c.l.b16 %v1653
          %v1961 = vunpack.c.l.b16 %v1654
          %v1962 = vunpack.c.l.b16 %v1655
          %v1963 = vunpack.c.l.b16 %v1656
          %v1964 = vunpack.c.l.b16 %v1657
          %v1965 = vunpack.c.l.b16 %v1658
          %v1966 = vunpack.c.l.b16 %v1659
          %v1967 = vunpack.c.l.b16 %v1660
          %v1968 = vunpack.c.l.b16 %v1661
          %v1969 = vunpack.c.l.b16 %v1662
          %v1970 = vunpack.c.l.b16 %v1663
          %v1971 = vpack.c.b16 %v1956, %v1955
          %v1972 = vpack.c.b16 %v1958, %v1957
          %v1973 = vpack.c.b16 %v1960, %v1959
          %v1974 = vpack.c.b16 %v1962, %v1961
          %v1975 = vpack.c.b16 %v1964, %v1963
          %v1976 = vpack.c.b16 %v1966, %v1965
          %v1977 = vpack.c.b16 %v1968, %v1967
          %v1978 = vpack.c.b16 %v1970, %v1969
          %1979 = vrot.lane.b32.xlu0 %v1971, 64
          %v1980 = vpop.permute.xlu0 %1979
          %1981 = vrot.lane.b32.xlu0 %v1972, 64
          %v1982 = vpop.permute.xlu0 %1981
          %1983 = vrot.lane.b32.xlu0 %v1973, 64
          %v1984 = vpop.permute.xlu0 %1983
          %1985 = vrot.lane.b32.xlu0 %v1974, 64
          %v1986 = vpop.permute.xlu0 %1985
          %1987 = vrot.lane.b32.xlu0 %v1975, 64
          %v1988 = vpop.permute.xlu0 %1987
          %1989 = vrot.lane.b32.xlu0 %v1976, 64
          %v1990 = vpop.permute.xlu0 %1989
          %1991 = vrot.lane.b32.xlu0 %v1977, 64
          %v1992 = vpop.permute.xlu0 %1991
          %1993 = vrot.lane.b32.xlu0 %v1978, 64
          %v1994 = vpop.permute.xlu0 %1993
          %v2003 = vunpack.c.l.b16 %v1664
          %v2004 = vunpack.c.l.b16 %v1665
          %v2005 = vunpack.c.l.b16 %v1666
          %v2006 = vunpack.c.l.b16 %v1667
          %v2007 = vunpack.c.l.b16 %v1668
          %v2008 = vunpack.c.l.b16 %v1669
          %v2009 = vunpack.c.l.b16 %v1670
          %v2010 = vunpack.c.l.b16 %v1671
          %v2011 = vpack.c.b16 %v2003, %v2003
          %v2012 = vpack.c.b16 %v2004, %v2004
          %v2013 = vpack.c.b16 %v2005, %v2005
          %v2014 = vpack.c.b16 %v2006, %v2006
          %v2015 = vpack.c.b16 %v2007, %v2007
          %v2016 = vpack.c.b16 %v2008, %v2008
          %v2017 = vpack.c.b16 %v2009, %v2009
          %v2018 = vpack.c.b16 %v2010, %v2010
          %v2020 = vshrl.u32 %v1971, 16
          %v2022 = vshll.u32 %v1971, 16
          %v2024 = vrot.slane %v2022, 1
          %v2025 = vor.u32 %v2020, %v2024
          %v2027 = vshll.u32 %v2011, 16
          %v2029 = vrot.slane %v2027, 1
          %v2030 = vsel %vm1777, %v2025, %v2029
          %v2032 = vshrl.u32 %v1972, 16
          %v2034 = vshll.u32 %v1972, 16
          %v2036 = vrot.slane %v2034, 1
          %v2037 = vor.u32 %v2032, %v2036
          %v2039 = vshll.u32 %v2012, 16
          %v2041 = vrot.slane %v2039, 1
          %v2042 = vsel %vm1777, %v2037, %v2041
          %v2044 = vshrl.u32 %v1973, 16
          %v2046 = vshll.u32 %v1973, 16
          %v2048 = vrot.slane %v2046, 1
          %v2049 = vor.u32 %v2044, %v2048
          %v2051 = vshll.u32 %v2013, 16
          %v2053 = vrot.slane %v2051, 1
          %v2054 = vsel %vm1777, %v2049, %v2053
          %v2056 = vshrl.u32 %v1974, 16
          %v2058 = vshll.u32 %v1974, 16
          %v2060 = vrot.slane %v2058, 1
          %v2061 = vor.u32 %v2056, %v2060
          %v2063 = vshll.u32 %v2014, 16
          %v2065 = vrot.slane %v2063, 1
          %v2066 = vsel %vm1777, %v2061, %v2065
          %v2068 = vshrl.u32 %v1975, 16
          %v2070 = vshll.u32 %v1975, 16
          %v2072 = vrot.slane %v2070, 1
          %v2073 = vor.u32 %v2068, %v2072
          %v2075 = vshll.u32 %v2015, 16
          %v2077 = vrot.slane %v2075, 1
          %v2078 = vsel %vm1777, %v2073, %v2077
          %v2080 = vshrl.u32 %v1976, 16
          %v2082 = vshll.u32 %v1976, 16
          %v2084 = vrot.slane %v2082, 1
          %v2085 = vor.u32 %v2080, %v2084
          %v2087 = vshll.u32 %v2016, 16
          %v2089 = vrot.slane %v2087, 1
          %v2090 = vsel %vm1777, %v2085, %v2089
          %v2092 = vshrl.u32 %v1977, 16
          %v2094 = vshll.u32 %v1977, 16
          %v2096 = vrot.slane %v2094, 1
          %v2097 = vor.u32 %v2092, %v2096
          %v2099 = vshll.u32 %v2017, 16
          %v2101 = vrot.slane %v2099, 1
          %v2102 = vsel %vm1777, %v2097, %v2101
          %v2104 = vshrl.u32 %v1978, 16
          %v2106 = vshll.u32 %v1978, 16
          %v2108 = vrot.slane %v2106, 1
          %v2109 = vor.u32 %v2104, %v2108
          %v2111 = vshll.u32 %v2018, 16
          %v2113 = vrot.slane %v2111, 1
          %v2114 = vsel %vm1777, %v2109, %v2113
          %v2123 = vunpack.c.l.b16 %v1672
          %v2124 = vunpack.c.l.b16 %v1673
          %v2125 = vunpack.c.l.b16 %v1674
          %v2126 = vunpack.c.l.b16 %v1675
          %v2127 = vunpack.c.l.b16 %v1676
          %v2128 = vunpack.c.l.b16 %v1677
          %v2129 = vunpack.c.l.b16 %v1678
          %v2130 = vunpack.c.l.b16 %v1679
          %v2131 = vpack.c.b16 %v1956, %v2123
          %v2132 = vpack.c.b16 %v1958, %v2124
          %v2133 = vpack.c.b16 %v1960, %v2125
          %v2134 = vpack.c.b16 %v1962, %v2126
          %v2135 = vpack.c.b16 %v1964, %v2127
          %v2136 = vpack.c.b16 %v1966, %v2128
          %v2137 = vpack.c.b16 %v1968, %v2129
          %v2138 = vpack.c.b16 %v1970, %v2130
          %v2139 = vrot.slane %v2131, 1
          %v2140 = vrot.slane %v2011, 1
          %v2141 = vsel %vm1914, %v2139, %v2140
          %v2142 = vrot.slane %v2132, 1
          %v2143 = vrot.slane %v2012, 1
          %v2144 = vsel %vm1914, %v2142, %v2143
          %v2145 = vrot.slane %v2133, 1
          %v2146 = vrot.slane %v2013, 1
          %v2147 = vsel %vm1914, %v2145, %v2146
          %v2148 = vrot.slane %v2134, 1
          %v2149 = vrot.slane %v2014, 1
          %v2150 = vsel %vm1914, %v2148, %v2149
          %v2151 = vrot.slane %v2135, 1
          %v2152 = vrot.slane %v2015, 1
          %v2153 = vsel %vm1914, %v2151, %v2152
          %v2154 = vrot.slane %v2136, 1
          %v2155 = vrot.slane %v2016, 1
          %v2156 = vsel %vm1914, %v2154, %v2155
          %v2157 = vrot.slane %v2137, 1
          %v2158 = vrot.slane %v2017, 1
          %v2159 = vsel %vm1914, %v2157, %v2158
          %v2160 = vrot.slane %v2138, 1
          %v2161 = vrot.slane %v2018, 1
          %v2162 = vsel %vm1914, %v2160, %v2161
          %2163 = vrot.lane.b32.xlu0 %v2141, 64
          %v2164 = vpop.permute.xlu0 %2163
          %2165 = vrot.lane.b32.xlu0 %v2144, 64
          %v2166 = vpop.permute.xlu0 %2165
          %2167 = vrot.lane.b32.xlu0 %v2147, 64
          %v2168 = vpop.permute.xlu0 %2167
          %2169 = vrot.lane.b32.xlu0 %v2150, 64
          %v2170 = vpop.permute.xlu0 %2169
          %2171 = vrot.lane.b32.xlu0 %v2153, 64
          %v2172 = vpop.permute.xlu0 %2171
          %2173 = vrot.lane.b32.xlu0 %v2156, 64
          %v2174 = vpop.permute.xlu0 %2173
          %2175 = vrot.lane.b32.xlu0 %v2159, 64
          %v2176 = vpop.permute.xlu0 %2175
          %2177 = vrot.lane.b32.xlu0 %v2162, 64
          %v2178 = vpop.permute.xlu0 %2177
          %v2195 = vunpack.c.l.b16 %v1681
          %v2196 = vunpack.c.l.b16 %v1682
          %v2197 = vunpack.c.l.b16 %v1683
          %v2198 = vunpack.c.l.b16 %v1684
          %v2199 = vunpack.c.l.b16 %v1685
          %v2200 = vunpack.c.l.b16 %v1686
          %v2201 = vunpack.c.l.b16 %v1687
          %v2202 = vunpack.c.l.b16 %v1688
          %v2203 = vunpack.c.l.b16 %v1689
          %v2204 = vunpack.c.l.b16 %v1690
          %v2205 = vunpack.c.l.b16 %v1691
          %v2206 = vunpack.c.l.b16 %v1692
          %v2207 = vunpack.c.l.b16 %v1693
          %v2208 = vunpack.c.l.b16 %v1694
          %v2209 = vunpack.c.l.b16 %v1695
          %v2210 = vunpack.c.l.b16 %v1696
          %v2211 = vpack.c.b16 %v2196, %v2195
          %v2212 = vpack.c.b16 %v2198, %v2197
          %v2213 = vpack.c.b16 %v2200, %v2199
          %v2214 = vpack.c.b16 %v2202, %v2201
          %v2215 = vpack.c.b16 %v2204, %v2203
          %v2216 = vpack.c.b16 %v2206, %v2205
          %v2217 = vpack.c.b16 %v2208, %v2207
          %v2218 = vpack.c.b16 %v2210, %v2209
          %v2227 = vunpack.c.l.b16 %v1697
          %v2228 = vunpack.c.l.b16 %v1698
          %v2229 = vunpack.c.l.b16 %v1699
          %v2230 = vunpack.c.l.b16 %v1700
          %v2231 = vunpack.c.l.b16 %v1701
          %v2232 = vunpack.c.l.b16 %v1702
          %v2233 = vunpack.c.l.b16 %v1703
          %v2234 = vunpack.c.l.b16 %v1704
          %v2235 = vpack.c.b16 %v2227, %v2227
          %v2236 = vpack.c.b16 %v2228, %v2228
          %v2237 = vpack.c.b16 %v2229, %v2229
          %v2238 = vpack.c.b16 %v2230, %v2230
          %v2239 = vpack.c.b16 %v2231, %v2231
          %v2240 = vpack.c.b16 %v2232, %v2232
          %v2241 = vpack.c.b16 %v2233, %v2233
          %v2242 = vpack.c.b16 %v2234, %v2234
          %v2244 = vshrl.u32 %v2211, 16
          %v2246 = vshll.u32 %v2211, 16
          %v2248 = vrot.slane %v2246, 1
          %v2249 = vor.u32 %v2244, %v2248
          %v2251 = vshll.u32 %v2235, 16
          %v2253 = vrot.slane %v2251, 1
          %v2254 = vsel %vm1777, %v2249, %v2253
          %v2256 = vshrl.u32 %v2212, 16
          %v2258 = vshll.u32 %v2212, 16
          %v2260 = vrot.slane %v2258, 1
          %v2261 = vor.u32 %v2256, %v2260
          %v2263 = vshll.u32 %v2236, 16
          %v2265 = vrot.slane %v2263, 1
          %v2266 = vsel %vm1777, %v2261, %v2265
          %v2268 = vshrl.u32 %v2213, 16
          %v2270 = vshll.u32 %v2213, 16
          %v2272 = vrot.slane %v2270, 1
          %v2273 = vor.u32 %v2268, %v2272
          %v2275 = vshll.u32 %v2237, 16
          %v2277 = vrot.slane %v2275, 1
          %v2278 = vsel %vm1777, %v2273, %v2277
          %v2280 = vshrl.u32 %v2214, 16
          %v2282 = vshll.u32 %v2214, 16
          %v2284 = vrot.slane %v2282, 1
          %v2285 = vor.u32 %v2280, %v2284
          %v2287 = vshll.u32 %v2238, 16
          %v2289 = vrot.slane %v2287, 1
          %v2290 = vsel %vm1777, %v2285, %v2289
          %v2292 = vshrl.u32 %v2215, 16
          %v2294 = vshll.u32 %v2215, 16
          %v2296 = vrot.slane %v2294, 1
          %v2297 = vor.u32 %v2292, %v2296
          %v2299 = vshll.u32 %v2239, 16
          %v2301 = vrot.slane %v2299, 1
          %v2302 = vsel %vm1777, %v2297, %v2301
          %v2304 = vshrl.u32 %v2216, 16
          %v2306 = vshll.u32 %v2216, 16
          %v2308 = vrot.slane %v2306, 1
          %v2309 = vor.u32 %v2304, %v2308
          %v2311 = vshll.u32 %v2240, 16
          %v2313 = vrot.slane %v2311, 1
          %v2314 = vsel %vm1777, %v2309, %v2313
          %v2316 = vshrl.u32 %v2217, 16
          %v2318 = vshll.u32 %v2217, 16
          %v2320 = vrot.slane %v2318, 1
          %v2321 = vor.u32 %v2316, %v2320
          %v2323 = vshll.u32 %v2241, 16
          %v2325 = vrot.slane %v2323, 1
          %v2326 = vsel %vm1777, %v2321, %v2325
          %v2328 = vshrl.u32 %v2218, 16
          %v2330 = vshll.u32 %v2218, 16
          %v2332 = vrot.slane %v2330, 1
          %v2333 = vor.u32 %v2328, %v2332
          %v2335 = vshll.u32 %v2242, 16
          %v2337 = vrot.slane %v2335, 1
          %v2338 = vsel %vm1777, %v2333, %v2337
          %2339 = vrot.lane.b32.xlu0 %v2254, 64
          %v2340 = vpop.permute.xlu0 %2339
          %2341 = vrot.lane.b32.xlu0 %v2266, 64
          %v2342 = vpop.permute.xlu0 %2341
          %2343 = vrot.lane.b32.xlu0 %v2278, 64
          %v2344 = vpop.permute.xlu0 %2343
          %2345 = vrot.lane.b32.xlu0 %v2290, 64
          %v2346 = vpop.permute.xlu0 %2345
          %2347 = vrot.lane.b32.xlu0 %v2302, 64
          %v2348 = vpop.permute.xlu0 %2347
          %2349 = vrot.lane.b32.xlu0 %v2314, 64
          %v2350 = vpop.permute.xlu0 %2349
          %2351 = vrot.lane.b32.xlu0 %v2326, 64
          %v2352 = vpop.permute.xlu0 %2351
          %2353 = vrot.lane.b32.xlu0 %v2338, 64
          %v2354 = vpop.permute.xlu0 %2353
          %v2363 = vunpack.c.l.b16 %v1705
          %v2364 = vunpack.c.l.b16 %v1706
          %v2365 = vunpack.c.l.b16 %v1707
          %v2366 = vunpack.c.l.b16 %v1708
          %v2367 = vunpack.c.l.b16 %v1709
          %v2368 = vunpack.c.l.b16 %v1710
          %v2369 = vunpack.c.l.b16 %v1711
          %v2370 = vunpack.c.l.b16 %v1712
          %v2371 = vpack.c.b16 %v2196, %v2363
          %v2372 = vpack.c.b16 %v2198, %v2364
          %v2373 = vpack.c.b16 %v2200, %v2365
          %v2374 = vpack.c.b16 %v2202, %v2366
          %v2375 = vpack.c.b16 %v2204, %v2367
          %v2376 = vpack.c.b16 %v2206, %v2368
          %v2377 = vpack.c.b16 %v2208, %v2369
          %v2378 = vpack.c.b16 %v2210, %v2370
          %v2379 = vrot.slane %v2371, 1
          %v2380 = vrot.slane %v2235, 1
          %v2381 = vsel %vm1914, %v2379, %v2380
          %v2382 = vrot.slane %v2372, 1
          %v2383 = vrot.slane %v2236, 1
          %v2384 = vsel %vm1914, %v2382, %v2383
          %v2385 = vrot.slane %v2373, 1
          %v2386 = vrot.slane %v2237, 1
          %v2387 = vsel %vm1914, %v2385, %v2386
          %v2388 = vrot.slane %v2374, 1
          %v2389 = vrot.slane %v2238, 1
          %v2390 = vsel %vm1914, %v2388, %v2389
          %v2391 = vrot.slane %v2375, 1
          %v2392 = vrot.slane %v2239, 1
          %v2393 = vsel %vm1914, %v2391, %v2392
          %v2394 = vrot.slane %v2376, 1
          %v2395 = vrot.slane %v2240, 1
          %v2396 = vsel %vm1914, %v2394, %v2395
          %v2397 = vrot.slane %v2377, 1
          %v2398 = vrot.slane %v2241, 1
          %v2399 = vsel %vm1914, %v2397, %v2398
          %v2400 = vrot.slane %v2378, 1
          %v2401 = vrot.slane %v2242, 1
          %v2402 = vsel %vm1914, %v2400, %v2401
          %v2404 = vsel %vm491, %v1745, %v1875
          %v2407 = vsel %vm491, %v1746, %v1877
          %v2410 = vsel %vm491, %v1747, %v1879
          %v2413 = vsel %vm491, %v1748, %v1881
          %v2416 = vsel %vm491, %v1749, %v1883
          %v2419 = vsel %vm491, %v1750, %v1885
          %v2422 = vsel %vm491, %v1751, %v1887
          %v2425 = vsel %vm491, %v1752, %v1889
          %v2429 = vsel %vm491, %v1917, %v1980
          %v2433 = vsel %vm491, %v1920, %v1982
          %v2437 = vsel %vm491, %v1923, %v1984
          %v2441 = vsel %vm491, %v1926, %v1986
          %v2445 = vsel %vm491, %v1929, %v1988
          %v2449 = vsel %vm491, %v1932, %v1990
          %v2453 = vsel %vm491, %v1935, %v1992
          %v2457 = vsel %vm491, %v1938, %v1994
          %v2461 = vsel %vm491, %v2030, %v2164
          %v2465 = vsel %vm491, %v2042, %v2166
          %v2469 = vsel %vm491, %v2054, %v2168
          %v2473 = vsel %vm491, %v2066, %v2170
          %v2477 = vsel %vm491, %v2078, %v2172
          %v2481 = vsel %vm491, %v2090, %v2174
          %v2485 = vsel %vm491, %v2102, %v2176
          %v2489 = vsel %vm491, %v2114, %v2178
          %v2492 = vsel %vm491, %v2211, %v2340
          %v2495 = vsel %vm491, %v2212, %v2342
          %v2498 = vsel %vm491, %v2213, %v2344
          %v2501 = vsel %vm491, %v2214, %v2346
          %v2504 = vsel %vm491, %v2215, %v2348
          %v2507 = vsel %vm491, %v2216, %v2350
          %v2510 = vsel %vm491, %v2217, %v2352
          %v2513 = vsel %vm491, %v2218, %v2354
          %v2515 = vld [vmem:[#allocation7] sm:$0xf]
          %v2516 = vld [vmem:[#allocation7 + $0x4] sm:$0xf]
          %v2517 = vld [vmem:[#allocation7 + $0x8] sm:$0xf]
          %v2518 = vld [vmem:[#allocation7 + $0xc] sm:$0xf]
          %v2519 = vld [vmem:[#allocation7 + $0x10] sm:$0xf]
          %v2520 = vld [vmem:[#allocation7 + $0x14] sm:$0xf]
          %v2521 = vld [vmem:[#allocation7 + $0x18] sm:$0xf]
          %v2522 = vld [vmem:[#allocation7 + $0x1c] sm:$0xf]
          %v2523 = vld [vmem:[#allocation7 + $0x20] sm:$0xf]
          %v2524 = vld [vmem:[#allocation7 + $0x24] sm:$0xf]
          %v2525 = vld [vmem:[#allocation7 + $0x28] sm:$0xf]
          %v2526 = vld [vmem:[#allocation7 + $0x2c] sm:$0xf]
          %v2527 = vld [vmem:[#allocation7 + $0x30] sm:$0xf]
          %v2528 = vld [vmem:[#allocation7 + $0x34] sm:$0xf]
          %v2529 = vld [vmem:[#allocation7 + $0x38] sm:$0xf]
          %v2530 = vld [vmem:[#allocation7 + $0x3c] sm:$0xf]
          %v2531 = vld [vmem:[#allocation7 + $0x40] sm:$0xf]
          %v2532 = vld [vmem:[#allocation7 + $0x44] sm:$0xf]
          %v2533 = vld [vmem:[#allocation7 + $0x48] sm:$0xf]
          %v2534 = vld [vmem:[#allocation7 + $0x4c] sm:$0xf]
          %v2535 = vld [vmem:[#allocation7 + $0x50] sm:$0xf]
          %v2536 = vld [vmem:[#allocation7 + $0x54] sm:$0xf]
          %v2537 = vld [vmem:[#allocation7 + $0x58] sm:$0xf]
          %v2538 = vld [vmem:[#allocation7 + $0x5c] sm:$0xf]
          %v2539 = vld [vmem:[#allocation7 + $0x60] sm:$0xf]
          %v2540 = vld [vmem:[#allocation7 + $0x64] sm:$0xf]
          %v2541 = vld [vmem:[#allocation7 + $0x68] sm:$0xf]
          %v2542 = vld [vmem:[#allocation7 + $0x6c] sm:$0xf]
          %v2543 = vld [vmem:[#allocation7 + $0x70] sm:$0xf]
          %v2544 = vld [vmem:[#allocation7 + $0x74] sm:$0xf]
          %v2545 = vld [vmem:[#allocation7 + $0x78] sm:$0xf]
          %v2546 = vld [vmem:[#allocation7 + $0x7c] sm:$0xf]
          %v2547 = vld [vmem:[#allocation7 + $0x80] sm:$0xf]
          %v2548 = vld [vmem:[#allocation7 + $0x84] sm:$0xf]
          %v2549 = vld [vmem:[#allocation7 + $0x88] sm:$0xf]
          %v2550 = vld [vmem:[#allocation7 + $0x8c] sm:$0xf]
          %v2551 = vld [vmem:[#allocation7 + $0x90] sm:$0xf]
          %v2552 = vld [vmem:[#allocation7 + $0x94] sm:$0xf]
          %v2553 = vld [vmem:[#allocation7 + $0x98] sm:$0xf]
          %v2554 = vld [vmem:[#allocation7 + $0x9c] sm:$0xf]
          %v2555 = vld [vmem:[#allocation7 + $0xa0] sm:$0xf]
          %v2556 = vld [vmem:[#allocation7 + $0xa4] sm:$0xf]
          %v2557 = vld [vmem:[#allocation7 + $0xa8] sm:$0xf]
          %v2558 = vld [vmem:[#allocation7 + $0xac] sm:$0xf]
          %v2559 = vld [vmem:[#allocation7 + $0xb0] sm:$0xf]
          %v2560 = vld [vmem:[#allocation7 + $0xb4] sm:$0xf]
          %v2561 = vld [vmem:[#allocation7 + $0xb8] sm:$0xf]
          %v2562 = vld [vmem:[#allocation7 + $0xbc] sm:$0xf]
          %v2563 = vld [vmem:[#allocation7 + $0xc0] sm:$0xf]
          %v2564 = vld [vmem:[#allocation7 + $0xc4] sm:$0xf]
          %v2565 = vld [vmem:[#allocation7 + $0xc8] sm:$0xf]
          %v2566 = vld [vmem:[#allocation7 + $0xcc] sm:$0xf]
          %v2567 = vld [vmem:[#allocation7 + $0xd0] sm:$0xf]
          %v2568 = vld [vmem:[#allocation7 + $0xd4] sm:$0xf]
          %v2569 = vld [vmem:[#allocation7 + $0xd8] sm:$0xf]
          %v2570 = vld [vmem:[#allocation7 + $0xdc] sm:$0xf]
          %v2571 = vld [vmem:[#allocation7 + $0xe0] sm:$0xf]
          %v2572 = vld [vmem:[#allocation7 + $0xe4] sm:$0xf]
          %v2573 = vld [vmem:[#allocation7 + $0xe8] sm:$0xf]
          %v2574 = vld [vmem:[#allocation7 + $0xec] sm:$0xf]
          %v2575 = vld [vmem:[#allocation7 + $0xf0] sm:$0xf]
          %v2576 = vld [vmem:[#allocation7 + $0xf4] sm:$0xf]
          %v2577 = vld [vmem:[#allocation7 + $0xf8] sm:$0xf]
          %v2578 = vld [vmem:[#allocation7 + $0xfc] sm:$0xf]
          %v2579 = vld [vmem:[#allocation7 + $0x100] sm:$0xf]
          %v2580 = vld [vmem:[#allocation7 + $0x104] sm:$0xf]
          %v2581 = vld [vmem:[#allocation7 + $0x108] sm:$0xf]
          %v2582 = vld [vmem:[#allocation7 + $0x10c] sm:$0xf]
          %v2583 = vld [vmem:[#allocation7 + $0x110] sm:$0xf]
          %v2584 = vld [vmem:[#allocation7 + $0x114] sm:$0xf]
          %v2585 = vld [vmem:[#allocation7 + $0x118] sm:$0xf]
          %v2586 = vld [vmem:[#allocation7 + $0x11c] sm:$0xf]
          %v2587 = vld [vmem:[%s5] sm:$0x1]
          %v2589 = vlaneseq
          %v2590 = vshrl.u32 %v2589, 7
          %v2591 = vsub.s32 0, %v2590
          %v2592 = vrot.slane %v2587, %v2591
          %v2666 = vunpack.c.l.b16 %v2515
          %v2667 = vunpack.c.l.b16 %v2516
          %v2668 = vunpack.c.l.b16 %v2517
          %v2669 = vunpack.c.l.b16 %v2518
          %v2670 = vunpack.c.l.b16 %v2519
          %v2671 = vunpack.c.l.b16 %v2520
          %v2672 = vunpack.c.l.b16 %v2521
          %v2673 = vunpack.c.l.b16 %v2522
          %v2674 = vunpack.c.l.b16 %v2523
          %v2675 = vunpack.c.l.b16 %v2524
          %v2676 = vunpack.c.l.b16 %v2525
          %v2677 = vunpack.c.l.b16 %v2526
          %v2678 = vunpack.c.l.b16 %v2527
          %v2679 = vunpack.c.l.b16 %v2528
          %v2680 = vunpack.c.l.b16 %v2529
          %v2681 = vunpack.c.l.b16 %v2530
          %v2682 = vunpack.c.l.b16 %v2531
          %v2683 = vunpack.c.l.b16 %v2532
          %v2684 = vunpack.c.l.b16 %v2533
          %v2685 = vunpack.c.l.b16 %v2534
          %v2686 = vunpack.c.l.b16 %v2535
          %v2687 = vunpack.c.l.b16 %v2536
          %v2688 = vunpack.c.l.b16 %v2537
          %v2689 = vunpack.c.l.b16 %v2538
          %v2690 = vunpack.c.l.b16 %v2539
          %v2691 = vunpack.c.l.b16 %v2540
          %v2692 = vunpack.c.l.b16 %v2541
          %v2693 = vunpack.c.l.b16 %v2542
          %v2694 = vunpack.c.l.b16 %v2543
          %v2695 = vunpack.c.l.b16 %v2544
          %v2696 = vunpack.c.l.b16 %v2545
          %v2697 = vunpack.c.l.b16 %v2546
          %v2698 = vunpack.c.l.b16 %v2547
          %v2699 = vunpack.c.l.b16 %v2548
          %v2700 = vunpack.c.l.b16 %v2549
          %v2701 = vunpack.c.l.b16 %v2550
          %v2702 = vunpack.c.l.b16 %v2551
          %v2703 = vunpack.c.l.b16 %v2552
          %v2704 = vunpack.c.l.b16 %v2553
          %v2705 = vunpack.c.l.b16 %v2554
          %v2706 = vunpack.c.l.b16 %v2555
          %v2707 = vunpack.c.l.b16 %v2556
          %v2708 = vunpack.c.l.b16 %v2557
          %v2709 = vunpack.c.l.b16 %v2558
          %v2710 = vunpack.c.l.b16 %v2559
          %v2711 = vunpack.c.l.b16 %v2560
          %v2712 = vunpack.c.l.b16 %v2561
          %v2713 = vunpack.c.l.b16 %v2562
          %v2714 = vunpack.c.l.b16 %v2563
          %v2715 = vunpack.c.l.b16 %v2564
          %v2716 = vunpack.c.l.b16 %v2565
          %v2717 = vunpack.c.l.b16 %v2566
          %v2718 = vunpack.c.l.b16 %v2567
          %v2719 = vunpack.c.l.b16 %v2568
          %v2720 = vunpack.c.l.b16 %v2569
          %v2721 = vunpack.c.l.b16 %v2570
          %v2722 = vunpack.c.l.b16 %v2571
          %v2723 = vunpack.c.l.b16 %v2572
          %v2724 = vunpack.c.l.b16 %v2573
          %v2725 = vunpack.c.l.b16 %v2574
          %v2726 = vunpack.c.l.b16 %v2575
          %v2727 = vunpack.c.l.b16 %v2576
          %v2728 = vunpack.c.l.b16 %v2577
          %v2729 = vunpack.c.l.b16 %v2578
          %v2730 = vunpack.c.l.b16 %v2579
          %v2731 = vunpack.c.l.b16 %v2580
          %v2732 = vunpack.c.l.b16 %v2581
          %v2733 = vunpack.c.l.b16 %v2582
          %v2734 = vunpack.c.l.b16 %v2583
          %v2735 = vunpack.c.l.b16 %v2584
          %v2736 = vunpack.c.l.b16 %v2585
          %v2737 = vunpack.c.l.b16 %v2586
          %v2738 = vpack.c.b16 %v2667, %v2666
          %v2739 = vpack.c.b16 %v2669, %v2668
          %v2740 = vpack.c.b16 %v2671, %v2670
          %v2741 = vpack.c.b16 %v2673, %v2672
          %v2742 = vpack.c.b16 %v2675, %v2674
          %v2743 = vpack.c.b16 %v2677, %v2676
          %v2744 = vpack.c.b16 %v2679, %v2678
          %v2745 = vpack.c.b16 %v2681, %v2680
          %v2746 = vpack.c.b16 %v2683, %v2682
          %v2747 = vpack.c.b16 %v2685, %v2684
          %v2748 = vpack.c.b16 %v2687, %v2686
          %v2749 = vpack.c.b16 %v2689, %v2688
          %v2750 = vpack.c.b16 %v2691, %v2690
          %v2751 = vpack.c.b16 %v2693, %v2692
          %v2752 = vpack.c.b16 %v2695, %v2694
          %v2753 = vpack.c.b16 %v2697, %v2696
          %v2754 = vpack.c.b16 %v2699, %v2698
          %v2755 = vpack.c.b16 %v2701, %v2700
          %v2756 = vpack.c.b16 %v2703, %v2702
          %v2757 = vpack.c.b16 %v2705, %v2704
          %v2758 = vpack.c.b16 %v2707, %v2706
          %v2759 = vpack.c.b16 %v2709, %v2708
          %v2760 = vpack.c.b16 %v2711, %v2710
          %v2761 = vpack.c.b16 %v2713, %v2712
          %v2762 = vpack.c.b16 %v2715, %v2714
          %v2763 = vpack.c.b16 %v2717, %v2716
          %v2764 = vpack.c.b16 %v2719, %v2718
          %v2765 = vpack.c.b16 %v2721, %v2720
          %v2766 = vpack.c.b16 %v2723, %v2722
          %v2767 = vpack.c.b16 %v2725, %v2724
          %v2768 = vpack.c.b16 %v2727, %v2726
          %v2769 = vpack.c.b16 %v2729, %v2728
          %v2770 = vpack.c.b16 %v2731, %v2730
          %v2771 = vpack.c.b16 %v2733, %v2732
          %v2772 = vpack.c.b16 %v2735, %v2734
          %v2773 = vpack.c.b16 %v2737, %v2736
          %v2811 = vsel %vm491, %v2381, 0
          %v2814 = vsel %vm491, %v2384, 0
          %v2817 = vsel %vm491, %v2387, 0
          %v2820 = vsel %vm491, %v2390, 0
          %v2823 = vsel %vm491, %v2393, 0
          %v2826 = vsel %vm491, %v2396, 0
          %v2829 = vsel %vm491, %v2399, 0
          %v2832 = vsel %vm491, %v2402, 0
          %2834 = vmatprep.subr.bf16.mxu0 0
          %2835 = vmatpush1.bf16.msra.mxu0 %v2738
          %2836 = vmatprep.subr.bf16.mxu0 0
          %2837 = vmatpush1.bf16.msra.mxu0 %v2739
          %2838 = vmatprep.subr.bf16.mxu0 0
          %2839 = vmatpush1.bf16.msra.mxu0 %v2740
          %2840 = vmatprep.subr.bf16.mxu0 0
          %2841 = vmatpush1.bf16.msra.mxu0 %v2741
          %2842 = vmatprep.subr.bf16.mxu0 0
          %2843 = vmatpush1.bf16.msra.mxu0 %v2742
          %2844 = vmatprep.subr.bf16.mxu0 0
          %2845 = vmatpush1.bf16.msra.mxu0 %v2743
          %2846 = vmatprep.subr.bf16.mxu0 0
          %2847 = vmatpush1.bf16.msra.mxu0 %v2744
          %2848 = vmatprep.subr.bf16.mxu0 0
          %2849 = vmatpush1.bf16.msra.mxu0 %v2745
          %2850 = vmatprep.subr.bf16.mxu0 0
          %2851 = vmatpush1.bf16.msra.mxu0 %v2746
          %2852 = vmatprep.subr.bf16.mxu0 0
          %2853 = vmatpush1.bf16.msra.mxu0 %v2747
          %2854 = vmatprep.subr.bf16.mxu0 0
          %2855 = vmatpush1.bf16.msra.mxu0 %v2748
          %2856 = vmatprep.subr.bf16.mxu0 0
          %2857 = vmatpush1.bf16.msra.mxu0 %v2749
          %2858 = vmatprep.subr.bf16.mxu0 0
          %2859 = vmatpush1.bf16.msra.mxu0 %v2750
          %2860 = vmatprep.subr.bf16.mxu0 0
          %2861 = vmatpush1.bf16.msra.mxu0 %v2751
          %2862 = vmatprep.subr.bf16.mxu0 0
          %2863 = vmatpush1.bf16.msra.mxu0 %v2752
          %2864 = vmatprep.subr.bf16.mxu0 0
          %2865 = vmatpush1.bf16.msra.mxu0 %v2753
          %2866 = vmatprep.mubr.bf16.mxu0 %v2429
          %2867 = vmatmul.mubr.bf16.gmra.mrb[0].mxu0 %v2404
          %v2868 = vpop.f32.mrb[0].mxu0
          %v2869 = vadd.f32 %v2592, %v2868
          %v2870 = vpop.f32.mrb[0].mxu0
          %v2871 = vpop.f32.mrb[0].mxu0
          %v2872 = vadd.f32 %v2592, %v2871
          %v2873 = vpop.f32.mrb[0].mxu0
          %2874 = vmatprep.mubr.bf16.mxu0 %v2433
          %2875 = vmatmul.mubr.bf16.gmra.mrb[0].mxu0 %v2407
          %v2876 = vpop.f32.mrb[0].mxu0
          %v2877 = vadd.f32 %v2592, %v2876
          %v2878 = vpop.f32.mrb[0].mxu0
          %v2879 = vpop.f32.mrb[0].mxu0
          %v2880 = vadd.f32 %v2592, %v2879
          %v2881 = vpop.f32.mrb[0].mxu0
          %2882 = vmatprep.mubr.bf16.mxu0 %v2437
          %2883 = vmatmul.mubr.bf16.gmra.mrb[0].mxu0 %v2410
          %v2884 = vpop.f32.mrb[0].mxu0
          %v2885 = vadd.f32 %v2592, %v2884
          %v2886 = vpop.f32.mrb[0].mxu0
          %v2887 = vpop.f32.mrb[0].mxu0
          %v2888 = vadd.f32 %v2592, %v2887
          %v2889 = vpop.f32.mrb[0].mxu0
          %2890 = vmatprep.mubr.bf16.mxu0 %v2441
          %2891 = vmatmul.mubr.bf16.gmra.mrb[0].mxu0 %v2413
          %v2892 = vpop.f32.mrb[0].mxu0
          %v2893 = vadd.f32 %v2592, %v2892
          %v2894 = vpop.f32.mrb[0].mxu0
          %v2895 = vpop.f32.mrb[0].mxu0
          %v2896 = vadd.f32 %v2592, %v2895
          %v2897 = vpop.f32.mrb[0].mxu0
          %2898 = vmatprep.mubr.bf16.mxu0 %v2445
          %2899 = vmatmul.mubr.bf16.gmra.mrb[0].mxu0 %v2416
          %v2900 = vpop.f32.mrb[0].mxu0
          %v2901 = vadd.f32 %v2592, %v2900
          %v2902 = vpop.f32.mrb[0].mxu0
          %v2903 = vpop.f32.mrb[0].mxu0
          %v2904 = vadd.f32 %v2592, %v2903
          %v2905 = vpop.f32.mrb[0].mxu0
          %2906 = vmatprep.mubr.bf16.mxu0 %v2449
          %2907 = vmatmul.mubr.bf16.gmra.mrb[0].mxu0 %v2419
          %v2908 = vpop.f32.mrb[0].mxu0
          %v2909 = vadd.f32 %v2592, %v2908
          %v2910 = vpop.f32.mrb[0].mxu0
          %v2911 = vpop.f32.mrb[0].mxu0
          %v2912 = vadd.f32 %v2592, %v2911
          %v2913 = vpop.f32.mrb[0].mxu0
          %2914 = vmatprep.mubr.bf16.mxu0 %v2453
          %2915 = vmatmul.mubr.bf16.gmra.mrb[0].mxu0 %v2422
          %v2916 = vpop.f32.mrb[0].mxu0
          %v2917 = vadd.f32 %v2592, %v2916
          %v2918 = vpop.f32.mrb[0].mxu0
          %v2919 = vpop.f32.mrb[0].mxu0
          %v2920 = vadd.f32 %v2592, %v2919
          %v2921 = vpop.f32.mrb[0].mxu0
          %2922 = vmatprep.mubr.bf16.mxu0 %v2457
          %2923 = vmatmul.mubr.bf16.gmra.mrb[0].mxu0 %v2425
          %v2924 = vpop.f32.mrb[0].mxu0
          %v2925 = vadd.f32 %v2592, %v2924
          %v2926 = vpop.f32.mrb[0].mxu0
          %v2927 = vpop.f32.mrb[0].mxu0
          %v2928 = vadd.f32 %v2592, %v2927
          %v2929 = vpop.f32.mrb[0].mxu0
          %2930 = vdwg.mxu0
          %2931 = vmatprep.subr.bf16.mxu0 0
          %2932 = vmatpush1.bf16.msra.mxu0 %v2754
          %2933 = vmatprep.subr.bf16.mxu0 0
          %2934 = vmatpush1.bf16.msra.mxu0 %v2755
          %2935 = vmatprep.subr.bf16.mxu0 0
          %2936 = vmatpush1.bf16.msra.mxu0 %v2756
          %2937 = vmatprep.subr.bf16.mxu0 0
          %2938 = vmatpush1.bf16.msra.mxu0 %v2757
          %2939 = vmatprep.subr.bf16.mxu0 0
          %2940 = vmatpush1.bf16.msra.mxu0 %v2758
          %2941 = vmatprep.subr.bf16.mxu0 0
          %2942 = vmatpush1.bf16.msra.mxu0 %v2759
          %2943 = vmatprep.subr.bf16.mxu0 0
          %2944 = vmatpush1.bf16.msra.mxu0 %v2760
          %2945 = vmatprep.subr.bf16.mxu0 0
          %2946 = vmatpush1.bf16.msra.mxu0 %v2761
          %2947 = vmatprep.subr.bf16.mxu0 0
          %2948 = vmatpush1.bf16.msra.mxu0 %v2762
          %2949 = vmatprep.subr.bf16.mxu0 0
          %2950 = vmatpush1.bf16.msra.mxu0 %v2763
          %2951 = vmatprep.subr.bf16.mxu0 0
          %2952 = vmatpush1.bf16.msra.mxu0 %v2764
          %2953 = vmatprep.subr.bf16.mxu0 0
          %2954 = vmatpush1.bf16.msra.mxu0 %v2765
          %2955 = vmatprep.subr.bf16.mxu0 0
          %2956 = vmatpush1.bf16.msra.mxu0 %v2766
          %2957 = vmatprep.subr.bf16.mxu0 0
          %2958 = vmatpush1.bf16.msra.mxu0 %v2767
          %2959 = vmatprep.subr.bf16.mxu0 0
          %2960 = vmatpush1.bf16.msra.mxu0 %v2768
          %2961 = vmatprep.subr.bf16.mxu0 0
          %2962 = vmatpush1.bf16.msra.mxu0 %v2769
          %2963 = vmatprep.mubr.bf16.mxu0 %v2492
          %2964 = vmatmul.mubr.bf16.gmra.mrb[0].mxu0 %v2461
          %v2965 = vpop.f32.mrb[0].mxu0
          %v2966 = vadd.f32 %v2869, %v2965
          %v2967 = vpop.f32.mrb[0].mxu0
          %v2968 = vpop.f32.mrb[0].mxu0
          %v2969 = vadd.f32 %v2872, %v2968
          %v2970 = vpop.f32.mrb[0].mxu0
          %2971 = vmatprep.mubr.bf16.mxu0 %v2495
          %2972 = vmatmul.mubr.bf16.gmra.mrb[0].mxu0 %v2465
          %v2973 = vpop.f32.mrb[0].mxu0
          %v2974 = vadd.f32 %v2877, %v2973
          %v2975 = vpop.f32.mrb[0].mxu0
          %v2976 = vpop.f32.mrb[0].mxu0
          %v2977 = vadd.f32 %v2880, %v2976
          %v2978 = vpop.f32.mrb[0].mxu0
          %2979 = vmatprep.mubr.bf16.mxu0 %v2498
          %2980 = vmatmul.mubr.bf16.gmra.mrb[0].mxu0 %v2469
          %v2981 = vpop.f32.mrb[0].mxu0
          %v2982 = vadd.f32 %v2885, %v2981
          %v2983 = vpop.f32.mrb[0].mxu0
          %v2984 = vpop.f32.mrb[0].mxu0
          %v2985 = vadd.f32 %v2888, %v2984
          %v2986 = vpop.f32.mrb[0].mxu0
          %2987 = vmatprep.mubr.bf16.mxu0 %v2501
          %2988 = vmatmul.mubr.bf16.gmra.mrb[0].mxu0 %v2473
          %v2989 = vpop.f32.mrb[0].mxu0
          %v2990 = vadd.f32 %v2893, %v2989
          %v2991 = vpop.f32.mrb[0].mxu0
          %v2992 = vpop.f32.mrb[0].mxu0
          %v2993 = vadd.f32 %v2896, %v2992
          %v2994 = vpop.f32.mrb[0].mxu0
          %2995 = vmatprep.mubr.bf16.mxu0 %v2504
          %2996 = vmatmul.mubr.bf16.gmra.mrb[0].mxu0 %v2477
          %v2997 = vpop.f32.mrb[0].mxu0
          %v2998 = vadd.f32 %v2901, %v2997
          %v2999 = vpop.f32.mrb[0].mxu0
          %v3000 = vpop.f32.mrb[0].mxu0
          %v3001 = vadd.f32 %v2904, %v3000
          %v3002 = vpop.f32.mrb[0].mxu0
          %3003 = vmatprep.mubr.bf16.mxu0 %v2507
          %3004 = vmatmul.mubr.bf16.gmra.mrb[0].mxu0 %v2481
          %v3005 = vpop.f32.mrb[0].mxu0
          %v3006 = vadd.f32 %v2909, %v3005
          %v3007 = vpop.f32.mrb[0].mxu0
          %v3008 = vpop.f32.mrb[0].mxu0
          %v3009 = vadd.f32 %v2912, %v3008
          %v3010 = vpop.f32.mrb[0].mxu0
          %3011 = vmatprep.mubr.bf16.mxu0 %v2510
          %3012 = vmatmul.mubr.bf16.gmra.mrb[0].mxu0 %v2485
          %v3013 = vpop.f32.mrb[0].mxu0
          %v3014 = vadd.f32 %v2917, %v3013
          %v3015 = vpop.f32.mrb[0].mxu0
          %v3016 = vpop.f32.mrb[0].mxu0
          %v3017 = vadd.f32 %v2920, %v3016
          %v3018 = vpop.f32.mrb[0].mxu0
          %3019 = vmatprep.mubr.bf16.mxu0 %v2513
          %3020 = vmatmul.mubr.bf16.gmra.mrb[0].mxu0 %v2489
          %v3021 = vpop.f32.mrb[0].mxu0
          %v3022 = vadd.f32 %v2925, %v3021
          %v3023 = vpop.f32.mrb[0].mxu0
          %v3024 = vpop.f32.mrb[0].mxu0
          %v3025 = vadd.f32 %v2928, %v3024
          %v3026 = vpop.f32.mrb[0].mxu0
          %3027 = vdwg.mxu0
          %3028 = vmatprep.subr.bf16.mxu0 0
          %3029 = vmatpush1.bf16.msra.mxu0 %v2770
          %3030 = vmatprep.subr.bf16.mxu0 0
          %3031 = vmatpush1.bf16.msra.mxu0 %v2771
          %3032 = vmatprep.subr.bf16.mxu0 0
          %3033 = vmatpush1.bf16.msra.mxu0 %v2772
          %3034 = vmatprep.subr.bf16.mxu0 0
          %3035 = vmatpush1.bf16.msra.mxu0 %v2773
          %3036 = vmatprep.subr.bf16.mxu0 0
          %3037 = vmatpush1.bf16.msra.mxu0 0
          %3038 = vmatprep.subr.bf16.mxu0 0
          %3039 = vmatpush1.bf16.msra.mxu0 0
          %3040 = vmatprep.subr.bf16.mxu0 0
          %3041 = vmatpush1.bf16.msra.mxu0 0
          %3042 = vmatprep.subr.bf16.mxu0 0
          %3043 = vmatpush1.bf16.msra.mxu0 0
          %3044 = vmatprep.subr.bf16.mxu0 0
          %3045 = vmatpush1.bf16.msra.mxu0 0
          %3046 = vmatprep.subr.bf16.mxu0 0
          %3047 = vmatpush1.bf16.msra.mxu0 0
          %3048 = vmatprep.subr.bf16.mxu0 0
          %3049 = vmatpush1.bf16.msra.mxu0 0
          %3050 = vmatprep.subr.bf16.mxu0 0
          %3051 = vmatpush1.bf16.msra.mxu0 0
          %3052 = vmatprep.subr.bf16.mxu0 0
          %3053 = vmatpush1.bf16.msra.mxu0 0
          %3054 = vmatprep.subr.bf16.mxu0 0
          %3055 = vmatpush1.bf16.msra.mxu0 0
          %3056 = vmatprep.subr.bf16.mxu0 0
          %3057 = vmatpush1.bf16.msra.mxu0 0
          %3058 = vmatprep.subr.bf16.mxu0 0
          %3059 = vmatpush1.bf16.msra.mxu0 0
          %3060 = vmatprep.mubr.bf16.mxu0 0
          %3061 = vmatmul.mubr.bf16.gmra.mrb[0].mxu0 %v2811
          %v3062 = vpop.f32.mrb[0].mxu0
          %v3063 = vadd.f32 %v2966, %v3062
          %v3064 = vpop.f32.mrb[0].mxu0
          %v3065 = vpop.f32.mrb[0].mxu0
          %v3066 = vadd.f32 %v2969, %v3065
          %v3067 = vpop.f32.mrb[0].mxu0
          %3068 = vmatprep.mubr.bf16.mxu0 0
          %3069 = vmatmul.mubr.bf16.gmra.mrb[0].mxu0 %v2814
          %v3070 = vpop.f32.mrb[0].mxu0
          %v3071 = vadd.f32 %v2974, %v3070
          %v3072 = vpop.f32.mrb[0].mxu0
          %v3073 = vpop.f32.mrb[0].mxu0
          %v3074 = vadd.f32 %v2977, %v3073
          %v3075 = vpop.f32.mrb[0].mxu0
          %3076 = vmatprep.mubr.bf16.mxu0 0
          %3077 = vmatmul.mubr.bf16.gmra.mrb[0].mxu0 %v2817
          %v3078 = vpop.f32.mrb[0].mxu0
          %v3079 = vadd.f32 %v2982, %v3078
          %v3080 = vpop.f32.mrb[0].mxu0
          %v3081 = vpop.f32.mrb[0].mxu0
          %v3082 = vadd.f32 %v2985, %v3081
          %v3083 = vpop.f32.mrb[0].mxu0
          %3084 = vmatprep.mubr.bf16.mxu0 0
          %3085 = vmatmul.mubr.bf16.gmra.mrb[0].mxu0 %v2820
          %v3086 = vpop.f32.mrb[0].mxu0
          %v3087 = vadd.f32 %v2990, %v3086
          %v3088 = vpop.f32.mrb[0].mxu0
          %v3089 = vpop.f32.mrb[0].mxu0
          %v3090 = vadd.f32 %v2993, %v3089
          %v3091 = vpop.f32.mrb[0].mxu0
          %3092 = vmatprep.mubr.bf16.mxu0 0
          %3093 = vmatmul.mubr.bf16.gmra.mrb[0].mxu0 %v2823
          %v3094 = vpop.f32.mrb[0].mxu0
          %v3095 = vadd.f32 %v2998, %v3094
          %v3096 = vpop.f32.mrb[0].mxu0
          %v3097 = vpop.f32.mrb[0].mxu0
          %v3098 = vadd.f32 %v3001, %v3097
          %v3099 = vpop.f32.mrb[0].mxu0
          %3100 = vmatprep.mubr.bf16.mxu0 0
          %3101 = vmatmul.mubr.bf16.gmra.mrb[0].mxu0 %v2826
          %v3102 = vpop.f32.mrb[0].mxu0
          %v3103 = vadd.f32 %v3006, %v3102
          %v3104 = vpop.f32.mrb[0].mxu0
          %v3105 = vpop.f32.mrb[0].mxu0
          %v3106 = vadd.f32 %v3009, %v3105
          %v3107 = vpop.f32.mrb[0].mxu0
          %3108 = vmatprep.mubr.bf16.mxu0 0
          %3109 = vmatmul.mubr.bf16.gmra.mrb[0].mxu0 %v2829
          %v3110 = vpop.f32.mrb[0].mxu0
          %v3111 = vadd.f32 %v3014, %v3110
          %v3112 = vpop.f32.mrb[0].mxu0
          %v3113 = vpop.f32.mrb[0].mxu0
          %v3114 = vadd.f32 %v3017, %v3113
          %v3115 = vpop.f32.mrb[0].mxu0
          %3116 = vmatprep.mubr.bf16.mxu0 0
          %3117 = vmatmul.mubr.bf16.gmra.mrb[0].mxu0 %v2832
          %v3118 = vpop.f32.mrb[0].mxu0
          %v3119 = vadd.f32 %v3022, %v3118
          %v3120 = vpop.f32.mrb[0].mxu0
          %v3121 = vpop.f32.mrb[0].mxu0
          %v3122 = vadd.f32 %v3025, %v3121
          %v3123 = vpop.f32.mrb[0].mxu0
          %3124 = vdwg.mxu0
          %v3125 = vmax.f32 %v3063, 0.0
          %v3126 = vmax.f32 %v3066, 0.0
          %v3127 = vmax.f32 %v3071, 0.0
          %v3128 = vmax.f32 %v3074, 0.0
          %v3129 = vmax.f32 %v3079, 0.0
          %v3130 = vmax.f32 %v3082, 0.0
          %v3131 = vmax.f32 %v3087, 0.0
          %v3132 = vmax.f32 %v3090, 0.0
          %v3133 = vmax.f32 %v3095, 0.0
          %v3134 = vmax.f32 %v3098, 0.0
          %v3135 = vmax.f32 %v3103, 0.0
          %v3136 = vmax.f32 %v3106, 0.0
          %v3137 = vmax.f32 %v3111, 0.0
          %v3138 = vmax.f32 %v3114, 0.0
          %v3139 = vmax.f32 %v3119, 0.0
          %v3140 = vmax.f32 %v3122, 0.0
          %v3141 = vmul.f32 %v3125, %v1152
          %v3142 = vmul.f32 %v3126, %v1152
          %v3143 = vmul.f32 %v3127, %v1156
          %v3144 = vmul.f32 %v3128, %v1156
          %v3145 = vmul.f32 %v3129, %v1160
          %v3146 = vmul.f32 %v3130, %v1160
          %v3147 = vmul.f32 %v3131, %v1164
          %v3148 = vmul.f32 %v3132, %v1164
          %v3149 = vmul.f32 %v3133, %v1168
          %v3150 = vmul.f32 %v3134, %v1168
          %v3151 = vmul.f32 %v3135, %v1172
          %v3152 = vmul.f32 %v3136, %v1172
          %v3153 = vmul.f32 %v3137, %v1176
          %v3154 = vmul.f32 %v3138, %v1176
          %v3155 = vmul.f32 %v3139, %v1180
          %v3156 = vmul.f32 %v3140, %v1180
          %v3157 = vmax.f32 %v3141, %v3143
          %v3158 = vmax.f32 %v3142, %v3144
          %v3159 = vmax.f32 %v3145, %v3147
          %v3160 = vmax.f32 %v3146, %v3148
          %v3161 = vmax.f32 %v3149, %v3151
          %v3162 = vmax.f32 %v3150, %v3152
          %v3163 = vmax.f32 %v3153, %v3155
          %v3164 = vmax.f32 %v3154, %v3156
          %3165 = vst [vmem:[#allocation4] sm:$0xff] %v3157
          %3166 = vst [vmem:[#allocation4 + $0x8] sm:$0xff] %v3158
          %3167 = vst [vmem:[#allocation4 + $0x10] sm:$0xff] %v3159
          %3168 = vst [vmem:[#allocation4 + $0x18] sm:$0xff] %v3160
          %3169 = vst [vmem:[#allocation4 + $0x20] sm:$0xff] %v3161
          %3170 = vst [vmem:[#allocation4 + $0x28] sm:$0xff] %v3162
          %3171 = vst [vmem:[#allocation4 + $0x30] sm:$0xff] %v3163
          %3172 = vst [vmem:[#allocation4 + $0x38] sm:$0xff] %v3164
          %v3173 = vld [vmem:[#allocation4] ss:$2 sm:$0xff]
          %s3174 = scalar_lea.vmem [#allocation4], 16
          %v3175 = vld [vmem:[%s3174] ss:$2 sm:$0xff]
          %s3176 = scalar_lea.vmem [#allocation4], 32
          %v3177 = vld [vmem:[%s3176] ss:$2 sm:$0xff]
          %s3178 = scalar_lea.vmem [#allocation4], 48
          %v3179 = vld [vmem:[%s3178] ss:$2 sm:$0xff]
          %s3180 = scalar_lea.vmem [#allocation4], 1
          %v3181 = vld [vmem:[%s3180] ss:$2 sm:$0xff]
          %s3182 = scalar_lea.vmem [#allocation4], 17
          %v3183 = vld [vmem:[%s3182] ss:$2 sm:$0xff]
          %s3184 = scalar_lea.vmem [#allocation4], 33
          %v3185 = vld [vmem:[%s3184] ss:$2 sm:$0xff]
          %s3186 = scalar_lea.vmem [#allocation4], 49
          %v3187 = vld [vmem:[%s3186] ss:$2 sm:$0xff]
          %v3188 = vmax.f32 %v3173, %v3181
          %v3189 = vmax.f32 %v3175, %v3183
          %v3190 = vmax.f32 %v3177, %v3185
          %v3191 = vmax.f32 %v3179, %v3187
          %3192 = vst [vmem:[%s263] sm:$0xff] %v3188
          %3193 = vst [vmem:[%s263 + $0x8] sm:$0xff] %v3189
          %3194 = vst [vmem:[%s263 + $0x10] sm:$0xff] %v3190
          %3195 = vst [vmem:[%s263 + $0x18] sm:$0xff] %v3191
        $region52: #{tpu_custom_call.1} parent=39 // pred_fallthru
          _
        %s3196 = sand.u32 %s161, 1
        %s3197 = scalar_lea.sflag [#allocation9], %s3196
        %s3198 = sand.u32 %s161, 1
        %s3199 = smul.addr %s3198, 32
        %s3200 = scalar_lea.vmem [#allocation10], %s3199
        // Predicated region
        $region53: #{tpu_custom_call.1} parent=39 // pred_check
          %p3201 = pneg %p171
        $region54: #{tpu_custom_call.1} parent=39 // pred_check_branch
          %3203 = sbr.rel (%p3201) target = $region56
        $region55: #{tpu_custom_call.1} parent=39 // pred_region
          %s3204 = smul.u32 4, %s32
          %s3206 = ssub.s32 512, 512
          %3207 = vsyncadd %s3197, %s3206
          %s3208 = smul.addr %s31, 4
          %s3209 = sadd.s32 %s3204, %s3208
          %s3210 = smul.addr %s3209, 128
          %s3211 = scalar_lea.hbm %s6, %s3210
          %s3212 = sshll.u32 %s3200, 4
          %s3213 = int_to_ptr.vmem [resolvable:$true] %s3212
          %3218 = dma.vmem_to_hbm [thread:$0]  %s3213, 512, %s3211, %s3197, 128, 128, 8
        $region56: #{tpu_custom_call.1} parent=39 // pred_fallthru
          _
      $region40: #{tpu_custom_call.1} parent=5 // pred_fallthru
        _
      %p3219 = scmp.le.s32.totalorder 2, %s22
      // Predicated region
      $region57: #{tpu_custom_call.1} parent=5 // pred_check
        %p3220 = pneg %p3219
      $region58: #{tpu_custom_call.1} parent=5 // pred_check_branch
        %3222 = sbr.rel (%p3220) target = $region60
      $region59: #{tpu_custom_call.1} parent=5 // pred_region
        %s3223 = ssub.s32 %s22, 2
        // Predicated region
        $region61: #{tpu_custom_call.1} parent=59 // pred_check
          %p3224 = pneg %p177
        $region62: #{tpu_custom_call.1} parent=59 // pred_check_branch
          %3226 = sbr.rel (%p3224) target = $region64
        $region63: #{tpu_custom_call.1} parent=59 // pred_region
          %s3227 = sand.u32 %s162, 1
          %s3228 = scalar_lea.sflag [#allocation9], %s3227
          %s3229 = sand.u32 %s162, 1
          %s3230 = smul.addr %s3229, 32
          %s3231 = scalar_lea.vmem [#allocation10], %s3230
          %3232 = dma.done %s3228, 512
        $region64: #{tpu_custom_call.1} parent=59 // pred_fallthru
          _
      $region60: #{tpu_custom_call.1} parent=5 // pred_fallthru
        _
    $region6: #{tpu_custom_call.1} parent=1 // loop_footer
      %s26 = sadd.s32 1, %s22
    $region7: #{tpu_custom_call.1} parent=1 // loop_footer_branch
      %21 = sbr.rel target = $region3
    $region8: #{tpu_custom_call.1} parent=1 // loop_exit
      _
    %3233 = vsyncpa [#allocation8], 1
    %s3234 = scalar_lea.sflag [#allocation8], 1
    %3235 = vsyncpa %s3234, 1
    %3236 = vsyncpa [#allocation9], 1
    %s3237 = scalar_lea.sflag [#allocation9], 1
    %3238 = vsyncpa %s3237, 1

</llo_original>
